<compile_context>
chip_gen: v6e
topology: v6e:2x2x1
jax: 0.10.0
libtpu: 0.0.40
codegen_flags: <defaults>
</compile_context>

<pallas_src>
import functools

import jax
import jax.numpy as jnp
import numpy as np
from jax.experimental import pallas as pl
from jax.experimental.pallas import tpu as pltpu


# ----------------------------------------------------------------------------
# Fused whole-model kernel.
#   refs = [x, (wih, whh, b) * num_layers, att_w, att_b, fc_w, fc_b,
#           out, act_scr, gx_scr]
# ----------------------------------------------------------------------------
def _fused_bilstm_attn_kernel(*refs, seq_len, batch, hidden, num_layers):
    T, B, H, L = seq_len, batch, hidden, num_layers
    G4 = 4 * H

    x_ref = refs[0]
    layer_refs = [refs[1 + 3 * l: 4 + 3 * l] for l in range(L)]
    aw_ref, ab_ref, fw_ref, fb_ref = refs[1 + 3 * L: 5 + 3 * L]
    out_ref = refs[5 + 3 * L]
    act_scr = refs[6 + 3 * L]      # (T, B, 2H) inter-layer activations (VMEM)
    gx_scr = refs[7 + 3 * L]       # (T, B, 8H) hoisted input-gate projections (VMEM)

    def lstm_cell(gates, c_prev):
        # PyTorch gate order: i, f, g, o (each H lanes wide).
        i = jax.nn.sigmoid(gates[:, 0 * H:1 * H])
        f = jax.nn.sigmoid(gates[:, 1 * H:2 * H])
        g = jnp.tanh(gates[:, 2 * H:3 * H])
        o = jax.nn.sigmoid(gates[:, 3 * H:4 * H])
        c = f * c_prev + i * g
        return o * jnp.tanh(c), c

    for layer, (wih_ref, whh_ref, b_ref) in enumerate(layer_refs):
        wih = wih_ref[...]          # (D_in, 8H)   columns = [fwd 4H | bwd 4H]
        whh = whh_ref[...]          # (2H, 8H)     block-diag(Whh_f, Whh_b)
        bias = b_ref[...]           # (1, 8H)      (b_ih + b_hh) per direction

        # ---- hoisted input projection: off the serial recurrence -----------
        for t in range(T):
            inp_t = x_ref[t] if layer == 0 else act_scr[t]           # (B, D_in)
            gx_scr[t] = jnp.dot(inp_t, wih,
                                preferred_element_type=jnp.float32) + bias

        # ---- fused fwd/bwd time recurrence (fully unrolled, T=8) -----------
        # States live in vregs; only the (B,2H)@(2H,8H) 256-lane matmul is on
        # the sequential dependency chain.
        h_f = jnp.zeros((B, H), jnp.float32)
        c_f = jnp.zeros((B, H), jnp.float32)
        h_b = jnp.zeros((B, H), jnp.float32)
        c_b = jnp.zeros((B, H), jnp.float32)
        for s in range(T):
            rs = T - 1 - s
            h_cat = jnp.concatenate([h_f, h_b], axis=-1)             # (B, 2H)
            gh = jnp.dot(h_cat, whh,
                         preferred_element_type=jnp.float32)         # (B, 8H)
            g_fwd = gh[:, :G4] + gx_scr[s, :, :G4]                   # (B, 4H)
            g_bwd = gh[:, G4:] + gx_scr[rs, :, G4:]                  # (B, 4H)
            h_f, c_f = lstm_cell(g_fwd, c_f)
            h_b, c_b = lstm_cell(g_bwd, c_b)
            act_scr[s, :, 0:H] = h_f
            act_scr[rs, :, H:2 * H] = h_b
        # TODO(synk): inter-layer LSTM dropout (p=0.3) is identity in eval mode.

    # ---- attention pooling + fc + sigmoid epilogue (all VMEM-resident) -----
    h_all = act_scr[...]                                             # (T, B, 2H)
    aw = aw_ref[...]                                                 # (1, 2H)
    scores = jnp.sum(h_all * aw[None], axis=-1, keepdims=True) + ab_ref[...]
    m = jnp.max(scores, axis=0, keepdims=True)                       # softmax over T
    e = jnp.exp(scores - m)
    attn = e / jnp.sum(e, axis=0, keepdims=True)
    context = jnp.sum(h_all * attn, axis=0)                          # (B, 2H)
    # TODO(synk): nn.Dropout(0.3) on context is identity in eval mode.
    logits = jnp.dot(context, fw_ref[...],
                     preferred_element_type=jnp.float32) + fb_ref[...]
    out_ref[...] = jax.nn.sigmoid(logits).astype(out_ref.dtype)


# ----------------------------------------------------------------------------
# Wrapper: one pallas_call for the whole forward pass.
# ----------------------------------------------------------------------------
def advanced_lstm_forward(x, packed, *, hidden, num_layers):
    """x: (B, T, input_size) batch-first, like the PyTorch module. Returns (B, 1)."""
    B, T, _ = x.shape
    xt = jnp.transpose(x, (1, 0, 2))                                 # time-major (T, B, D)

    inputs = [xt]
    for l in range(num_layers):
        inputs.extend(packed["layers"][l])
    inputs.extend([packed["att_w"], packed["att_b"], packed["fc_w"], packed["fc_b"]])

    vmem = pl.BlockSpec(memory_space=pltpu.MemorySpace.VMEM)
    kernel = functools.partial(_fused_bilstm_attn_kernel, seq_len=T, batch=B,
                               hidden=hidden, num_layers=num_layers)
    return pl.pallas_call(
        kernel,
        out_shape=jax.ShapeDtypeStruct((B, 1), jnp.float32),
        in_specs=[vmem] * len(inputs),
        out_specs=vmem,
        scratch_shapes=[
            pltpu.VMEM((T, B, 2 * hidden), jnp.float32),   # inter-layer activations
            pltpu.VMEM((T, B, 8 * hidden), jnp.float32),   # hoisted gate projections
        ],
    )(*inputs)


# ----------------------------------------------------------------------------
# Weight packing (done once, outside the kernel):
#   Wih -> (D_in, 8H) = [Wih_f | Wih_b]
#   Whh -> (2H, 8H)   = block-diag(Whh_f, Whh_b)   (one 256-lane gate matmul)
#   b   -> (1, 8H)    = [b_f | b_b]   with b = b_ih + b_hh
# ----------------------------------------------------------------------------
def pack_params(params, hidden):
    H = hidden
    packed = {"layers": []}
    for (wih_f, whh_f, b_f), (wih_b, whh_b, b_b) in params["lstm"]:
        wih_p = jnp.concatenate([wih_f, wih_b], axis=1)
        z = jnp.zeros((H, 4 * H), jnp.float32)
        whh_p = jnp.concatenate(
            [jnp.concatenate([whh_f, z], axis=1),
             jnp.concatenate([z, whh_b], axis=1)], axis=0)
        b_p = jnp.concatenate([b_f, b_b], axis=1)
        packed["layers"].append((wih_p, whh_p, b_p))
    packed["att_w"] = params["att_w"]
    packed["att_b"] = params["att_b"]
    packed["fc_w"] = params["fc_w"]
    packed["fc_b"] = params["fc_b"]
    return packed


# ----------------------------------------------------------------------------
# Pure-JAX reference (uses the raw, unpacked weights) for correctness checking.
# ----------------------------------------------------------------------------
def _lstm_dir_ref(x, wih, whh, b, reverse):
    T, B, _ = x.shape
    H = whh.shape[0]
    xs = x[::-1] if reverse else x

    def step(carry, x_t):
        h, c = carry
        gates = (x_t @ wih + h @ whh).astype(jnp.float32) + b
        i = jax.nn.sigmoid(gates[:, 0 * H:1 * H])
        f = jax.nn.sigmoid(gates[:, 1 * H:2 * H])
        g = jnp.tanh(gates[:, 2 * H:3 * H])
        o = jax.nn.sigmoid(gates[:, 3 * H:4 * H])
        c = f * c + i * g
        h = o * jnp.tanh(c)
        return (h, c), h

    init = (jnp.zeros((B, H), jnp.float32), jnp.zeros((B, H), jnp.float32))
    _, hs = jax.lax.scan(step, init, xs)
    return hs[::-1] if reverse else hs


def reference_forward(x, params, hidden, num_layers):
    with jax.default_matmul_precision("highest"):
        h = jnp.transpose(x, (1, 0, 2))
        for layer in range(num_layers):
            (wih_f, whh_f, b_f), (wih_b, whh_b, b_b) = params["lstm"][layer]
            fwd = _lstm_dir_ref(h, wih_f, whh_f, b_f, reverse=False)
            bwd = _lstm_dir_ref(h, wih_b, whh_b, b_b, reverse=True)
            h = jnp.concatenate([fwd, bwd], axis=-1)
        aw, ab = params["att_w"], params["att_b"]
        fw, fb = params["fc_w"], params["fc_b"]
        scores = jnp.sum(h * aw[None], axis=-1, keepdims=True) + ab
        m = jnp.max(scores, axis=0, keepdims=True)
        e = jnp.exp(scores - m)
        attn = e / jnp.sum(e, axis=0, keepdims=True)
        context = jnp.sum(h * attn, axis=0)
        return jax.nn.sigmoid(context @ fw + fb)


# ----------------------------------------------------------------------------
# Deterministic parameter init (mirrors nn.LSTM / nn.Linear shapes).
# ----------------------------------------------------------------------------
def init_params(key, input_size, hidden, num_layers):
    k = 1.0 / np.sqrt(hidden)
    params = {"lstm": []}
    for layer in range(num_layers):
        d_in = input_size if layer == 0 else 2 * hidden
        dirs = []
        for _ in range(2):  # forward, backward
            key, k1, k2, k3, k4 = jax.random.split(key, 5)
            wih = jax.random.uniform(k1, (d_in, 4 * hidden), jnp.float32, -k, k)
            whh = jax.random.uniform(k2, (hidden, 4 * hidden), jnp.float32, -k, k)
            b_ih = jax.random.uniform(k3, (4 * hidden,), jnp.float32, -k, k)
            b_hh = jax.random.uniform(k4, (4 * hidden,), jnp.float32, -k, k)
            dirs.append((wih, whh, (b_ih + b_hh).reshape(1, 4 * hidden)))
        params["lstm"].append(tuple(dirs))

    ka = 1.0 / np.sqrt(2 * hidden)
    key, k1, k2, k3, k4 = jax.random.split(key, 5)
    params["att_w"] = jax.random.uniform(k1, (1, 2 * hidden), jnp.float32, -ka, ka)
    params["att_b"] = jax.random.uniform(k2, (1, 1), jnp.float32, -ka, ka)
    params["fc_w"] = jax.random.uniform(k3, (2 * hidden, 1), jnp.float32, -ka, ka)
    params["fc_b"] = jax.random.uniform(k4, (1, 1), jnp.float32, -ka, ka)
    return params


if __name__ == "__main__":
    BATCH, SEQ, INPUT_SIZE, HIDDEN, NUM_LAYERS = 2, 8, 4, 32, 2

    key = jax.random.PRNGKey(0)
    key, xk = jax.random.split(key)
    x = jax.random.normal(xk, (BATCH, SEQ, INPUT_SIZE), jnp.float32)
    params = init_params(key, INPUT_SIZE, HIDDEN, NUM_LAYERS)
    packed = pack_params(params, HIDDEN)          # one-time weight packing

    fwd = jax.jit(functools.partial(advanced_lstm_forward,
                                    hidden=HIDDEN, num_layers=NUM_LAYERS))
    out = jax.block_until_ready(fwd(x, packed))

    ref = reference_forward(x, params, HIDDEN, NUM_LAYERS)
    assert out.shape == (BATCH, 1), out.shape
    np.testing.assert_allclose(np.asarray(out), np.asarray(ref), rtol=2e-3, atol=2e-3)

    print("KERNEL_OK")
</pallas_src>

<mosaic_0001>
module attributes {stable_mosaic.version = 11 : i64} {
  func.func @_fused_bilstm_attn_kernel(%arg0: memref<8x2x4xf32, #tpu.memory_space<vmem>>, %arg1: memref<4x256xf32, #tpu.memory_space<vmem>>, %arg2: memref<64x256xf32, #tpu.memory_space<vmem>>, %arg3: memref<1x256xf32, #tpu.memory_space<vmem>>, %arg4: memref<64x256xf32, #tpu.memory_space<vmem>>, %arg5: memref<64x256xf32, #tpu.memory_space<vmem>>, %arg6: memref<1x256xf32, #tpu.memory_space<vmem>>, %arg7: memref<1x64xf32, #tpu.memory_space<vmem>>, %arg8: memref<1x1xf32, #tpu.memory_space<vmem>>, %arg9: memref<64x1xf32, #tpu.memory_space<vmem>>, %arg10: memref<1x1xf32, #tpu.memory_space<vmem>>, %arg11: memref<2x1xf32, #tpu.memory_space<vmem>>, %arg12: memref<8x2x64xf32, #tpu.memory_space<vmem>>, %arg13: memref<8x2x256xf32, #tpu.memory_space<vmem>>) attributes {dimension_semantics = [], scalar_prefetch = 0 : i64, scratch_operands = 2 : i64, tpu.core_type = #tpu.core_type<tc>} {
    %c0 = arith.constant 0 : index
    %c0_0 = arith.constant 0 : index
    %0 = vector.load %arg1[%c0, %c0_0] : memref<4x256xf32, #tpu.memory_space<vmem>>, vector<4x256xf32>
    %c0_1 = arith.constant 0 : index
    %c0_2 = arith.constant 0 : index
    %1 = vector.load %arg2[%c0_1, %c0_2] : memref<64x256xf32, #tpu.memory_space<vmem>>, vector<64x256xf32>
    %c0_3 = arith.constant 0 : index
    %c0_4 = arith.constant 0 : index
    %2 = vector.load %arg3[%c0_3, %c0_4] : memref<1x256xf32, #tpu.memory_space<vmem>>, vector<1x256xf32>
    %c0_5 = arith.constant 0 : index
    %c0_6 = arith.constant 0 : index
    %c0_7 = arith.constant 0 : index
    %3 = vector.load %arg0[%c0_5, %c0_6, %c0_7] : memref<8x2x4xf32, #tpu.memory_space<vmem>>, vector<1x2x4xf32>
    %4 = vector.shape_cast %3 : vector<1x2x4xf32> to vector<2x4xf32>
    %cst = arith.constant dense<0.000000e+00> : vector<2x256xf32>
    %5 = tpu.matmul %4, %0, %cst {dimension_numbers = #tpu.dot_dimension_numbers<[1], [0], [0], [1], [0, 0, 1, 1], [], []>} : vector<2x4xf32>, vector<4x256xf32>, vector<2x256xf32> -> vector<2x256xf32>
    %6 = vector.broadcast %2 : vector<1x256xf32> to vector<2x256xf32>
    %7 = arith.addf %5, %6 : vector<2x256xf32>
    %c0_8 = arith.constant 0 : index
    %c0_9 = arith.constant 0 : index
    %c0_10 = arith.constant 0 : index
    %8 = vector.load %arg13[%c0_8, %c0_9, %c0_10] : memref<8x2x256xf32, #tpu.memory_space<vmem>>, vector<1x2x256xf32>
    %9 = vector.shape_cast %8 : vector<1x2x256xf32> to vector<2x256xf32>
    %10 = vector.shape_cast %7 : vector<2x256xf32> to vector<1x2x256xf32>
    tpu.vector_store %arg13[%c0_8, %c0_9, %c0_10], %10 {strides = array<i32>} : memref<8x2x256xf32, #tpu.memory_space<vmem>>, vector<1x2x256xf32>,
    %c1 = arith.constant 1 : index
    %c0_11 = arith.constant 0 : index
    %c0_12 = arith.constant 0 : index
    %11 = vector.load %arg0[%c1, %c0_11, %c0_12] : memref<8x2x4xf32, #tpu.memory_space<vmem>>, vector<1x2x4xf32>
    %12 = vector.shape_cast %11 : vector<1x2x4xf32> to vector<2x4xf32>
    %cst_13 = arith.constant dense<0.000000e+00> : vector<2x256xf32>
    %13 = tpu.matmul %12, %0, %cst_13 {dimension_numbers = #tpu.dot_dimension_numbers<[1], [0], [0], [1], [0, 0, 1, 1], [], []>} : vector<2x4xf32>, vector<4x256xf32>, vector<2x256xf32> -> vector<2x256xf32>
    %14 = vector.broadcast %2 : vector<1x256xf32> to vector<2x256xf32>
    %15 = arith.addf %13, %14 : vector<2x256xf32>
    %c1_14 = arith.constant 1 : index
    %c0_15 = arith.constant 0 : index
    %c0_16 = arith.constant 0 : index
    %16 = vector.load %arg13[%c1_14, %c0_15, %c0_16] : memref<8x2x256xf32, #tpu.memory_space<vmem>>, vector<1x2x256xf32>
    %17 = vector.shape_cast %16 : vector<1x2x256xf32> to vector<2x256xf32>
    %18 = vector.shape_cast %15 : vector<2x256xf32> to vector<1x2x256xf32>
    tpu.vector_store %arg13[%c1_14, %c0_15, %c0_16], %18 {strides = array<i32>} : memref<8x2x256xf32, #tpu.memory_space<vmem>>, vector<1x2x256xf32>,
    %c2 = arith.constant 2 : index
    %c0_17 = arith.constant 0 : index
    %c0_18 = arith.constant 0 : index
    %19 = vector.load %arg0[%c2, %c0_17, %c0_18] : memref<8x2x4xf32, #tpu.memory_space<vmem>>, vector<1x2x4xf32>
    %20 = vector.shape_cast %19 : vector<1x2x4xf32> to vector<2x4xf32>
    %cst_19 = arith.constant dense<0.000000e+00> : vector<2x256xf32>
    %21 = tpu.matmul %20, %0, %cst_19 {dimension_numbers = #tpu.dot_dimension_numbers<[1], [0], [0], [1], [0, 0, 1, 1], [], []>} : vector<2x4xf32>, vector<4x256xf32>, vector<2x256xf32> -> vector<2x256xf32>
    %22 = vector.broadcast %2 : vector<1x256xf32> to vector<2x256xf32>
    %23 = arith.addf %21, %22 : vector<2x256xf32>
    %c2_20 = arith.constant 2 : index
    %c0_21 = arith.constant 0 : index
    %c0_22 = arith.constant 0 : index
    %24 = vector.load %arg13[%c2_20, %c0_21, %c0_22] : memref<8x2x256xf32, #tpu.memory_space<vmem>>, vector<1x2x256xf32>
    %25 = vector.shape_cast %24 : vector<1x2x256xf32> to vector<2x256xf32>
    %26 = vector.shape_cast %23 : vector<2x256xf32> to vector<1x2x256xf32>
    tpu.vector_store %arg13[%c2_20, %c0_21, %c0_22], %26 {strides = array<i32>} : memref<8x2x256xf32, #tpu.memory_space<vmem>>, vector<1x2x256xf32>,
    %c3 = arith.constant 3 : index
    %c0_23 = arith.constant 0 : index
    %c0_24 = arith.constant 0 : index
    %27 = vector.load %arg0[%c3, %c0_23, %c0_24] : memref<8x2x4xf32, #tpu.memory_space<vmem>>, vector<1x2x4xf32>
    %28 = vector.shape_cast %27 : vector<1x2x4xf32> to vector<2x4xf32>
    %cst_25 = arith.constant dense<0.000000e+00> : vector<2x256xf32>
    %29 = tpu.matmul %28, %0, %cst_25 {dimension_numbers = #tpu.dot_dimension_numbers<[1], [0], [0], [1], [0, 0, 1, 1], [], []>} : vector<2x4xf32>, vector<4x256xf32>, vector<2x256xf32> -> vector<2x256xf32>
    %30 = vector.broadcast %2 : vector<1x256xf32> to vector<2x256xf32>
    %31 = arith.addf %29, %30 : vector<2x256xf32>
    %c3_26 = arith.constant 3 : index
    %c0_27 = arith.constant 0 : index
    %c0_28 = arith.constant 0 : index
    %32 = vector.load %arg13[%c3_26, %c0_27, %c0_28] : memref<8x2x256xf32, #tpu.memory_space<vmem>>, vector<1x2x256xf32>
    %33 = vector.shape_cast %32 : vector<1x2x256xf32> to vector<2x256xf32>
    %34 = vector.shape_cast %31 : vector<2x256xf32> to vector<1x2x256xf32>
    tpu.vector_store %arg13[%c3_26, %c0_27, %c0_28], %34 {strides = array<i32>} : memref<8x2x256xf32, #tpu.memory_space<vmem>>, vector<1x2x256xf32>,
    %c4 = arith.constant 4 : index
    %c0_29 = arith.constant 0 : index
    %c0_30 = arith.constant 0 : index
    %35 = vector.load %arg0[%c4, %c0_29, %c0_30] : memref<8x2x4xf32, #tpu.memory_space<vmem>>, vector<1x2x4xf32>
    %36 = vector.shape_cast %35 : vector<1x2x4xf32> to vector<2x4xf32>
    %cst_31 = arith.constant dense<0.000000e+00> : vector<2x256xf32>
    %37 = tpu.matmul %36, %0, %cst_31 {dimension_numbers = #tpu.dot_dimension_numbers<[1], [0], [0], [1], [0, 0, 1, 1], [], []>} : vector<2x4xf32>, vector<4x256xf32>, vector<2x256xf32> -> vector<2x256xf32>
    %38 = vector.broadcast %2 : vector<1x256xf32> to vector<2x256xf32>
    %39 = arith.addf %37, %38 : vector<2x256xf32>
    %c4_32 = arith.constant 4 : index
    %c0_33 = arith.constant 0 : index
    %c0_34 = arith.constant 0 : index
    %40 = vector.load %arg13[%c4_32, %c0_33, %c0_34] : memref<8x2x256xf32, #tpu.memory_space<vmem>>, vector<1x2x256xf32>
    %41 = vector.shape_cast %40 : vector<1x2x256xf32> to vector<2x256xf32>
    %42 = vector.shape_cast %39 : vector<2x256xf32> to vector<1x2x256xf32>
    tpu.vector_store %arg13[%c4_32, %c0_33, %c0_34], %42 {strides = array<i32>} : memref<8x2x256xf32, #tpu.memory_space<vmem>>, vector<1x2x256xf32>,
    %c5 = arith.constant 5 : index
    %c0_35 = arith.constant 0 : index
    %c0_36 = arith.constant 0 : index
    %43 = vector.load %arg0[%c5, %c0_35, %c0_36] : memref<8x2x4xf32, #tpu.memory_space<vmem>>, vector<1x2x4xf32>
    %44 = vector.shape_cast %43 : vector<1x2x4xf32> to vector<2x4xf32>
    %cst_37 = arith.constant dense<0.000000e+00> : vector<2x256xf32>
    %45 = tpu.matmul %44, %0, %cst_37 {dimension_numbers = #tpu.dot_dimension_numbers<[1], [0], [0], [1], [0, 0, 1, 1], [], []>} : vector<2x4xf32>, vector<4x256xf32>, vector<2x256xf32> -> vector<2x256xf32>
    %46 = vector.broadcast %2 : vector<1x256xf32> to vector<2x256xf32>
    %47 = arith.addf %45, %46 : vector<2x256xf32>
    %c5_38 = arith.constant 5 : index
    %c0_39 = arith.constant 0 : index
    %c0_40 = arith.constant 0 : index
    %48 = vector.load %arg13[%c5_38, %c0_39, %c0_40] : memref<8x2x256xf32, #tpu.memory_space<vmem>>, vector<1x2x256xf32>
    %49 = vector.shape_cast %48 : vector<1x2x256xf32> to vector<2x256xf32>
    %50 = vector.shape_cast %47 : vector<2x256xf32> to vector<1x2x256xf32>
    tpu.vector_store %arg13[%c5_38, %c0_39, %c0_40], %50 {strides = array<i32>} : memref<8x2x256xf32, #tpu.memory_space<vmem>>, vector<1x2x256xf32>,
    %c6 = arith.constant 6 : index
    %c0_41 = arith.constant 0 : index
    %c0_42 = arith.constant 0 : index
    %51 = vector.load %arg0[%c6, %c0_41, %c0_42] : memref<8x2x4xf32, #tpu.memory_space<vmem>>, vector<1x2x4xf32>
    %52 = vector.shape_cast %51 : vector<1x2x4xf32> to vector<2x4xf32>
    %cst_43 = arith.constant dense<0.000000e+00> : vector<2x256xf32>
    %53 = tpu.matmul %52, %0, %cst_43 {dimension_numbers = #tpu.dot_dimension_numbers<[1], [0], [0], [1], [0, 0, 1, 1], [], []>} : vector<2x4xf32>, vector<4x256xf32>, vector<2x256xf32> -> vector<2x256xf32>
    %54 = vector.broadcast %2 : vector<1x256xf32> to vector<2x256xf32>
    %55 = arith.addf %53, %54 : vector<2x256xf32>
    %c6_44 = arith.constant 6 : index
    %c0_45 = arith.constant 0 : index
    %c0_46 = arith.constant 0 : index
    %56 = vector.load %arg13[%c6_44, %c0_45, %c0_46] : memref<8x2x256xf32, #tpu.memory_space<vmem>>, vector<1x2x256xf32>
    %57 = vector.shape_cast %56 : vector<1x2x256xf32> to vector<2x256xf32>
    %58 = vector.shape_cast %55 : vector<2x256xf32> to vector<1x2x256xf32>
    tpu.vector_store %arg13[%c6_44, %c0_45, %c0_46], %58 {strides = array<i32>} : memref<8x2x256xf32, #tpu.memory_space<vmem>>, vector<1x2x256xf32>,
    %c7 = arith.constant 7 : index
    %c0_47 = arith.constant 0 : index
    %c0_48 = arith.constant 0 : index
    %59 = vector.load %arg0[%c7, %c0_47, %c0_48] : memref<8x2x4xf32, #tpu.memory_space<vmem>>, vector<1x2x4xf32>
    %60 = vector.shape_cast %59 : vector<1x2x4xf32> to vector<2x4xf32>
    %cst_49 = arith.constant dense<0.000000e+00> : vector<2x256xf32>
    %61 = tpu.matmul %60, %0, %cst_49 {dimension_numbers = #tpu.dot_dimension_numbers<[1], [0], [0], [1], [0, 0, 1, 1], [], []>} : vector<2x4xf32>, vector<4x256xf32>, vector<2x256xf32> -> vector<2x256xf32>
    %62 = vector.broadcast %2 : vector<1x256xf32> to vector<2x256xf32>
    %63 = arith.addf %61, %62 : vector<2x256xf32>
    %c7_50 = arith.constant 7 : index
    %c0_51 = arith.constant 0 : index
    %c0_52 = arith.constant 0 : index
    %64 = vector.load %arg13[%c7_50, %c0_51, %c0_52] : memref<8x2x256xf32, #tpu.memory_space<vmem>>, vector<1x2x256xf32>
    %65 = vector.shape_cast %64 : vector<1x2x256xf32> to vector<2x256xf32>
    %66 = vector.shape_cast %63 : vector<2x256xf32> to vector<1x2x256xf32>
    tpu.vector_store %arg13[%c7_50, %c0_51, %c0_52], %66 {strides = array<i32>} : memref<8x2x256xf32, #tpu.memory_space<vmem>>, vector<1x2x256xf32>,
    %cst_53 = arith.constant 0.000000e+00 : f32
    %67 = vector.broadcast %cst_53 : f32 to vector<2x32xf32>
    %cst_54 = arith.constant 0.000000e+00 : f32
    %68 = vector.broadcast %cst_54 : f32 to vector<2x32xf32>
    %cst_55 = arith.constant 0.000000e+00 : f32
    %69 = vector.broadcast %cst_55 : f32 to vector<2x32xf32>
    %cst_56 = arith.constant 0.000000e+00 : f32
    %70 = vector.broadcast %cst_56 : f32 to vector<2x32xf32>
    %71 = tpu.concatenate %67, %69 in 1 : vector<2x32xf32>, vector<2x32xf32> -> vector<2x64xf32>
    %cst_57 = arith.constant dense<0.000000e+00> : vector<2x256xf32>
    %72 = tpu.matmul %71, %1, %cst_57 {dimension_numbers = #tpu.dot_dimension_numbers<[1], [0], [0], [1], [0, 0, 1, 1], [], []>} : vector<2x64xf32>, vector<64x256xf32>, vector<2x256xf32> -> vector<2x256xf32>
    %73 = vector.extract_strided_slice %72 {offsets = [0, 0], sizes = [2, 128], strides = [1, 1]} : vector<2x256xf32> to vector<2x128xf32>
    %c0_58 = arith.constant 0 : index
    %c0_59 = arith.constant 0 : index
    %c0_60 = arith.constant 0 : index
    %74 = vector.load %arg13[%c0_58, %c0_59, %c0_60] : memref<8x2x256xf32, #tpu.memory_space<vmem>>, vector<1x2x128xf32>
    %75 = vector.shape_cast %74 : vector<1x2x128xf32> to vector<2x128xf32>
    %76 = arith.addf %73, %75 : vector<2x128xf32>
    %77 = vector.extract_strided_slice %72 {offsets = [0, 128], sizes = [2, 128], strides = [1, 1]} : vector<2x256xf32> to vector<2x128xf32>
    %c7_61 = arith.constant 7 : index
    %c0_62 = arith.constant 0 : index
    %c128 = arith.constant 128 : index
    %78 = vector.load %arg13[%c7_61, %c0_62, %c128] : memref<8x2x256xf32, #tpu.memory_space<vmem>>, vector<1x2x128xf32>
    %79 = vector.shape_cast %78 : vector<1x2x128xf32> to vector<2x128xf32>
    %80 = arith.addf %77, %79 : vector<2x128xf32>
    %81 = vector.extract_strided_slice %76 {offsets = [0, 0], sizes = [2, 32], strides = [1, 1]} : vector<2x128xf32> to vector<2x32xf32>
    %82 = arith.negf %81 : vector<2x32xf32>
    %83 = math.exp %82 : vector<2x32xf32>
    %cst_63 = arith.constant 1.000000e+00 : f32
    %84 = vector.broadcast %cst_63 : f32 to vector<2x32xf32>
    %85 = arith.addf %84, %83 : vector<2x32xf32>
    %86 = arith.divf %84, %85 : vector<2x32xf32>
    %87 = vector.extract_strided_slice %76 {offsets = [0, 32], sizes = [2, 32], strides = [1, 1]} : vector<2x128xf32> to vector<2x32xf32>
    %88 = arith.negf %87 : vector<2x32xf32>
    %89 = math.exp %88 : vector<2x32xf32>
    %cst_64 = arith.constant 1.000000e+00 : f32
    %90 = vector.broadcast %cst_64 : f32 to vector<2x32xf32>
    %91 = arith.addf %90, %89 : vector<2x32xf32>
    %92 = arith.divf %90, %91 : vector<2x32xf32>
    %93 = vector.extract_strided_slice %76 {offsets = [0, 64], sizes = [2, 32], strides = [1, 1]} : vector<2x128xf32> to vector<2x32xf32>
    %94 = math.tanh %93 : vector<2x32xf32>
    %95 = vector.extract_strided_slice %76 {offsets = [0, 96], sizes = [2, 32], strides = [1, 1]} : vector<2x128xf32> to vector<2x32xf32>
    %96 = arith.negf %95 : vector<2x32xf32>
    %97 = math.exp %96 : vector<2x32xf32>
    %cst_65 = arith.constant 1.000000e+00 : f32
    %98 = vector.broadcast %cst_65 : f32 to vector<2x32xf32>
    %99 = arith.addf %98, %97 : vector<2x32xf32>
    %100 = arith.divf %98, %99 : vector<2x32xf32>
    %101 = arith.mulf %92, %68 : vector<2x32xf32>
    %102 = arith.mulf %86, %94 : vector<2x32xf32>
    %103 = arith.addf %101, %102 : vector<2x32xf32>
    %104 = math.tanh %103 : vector<2x32xf32>
    %105 = arith.mulf %100, %104 : vector<2x32xf32>
    %106 = vector.extract_strided_slice %80 {offsets = [0, 0], sizes = [2, 32], strides = [1, 1]} : vector<2x128xf32> to vector<2x32xf32>
    %107 = arith.negf %106 : vector<2x32xf32>
    %108 = math.exp %107 : vector<2x32xf32>
    %cst_66 = arith.constant 1.000000e+00 : f32
    %109 = vector.broadcast %cst_66 : f32 to vector<2x32xf32>
    %110 = arith.addf %109, %108 : vector<2x32xf32>
    %111 = arith.divf %109, %110 : vector<2x32xf32>
    %112 = vector.extract_strided_slice %80 {offsets = [0, 32], sizes = [2, 32], strides = [1, 1]} : vector<2x128xf32> to vector<2x32xf32>
    %113 = arith.negf %112 : vector<2x32xf32>
    %114 = math.exp %113 : vector<2x32xf32>
    %cst_67 = arith.constant 1.000000e+00 : f32
    %115 = vector.broadcast %cst_67 : f32 to vector<2x32xf32>
    %116 = arith.addf %115, %114 : vector<2x32xf32>
    %117 = arith.divf %115, %116 : vector<2x32xf32>
    %118 = vector.extract_strided_slice %80 {offsets = [0, 64], sizes = [2, 32], strides = [1, 1]} : vector<2x128xf32> to vector<2x32xf32>
    %119 = math.tanh %118 : vector<2x32xf32>
    %120 = vector.extract_strided_slice %80 {offsets = [0, 96], sizes = [2, 32], strides = [1, 1]} : vector<2x128xf32> to vector<2x32xf32>
    %121 = arith.negf %120 : vector<2x32xf32>
    %122 = math.exp %121 : vector<2x32xf32>
    %cst_68 = arith.constant 1.000000e+00 : f32
    %123 = vector.broadcast %cst_68 : f32 to vector<2x32xf32>
    %124 = arith.addf %123, %122 : vector<2x32xf32>
    %125 = arith.divf %123, %124 : vector<2x32xf32>
    %126 = arith.mulf %117, %70 : vector<2x32xf32>
    %127 = arith.mulf %111, %119 : vector<2x32xf32>
    %128 = arith.addf %126, %127 : vector<2x32xf32>
    %129 = math.tanh %128 : vector<2x32xf32>
    %130 = arith.mulf %125, %129 : vector<2x32xf32>
    %c0_69 = arith.constant 0 : index
    %c0_70 = arith.constant 0 : index
    %c0_71 = arith.constant 0 : index
    %131 = vector.load %arg12[%c0_69, %c0_70, %c0_71] : memref<8x2x64xf32, #tpu.memory_space<vmem>>, vector<1x2x32xf32>
    %132 = vector.shape_cast %131 : vector<1x2x32xf32> to vector<2x32xf32>
    %133 = vector.shape_cast %105 : vector<2x32xf32> to vector<1x2x32xf32>
    tpu.vector_store %arg12[%c0_69, %c0_70, %c0_71], %133 {strides = array<i32>} : memref<8x2x64xf32, #tpu.memory_space<vmem>>, vector<1x2x32xf32>,
    %c7_72 = arith.constant 7 : index
    %c0_73 = arith.constant 0 : index
    %c32 = arith.constant 32 : index
    %134 = vector.load %arg12[%c7_72, %c0_73, %c32] : memref<8x2x64xf32, #tpu.memory_space<vmem>>, vector<1x2x32xf32>
    %135 = vector.shape_cast %134 : vector<1x2x32xf32> to vector<2x32xf32>
    %136 = vector.shape_cast %130 : vector<2x32xf32> to vector<1x2x32xf32>
    tpu.vector_store %arg12[%c7_72, %c0_73, %c32], %136 {strides = array<i32>} : memref<8x2x64xf32, #tpu.memory_space<vmem>>, vector<1x2x32xf32>,
    %137 = tpu.concatenate %105, %130 in 1 : vector<2x32xf32>, vector<2x32xf32> -> vector<2x64xf32>
    %cst_74 = arith.constant dense<0.000000e+00> : vector<2x256xf32>
    %138 = tpu.matmul %137, %1, %cst_74 {dimension_numbers = #tpu.dot_dimension_numbers<[1], [0], [0], [1], [0, 0, 1, 1], [], []>} : vector<2x64xf32>, vector<64x256xf32>, vector<2x256xf32> -> vector<2x256xf32>
    %139 = vector.extract_strided_slice %138 {offsets = [0, 0], sizes = [2, 128], strides = [1, 1]} : vector<2x256xf32> to vector<2x128xf32>
    %c1_75 = arith.constant 1 : index
    %c0_76 = arith.constant 0 : index
    %c0_77 = arith.constant 0 : index
    %140 = vector.load %arg13[%c1_75, %c0_76, %c0_77] : memref<8x2x256xf32, #tpu.memory_space<vmem>>, vector<1x2x128xf32>
    %141 = vector.shape_cast %140 : vector<1x2x128xf32> to vector<2x128xf32>
    %142 = arith.addf %139, %141 : vector<2x128xf32>
    %143 = vector.extract_strided_slice %138 {offsets = [0, 128], sizes = [2, 128], strides = [1, 1]} : vector<2x256xf32> to vector<2x128xf32>
    %c6_78 = arith.constant 6 : index
    %c0_79 = arith.constant 0 : index
    %c128_80 = arith.constant 128 : index
    %144 = vector.load %arg13[%c6_78, %c0_79, %c128_80] : memref<8x2x256xf32, #tpu.memory_space<vmem>>, vector<1x2x128xf32>
    %145 = vector.shape_cast %144 : vector<1x2x128xf32> to vector<2x128xf32>
    %146 = arith.addf %143, %145 : vector<2x128xf32>
    %147 = vector.extract_strided_slice %142 {offsets = [0, 0], sizes = [2, 32], strides = [1, 1]} : vector<2x128xf32> to vector<2x32xf32>
    %148 = arith.negf %147 : vector<2x32xf32>
    %149 = math.exp %148 : vector<2x32xf32>
    %cst_81 = arith.constant 1.000000e+00 : f32
    %150 = vector.broadcast %cst_81 : f32 to vector<2x32xf32>
    %151 = arith.addf %150, %149 : vector<2x32xf32>
    %152 = arith.divf %150, %151 : vector<2x32xf32>
    %153 = vector.extract_strided_slice %142 {offsets = [0, 32], sizes = [2, 32], strides = [1, 1]} : vector<2x128xf32> to vector<2x32xf32>
    %154 = arith.negf %153 : vector<2x32xf32>
    %155 = math.exp %154 : vector<2x32xf32>
    %cst_82 = arith.constant 1.000000e+00 : f32
    %156 = vector.broadcast %cst_82 : f32 to vector<2x32xf32>
    %157 = arith.addf %156, %155 : vector<2x32xf32>
    %158 = arith.divf %156, %157 : vector<2x32xf32>
    %159 = vector.extract_strided_slice %142 {offsets = [0, 64], sizes = [2, 32], strides = [1, 1]} : vector<2x128xf32> to vector<2x32xf32>
    %160 = math.tanh %159 : vector<2x32xf32>
    %161 = vector.extract_strided_slice %142 {offsets = [0, 96], sizes = [2, 32], strides = [1, 1]} : vector<2x128xf32> to vector<2x32xf32>
    %162 = arith.negf %161 : vector<2x32xf32>
    %163 = math.exp %162 : vector<2x32xf32>
    %cst_83 = arith.constant 1.000000e+00 : f32
    %164 = vector.broadcast %cst_83 : f32 to vector<2x32xf32>
    %165 = arith.addf %164, %163 : vector<2x32xf32>
    %166 = arith.divf %164, %165 : vector<2x32xf32>
    %167 = arith.mulf %158, %103 : vector<2x32xf32>
    %168 = arith.mulf %152, %160 : vector<2x32xf32>
    %169 = arith.addf %167, %168 : vector<2x32xf32>
    %170 = math.tanh %169 : vector<2x32xf32>
    %171 = arith.mulf %166, %170 : vector<2x32xf32>
    %172 = vector.extract_strided_slice %146 {offsets = [0, 0], sizes = [2, 32], strides = [1, 1]} : vector<2x128xf32> to vector<2x32xf32>
    %173 = arith.negf %172 : vector<2x32xf32>
    %174 = math.exp %173 : vector<2x32xf32>
    %cst_84 = arith.constant 1.000000e+00 : f32
    %175 = vector.broadcast %cst_84 : f32 to vector<2x32xf32>
    %176 = arith.addf %175, %174 : vector<2x32xf32>
    %177 = arith.divf %175, %176 : vector<2x32xf32>
    %178 = vector.extract_strided_slice %146 {offsets = [0, 32], sizes = [2, 32], strides = [1, 1]} : vector<2x128xf32> to vector<2x32xf32>
    %179 = arith.negf %178 : vector<2x32xf32>
    %180 = math.exp %179 : vector<2x32xf32>
    %cst_85 = arith.constant 1.000000e+00 : f32
    %181 = vector.broadcast %cst_85 : f32 to vector<2x32xf32>
    %182 = arith.addf %181, %180 : vector<2x32xf32>
    %183 = arith.divf %181, %182 : vector<2x32xf32>
    %184 = vector.extract_strided_slice %146 {offsets = [0, 64], sizes = [2, 32], strides = [1, 1]} : vector<2x128xf32> to vector<2x32xf32>
    %185 = math.tanh %184 : vector<2x32xf32>
    %186 = vector.extract_strided_slice %146 {offsets = [0, 96], sizes = [2, 32], strides = [1, 1]} : vector<2x128xf32> to vector<2x32xf32>
    %187 = arith.negf %186 : vector<2x32xf32>
    %188 = math.exp %187 : vector<2x32xf32>
    %cst_86 = arith.constant 1.000000e+00 : f32
    %189 = vector.broadcast %cst_86 : f32 to vector<2x32xf32>
    %190 = arith.addf %189, %188 : vector<2x32xf32>
    %191 = arith.divf %189, %190 : vector<2x32xf32>
    %192 = arith.mulf %183, %128 : vector<2x32xf32>
    %193 = arith.mulf %177, %185 : vector<2x32xf32>
    %194 = arith.addf %192, %193 : vector<2x32xf32>
    %195 = math.tanh %194 : vector<2x32xf32>
    %196 = arith.mulf %191, %195 : vector<2x32xf32>
    %c1_87 = arith.constant 1 : index
    %c0_88 = arith.constant 0 : index
    %c0_89 = arith.constant 0 : index
    %197 = vector.load %arg12[%c1_87, %c0_88, %c0_89] : memref<8x2x64xf32, #tpu.memory_space<vmem>>, vector<1x2x32xf32>
    %198 = vector.shape_cast %197 : vector<1x2x32xf32> to vector<2x32xf32>
    %199 = vector.shape_cast %171 : vector<2x32xf32> to vector<1x2x32xf32>
    tpu.vector_store %arg12[%c1_87, %c0_88, %c0_89], %199 {strides = array<i32>} : memref<8x2x64xf32, #tpu.memory_space<vmem>>, vector<1x2x32xf32>,
    %c6_90 = arith.constant 6 : index
    %c0_91 = arith.constant 0 : index
    %c32_92 = arith.constant 32 : index
    %200 = vector.load %arg12[%c6_90, %c0_91, %c32_92] : memref<8x2x64xf32, #tpu.memory_space<vmem>>, vector<1x2x32xf32>
    %201 = vector.shape_cast %200 : vector<1x2x32xf32> to vector<2x32xf32>
    %202 = vector.shape_cast %196 : vector<2x32xf32> to vector<1x2x32xf32>
    tpu.vector_store %arg12[%c6_90, %c0_91, %c32_92], %202 {strides = array<i32>} : memref<8x2x64xf32, #tpu.memory_space<vmem>>, vector<1x2x32xf32>,
    %203 = tpu.concatenate %171, %196 in 1 : vector<2x32xf32>, vector<2x32xf32> -> vector<2x64xf32>
    %cst_93 = arith.constant dense<0.000000e+00> : vector<2x256xf32>
    %204 = tpu.matmul %203, %1, %cst_93 {dimension_numbers = #tpu.dot_dimension_numbers<[1], [0], [0], [1], [0, 0, 1, 1], [], []>} : vector<2x64xf32>, vector<64x256xf32>, vector<2x256xf32> -> vector<2x256xf32>
    %205 = vector.extract_strided_slice %204 {offsets = [0, 0], sizes = [2, 128], strides = [1, 1]} : vector<2x256xf32> to vector<2x128xf32>
    %c2_94 = arith.constant 2 : index
    %c0_95 = arith.constant 0 : index
    %c0_96 = arith.constant 0 : index
    %206 = vector.load %arg13[%c2_94, %c0_95, %c0_96] : memref<8x2x256xf32, #tpu.memory_space<vmem>>, vector<1x2x128xf32>
    %207 = vector.shape_cast %206 : vector<1x2x128xf32> to vector<2x128xf32>
    %208 = arith.addf %205, %207 : vector<2x128xf32>
    %209 = vector.extract_strided_slice %204 {offsets = [0, 128], sizes = [2, 128], strides = [1, 1]} : vector<2x256xf32> to vector<2x128xf32>
    %c5_97 = arith.constant 5 : index
    %c0_98 = arith.constant 0 : index
    %c128_99 = arith.constant 128 : index
    %210 = vector.load %arg13[%c5_97, %c0_98, %c128_99] : memref<8x2x256xf32, #tpu.memory_space<vmem>>, vector<1x2x128xf32>
    %211 = vector.shape_cast %210 : vector<1x2x128xf32> to vector<2x128xf32>
    %212 = arith.addf %209, %211 : vector<2x128xf32>
    %213 = vector.extract_strided_slice %208 {offsets = [0, 0], sizes = [2, 32], strides = [1, 1]} : vector<2x128xf32> to vector<2x32xf32>
    %214 = arith.negf %213 : vector<2x32xf32>
    %215 = math.exp %214 : vector<2x32xf32>
    %cst_100 = arith.constant 1.000000e+00 : f32
    %216 = vector.broadcast %cst_100 : f32 to vector<2x32xf32>
    %217 = arith.addf %216, %215 : vector<2x32xf32>
    %218 = arith.divf %216, %217 : vector<2x32xf32>
    %219 = vector.extract_strided_slice %208 {offsets = [0, 32], sizes = [2, 32], strides = [1, 1]} : vector<2x128xf32> to vector<2x32xf32>
    %220 = arith.negf %219 : vector<2x32xf32>
    %221 = math.exp %220 : vector<2x32xf32>
    %cst_101 = arith.constant 1.000000e+00 : f32
    %222 = vector.broadcast %cst_101 : f32 to vector<2x32xf32>
    %223 = arith.addf %222, %221 : vector<2x32xf32>
    %224 = arith.divf %222, %223 : vector<2x32xf32>
    %225 = vector.extract_strided_slice %208 {offsets = [0, 64], sizes = [2, 32], strides = [1, 1]} : vector<2x128xf32> to vector<2x32xf32>
    %226 = math.tanh %225 : vector<2x32xf32>
    %227 = vector.extract_strided_slice %208 {offsets = [0, 96], sizes = [2, 32], strides = [1, 1]} : vector<2x128xf32> to vector<2x32xf32>
    %228 = arith.negf %227 : vector<2x32xf32>
    %229 = math.exp %228 : vector<2x32xf32>
    %cst_102 = arith.constant 1.000000e+00 : f32
    %230 = vector.broadcast %cst_102 : f32 to vector<2x32xf32>
    %231 = arith.addf %230, %229 : vector<2x32xf32>
    %232 = arith.divf %230, %231 : vector<2x32xf32>
    %233 = arith.mulf %224, %169 : vector<2x32xf32>
    %234 = arith.mulf %218, %226 : vector<2x32xf32>
    %235 = arith.addf %233, %234 : vector<2x32xf32>
    %236 = math.tanh %235 : vector<2x32xf32>
    %237 = arith.mulf %232, %236 : vector<2x32xf32>
    %238 = vector.extract_strided_slice %212 {offsets = [0, 0], sizes = [2, 32], strides = [1, 1]} : vector<2x128xf32> to vector<2x32xf32>
    %239 = arith.negf %238 : vector<2x32xf32>
    %240 = math.exp %239 : vector<2x32xf32>
    %cst_103 = arith.constant 1.000000e+00 : f32
    %241 = vector.broadcast %cst_103 : f32 to vector<2x32xf32>
    %242 = arith.addf %241, %240 : vector<2x32xf32>
    %243 = arith.divf %241, %242 : vector<2x32xf32>
    %244 = vector.extract_strided_slice %212 {offsets = [0, 32], sizes = [2, 32], strides = [1, 1]} : vector<2x128xf32> to vector<2x32xf32>
    %245 = arith.negf %244 : vector<2x32xf32>
    %246 = math.exp %245 : vector<2x32xf32>
    %cst_104 = arith.constant 1.000000e+00 : f32
    %247 = vector.broadcast %cst_104 : f32 to vector<2x32xf32>
    %248 = arith.addf %247, %246 : vector<2x32xf32>
    %249 = arith.divf %247, %248 : vector<2x32xf32>
    %250 = vector.extract_strided_slice %212 {offsets = [0, 64], sizes = [2, 32], strides = [1, 1]} : vector<2x128xf32> to vector<2x32xf32>
    %251 = math.tanh %250 : vector<2x32xf32>
    %252 = vector.extract_strided_slice %212 {offsets = [0, 96], sizes = [2, 32], strides = [1, 1]} : vector<2x128xf32> to vector<2x32xf32>
    %253 = arith.negf %252 : vector<2x32xf32>
    %254 = math.exp %253 : vector<2x32xf32>
    %cst_105 = arith.constant 1.000000e+00 : f32
    %255 = vector.broadcast %cst_105 : f32 to vector<2x32xf32>
    %256 = arith.addf %255, %254 : vector<2x32xf32>
    %257 = arith.divf %255, %256 : vector<2x32xf32>
    %258 = arith.mulf %249, %194 : vector<2x32xf32>
    %259 = arith.mulf %243, %251 : vector<2x32xf32>
    %260 = arith.addf %258, %259 : vector<2x32xf32>
    %261 = math.tanh %260 : vector<2x32xf32>
    %262 = arith.mulf %257, %261 : vector<2x32xf32>
    %c2_106 = arith.constant 2 : index
    %c0_107 = arith.constant 0 : index
    %c0_108 = arith.constant 0 : index
    %263 = vector.load %arg12[%c2_106, %c0_107, %c0_108] : memref<8x2x64xf32, #tpu.memory_space<vmem>>, vector<1x2x32xf32>
    %264 = vector.shape_cast %263 : vector<1x2x32xf32> to vector<2x32xf32>
    %265 = vector.shape_cast %237 : vector<2x32xf32> to vector<1x2x32xf32>
    tpu.vector_store %arg12[%c2_106, %c0_107, %c0_108], %265 {strides = array<i32>} : memref<8x2x64xf32, #tpu.memory_space<vmem>>, vector<1x2x32xf32>,
    %c5_109 = arith.constant 5 : index
    %c0_110 = arith.constant 0 : index
    %c32_111 = arith.constant 32 : index
    %266 = vector.load %arg12[%c5_109, %c0_110, %c32_111] : memref<8x2x64xf32, #tpu.memory_space<vmem>>, vector<1x2x32xf32>
    %267 = vector.shape_cast %266 : vector<1x2x32xf32> to vector<2x32xf32>
    %268 = vector.shape_cast %262 : vector<2x32xf32> to vector<1x2x32xf32>
    tpu.vector_store %arg12[%c5_109, %c0_110, %c32_111], %268 {strides = array<i32>} : memref<8x2x64xf32, #tpu.memory_space<vmem>>, vector<1x2x32xf32>,
    %269 = tpu.concatenate %237, %262 in 1 : vector<2x32xf32>, vector<2x32xf32> -> vector<2x64xf32>
    %cst_112 = arith.constant dense<0.000000e+00> : vector<2x256xf32>
    %270 = tpu.matmul %269, %1, %cst_112 {dimension_numbers = #tpu.dot_dimension_numbers<[1], [0], [0], [1], [0, 0, 1, 1], [], []>} : vector<2x64xf32>, vector<64x256xf32>, vector<2x256xf32> -> vector<2x256xf32>
    %271 = vector.extract_strided_slice %270 {offsets = [0, 0], sizes = [2, 128], strides = [1, 1]} : vector<2x256xf32> to vector<2x128xf32>
    %c3_113 = arith.constant 3 : index
    %c0_114 = arith.constant 0 : index
    %c0_115 = arith.constant 0 : index
    %272 = vector.load %arg13[%c3_113, %c0_114, %c0_115] : memref<8x2x256xf32, #tpu.memory_space<vmem>>, vector<1x2x128xf32>
    %273 = vector.shape_cast %272 : vector<1x2x128xf32> to vector<2x128xf32>
    %274 = arith.addf %271, %273 : vector<2x128xf32>
    %275 = vector.extract_strided_slice %270 {offsets = [0, 128], sizes = [2, 128], strides = [1, 1]} : vector<2x256xf32> to vector<2x128xf32>
    %c4_116 = arith.constant 4 : index
    %c0_117 = arith.constant 0 : index
    %c128_118 = arith.constant 128 : index
    %276 = vector.load %arg13[%c4_116, %c0_117, %c128_118] : memref<8x2x256xf32, #tpu.memory_space<vmem>>, vector<1x2x128xf32>
    %277 = vector.shape_cast %276 : vector<1x2x128xf32> to vector<2x128xf32>
    %278 = arith.addf %275, %277 : vector<2x128xf32>
    %279 = vector.extract_strided_slice %274 {offsets = [0, 0], sizes = [2, 32], strides = [1, 1]} : vector<2x128xf32> to vector<2x32xf32>
    %280 = arith.negf %279 : vector<2x32xf32>
    %281 = math.exp %280 : vector<2x32xf32>
    %cst_119 = arith.constant 1.000000e+00 : f32
    %282 = vector.broadcast %cst_119 : f32 to vector<2x32xf32>
    %283 = arith.addf %282, %281 : vector<2x32xf32>
    %284 = arith.divf %282, %283 : vector<2x32xf32>
    %285 = vector.extract_strided_slice %274 {offsets = [0, 32], sizes = [2, 32], strides = [1, 1]} : vector<2x128xf32> to vector<2x32xf32>
    %286 = arith.negf %285 : vector<2x32xf32>
    %287 = math.exp %286 : vector<2x32xf32>
    %cst_120 = arith.constant 1.000000e+00 : f32
    %288 = vector.broadcast %cst_120 : f32 to vector<2x32xf32>
    %289 = arith.addf %288, %287 : vector<2x32xf32>
    %290 = arith.divf %288, %289 : vector<2x32xf32>
    %291 = vector.extract_strided_slice %274 {offsets = [0, 64], sizes = [2, 32], strides = [1, 1]} : vector<2x128xf32> to vector<2x32xf32>
    %292 = math.tanh %291 : vector<2x32xf32>
    %293 = vector.extract_strided_slice %274 {offsets = [0, 96], sizes = [2, 32], strides = [1, 1]} : vector<2x128xf32> to vector<2x32xf32>
    %294 = arith.negf %293 : vector<2x32xf32>
    %295 = math.exp %294 : vector<2x32xf32>
    %cst_121 = arith.constant 1.000000e+00 : f32
    %296 = vector.broadcast %cst_121 : f32 to vector<2x32xf32>
    %297 = arith.addf %296, %295 : vector<2x32xf32>
    %298 = arith.divf %296, %297 : vector<2x32xf32>
    %299 = arith.mulf %290, %235 : vector<2x32xf32>
    %300 = arith.mulf %284, %292 : vector<2x32xf32>
    %301 = arith.addf %299, %300 : vector<2x32xf32>
    %302 = math.tanh %301 : vector<2x32xf32>
    %303 = arith.mulf %298, %302 : vector<2x32xf32>
    %304 = vector.extract_strided_slice %278 {offsets = [0, 0], sizes = [2, 32], strides = [1, 1]} : vector<2x128xf32> to vector<2x32xf32>
    %305 = arith.negf %304 : vector<2x32xf32>
    %306 = math.exp %305 : vector<2x32xf32>
    %cst_122 = arith.constant 1.000000e+00 : f32
    %307 = vector.broadcast %cst_122 : f32 to vector<2x32xf32>
    %308 = arith.addf %307, %306 : vector<2x32xf32>
    %309 = arith.divf %307, %308 : vector<2x32xf32>
    %310 = vector.extract_strided_slice %278 {offsets = [0, 32], sizes = [2, 32], strides = [1, 1]} : vector<2x128xf32> to vector<2x32xf32>
    %311 = arith.negf %310 : vector<2x32xf32>
    %312 = math.exp %311 : vector<2x32xf32>
    %cst_123 = arith.constant 1.000000e+00 : f32
    %313 = vector.broadcast %cst_123 : f32 to vector<2x32xf32>
    %314 = arith.addf %313, %312 : vector<2x32xf32>
    %315 = arith.divf %313, %314 : vector<2x32xf32>
    %316 = vector.extract_strided_slice %278 {offsets = [0, 64], sizes = [2, 32], strides = [1, 1]} : vector<2x128xf32> to vector<2x32xf32>
    %317 = math.tanh %316 : vector<2x32xf32>
    %318 = vector.extract_strided_slice %278 {offsets = [0, 96], sizes = [2, 32], strides = [1, 1]} : vector<2x128xf32> to vector<2x32xf32>
    %319 = arith.negf %318 : vector<2x32xf32>
    %320 = math.exp %319 : vector<2x32xf32>
    %cst_124 = arith.constant 1.000000e+00 : f32
    %321 = vector.broadcast %cst_124 : f32 to vector<2x32xf32>
    %322 = arith.addf %321, %320 : vector<2x32xf32>
    %323 = arith.divf %321, %322 : vector<2x32xf32>
    %324 = arith.mulf %315, %260 : vector<2x32xf32>
    %325 = arith.mulf %309, %317 : vector<2x32xf32>
    %326 = arith.addf %324, %325 : vector<2x32xf32>
    %327 = math.tanh %326 : vector<2x32xf32>
    %328 = arith.mulf %323, %327 : vector<2x32xf32>
    %c3_125 = arith.constant 3 : index
    %c0_126 = arith.constant 0 : index
    %c0_127 = arith.constant 0 : index
    %329 = vector.load %arg12[%c3_125, %c0_126, %c0_127] : memref<8x2x64xf32, #tpu.memory_space<vmem>>, vector<1x2x32xf32>
    %330 = vector.shape_cast %329 : vector<1x2x32xf32> to vector<2x32xf32>
    %331 = vector.shape_cast %303 : vector<2x32xf32> to vector<1x2x32xf32>
    tpu.vector_store %arg12[%c3_125, %c0_126, %c0_127], %331 {strides = array<i32>} : memref<8x2x64xf32, #tpu.memory_space<vmem>>, vector<1x2x32xf32>,
    %c4_128 = arith.constant 4 : index
    %c0_129 = arith.constant 0 : index
    %c32_130 = arith.constant 32 : index
    %332 = vector.load %arg12[%c4_128, %c0_129, %c32_130] : memref<8x2x64xf32, #tpu.memory_space<vmem>>, vector<1x2x32xf32>
    %333 = vector.shape_cast %332 : vector<1x2x32xf32> to vector<2x32xf32>
    %334 = vector.shape_cast %328 : vector<2x32xf32> to vector<1x2x32xf32>
    tpu.vector_store %arg12[%c4_128, %c0_129, %c32_130], %334 {strides = array<i32>} : memref<8x2x64xf32, #tpu.memory_space<vmem>>, vector<1x2x32xf32>,
    %335 = tpu.concatenate %303, %328 in 1 : vector<2x32xf32>, vector<2x32xf32> -> vector<2x64xf32>
    %cst_131 = arith.constant dense<0.000000e+00> : vector<2x256xf32>
    %336 = tpu.matmul %335, %1, %cst_131 {dimension_numbers = #tpu.dot_dimension_numbers<[1], [0], [0], [1], [0, 0, 1, 1], [], []>} : vector<2x64xf32>, vector<64x256xf32>, vector<2x256xf32> -> vector<2x256xf32>
    %337 = vector.extract_strided_slice %336 {offsets = [0, 0], sizes = [2, 128], strides = [1, 1]} : vector<2x256xf32> to vector<2x128xf32>
    %c4_132 = arith.constant 4 : index
    %c0_133 = arith.constant 0 : index
    %c0_134 = arith.constant 0 : index
    %338 = vector.load %arg13[%c4_132, %c0_133, %c0_134] : memref<8x2x256xf32, #tpu.memory_space<vmem>>, vector<1x2x128xf32>
    %339 = vector.shape_cast %338 : vector<1x2x128xf32> to vector<2x128xf32>
    %340 = arith.addf %337, %339 : vector<2x128xf32>
    %341 = vector.extract_strided_slice %336 {offsets = [0, 128], sizes = [2, 128], strides = [1, 1]} : vector<2x256xf32> to vector<2x128xf32>
    %c3_135 = arith.constant 3 : index
    %c0_136 = arith.constant 0 : index
    %c128_137 = arith.constant 128 : index
    %342 = vector.load %arg13[%c3_135, %c0_136, %c128_137] : memref<8x2x256xf32, #tpu.memory_space<vmem>>, vector<1x2x128xf32>
    %343 = vector.shape_cast %342 : vector<1x2x128xf32> to vector<2x128xf32>
    %344 = arith.addf %341, %343 : vector<2x128xf32>
    %345 = vector.extract_strided_slice %340 {offsets = [0, 0], sizes = [2, 32], strides = [1, 1]} : vector<2x128xf32> to vector<2x32xf32>
    %346 = arith.negf %345 : vector<2x32xf32>
    %347 = math.exp %346 : vector<2x32xf32>
    %cst_138 = arith.constant 1.000000e+00 : f32
    %348 = vector.broadcast %cst_138 : f32 to vector<2x32xf32>
    %349 = arith.addf %348, %347 : vector<2x32xf32>
    %350 = arith.divf %348, %349 : vector<2x32xf32>
    %351 = vector.extract_strided_slice %340 {offsets = [0, 32], sizes = [2, 32], strides = [1, 1]} : vector<2x128xf32> to vector<2x32xf32>
    %352 = arith.negf %351 : vector<2x32xf32>
    %353 = math.exp %352 : vector<2x32xf32>
    %cst_139 = arith.constant 1.000000e+00 : f32
    %354 = vector.broadcast %cst_139 : f32 to vector<2x32xf32>
    %355 = arith.addf %354, %353 : vector<2x32xf32>
    %356 = arith.divf %354, %355 : vector<2x32xf32>
    %357 = vector.extract_strided_slice %340 {offsets = [0, 64], sizes = [2, 32], strides = [1, 1]} : vector<2x128xf32> to vector<2x32xf32>
    %358 = math.tanh %357 : vector<2x32xf32>
    %359 = vector.extract_strided_slice %340 {offsets = [0, 96], sizes = [2, 32], strides = [1, 1]} : vector<2x128xf32> to vector<2x32xf32>
    %360 = arith.negf %359 : vector<2x32xf32>
    %361 = math.exp %360 : vector<2x32xf32>
    %cst_140 = arith.constant 1.000000e+00 : f32
    %362 = vector.broadcast %cst_140 : f32 to vector<2x32xf32>
    %363 = arith.addf %362, %361 : vector<2x32xf32>
    %364 = arith.divf %362, %363 : vector<2x32xf32>
    %365 = arith.mulf %356, %301 : vector<2x32xf32>
    %366 = arith.mulf %350, %358 : vector<2x32xf32>
    %367 = arith.addf %365, %366 : vector<2x32xf32>
    %368 = math.tanh %367 : vector<2x32xf32>
    %369 = arith.mulf %364, %368 : vector<2x32xf32>
    %370 = vector.extract_strided_slice %344 {offsets = [0, 0], sizes = [2, 32], strides = [1, 1]} : vector<2x128xf32> to vector<2x32xf32>
    %371 = arith.negf %370 : vector<2x32xf32>
    %372 = math.exp %371 : vector<2x32xf32>
    %cst_141 = arith.constant 1.000000e+00 : f32
    %373 = vector.broadcast %cst_141 : f32 to vector<2x32xf32>
    %374 = arith.addf %373, %372 : vector<2x32xf32>
    %375 = arith.divf %373, %374 : vector<2x32xf32>
    %376 = vector.extract_strided_slice %344 {offsets = [0, 32], sizes = [2, 32], strides = [1, 1]} : vector<2x128xf32> to vector<2x32xf32>
    %377 = arith.negf %376 : vector<2x32xf32>
    %378 = math.exp %377 : vector<2x32xf32>
    %cst_142 = arith.constant 1.000000e+00 : f32
    %379 = vector.broadcast %cst_142 : f32 to vector<2x32xf32>
    %380 = arith.addf %379, %378 : vector<2x32xf32>
    %381 = arith.divf %379, %380 : vector<2x32xf32>
    %382 = vector.extract_strided_slice %344 {offsets = [0, 64], sizes = [2, 32], strides = [1, 1]} : vector<2x128xf32> to vector<2x32xf32>
    %383 = math.tanh %382 : vector<2x32xf32>
    %384 = vector.extract_strided_slice %344 {offsets = [0, 96], sizes = [2, 32], strides = [1, 1]} : vector<2x128xf32> to vector<2x32xf32>
    %385 = arith.negf %384 : vector<2x32xf32>
    %386 = math.exp %385 : vector<2x32xf32>
    %cst_143 = arith.constant 1.000000e+00 : f32
    %387 = vector.broadcast %cst_143 : f32 to vector<2x32xf32>
    %388 = arith.addf %387, %386 : vector<2x32xf32>
    %389 = arith.divf %387, %388 : vector<2x32xf32>
    %390 = arith.mulf %381, %326 : vector<2x32xf32>
    %391 = arith.mulf %375, %383 : vector<2x32xf32>
    %392 = arith.addf %390, %391 : vector<2x32xf32>
    %393 = math.tanh %392 : vector<2x32xf32>
    %394 = arith.mulf %389, %393 : vector<2x32xf32>
    %c4_144 = arith.constant 4 : index
    %c0_145 = arith.constant 0 : index
    %c0_146 = arith.constant 0 : index
    %395 = vector.load %arg12[%c4_144, %c0_145, %c0_146] : memref<8x2x64xf32, #tpu.memory_space<vmem>>, vector<1x2x32xf32>
    %396 = vector.shape_cast %395 : vector<1x2x32xf32> to vector<2x32xf32>
    %397 = vector.shape_cast %369 : vector<2x32xf32> to vector<1x2x32xf32>
    tpu.vector_store %arg12[%c4_144, %c0_145, %c0_146], %397 {strides = array<i32>} : memref<8x2x64xf32, #tpu.memory_space<vmem>>, vector<1x2x32xf32>,
    %c3_147 = arith.constant 3 : index
    %c0_148 = arith.constant 0 : index
    %c32_149 = arith.constant 32 : index
    %398 = vector.load %arg12[%c3_147, %c0_148, %c32_149] : memref<8x2x64xf32, #tpu.memory_space<vmem>>, vector<1x2x32xf32>
    %399 = vector.shape_cast %398 : vector<1x2x32xf32> to vector<2x32xf32>
    %400 = vector.shape_cast %394 : vector<2x32xf32> to vector<1x2x32xf32>
    tpu.vector_store %arg12[%c3_147, %c0_148, %c32_149], %400 {strides = array<i32>} : memref<8x2x64xf32, #tpu.memory_space<vmem>>, vector<1x2x32xf32>,
    %401 = tpu.concatenate %369, %394 in 1 : vector<2x32xf32>, vector<2x32xf32> -> vector<2x64xf32>
    %cst_150 = arith.constant dense<0.000000e+00> : vector<2x256xf32>
    %402 = tpu.matmul %401, %1, %cst_150 {dimension_numbers = #tpu.dot_dimension_numbers<[1], [0], [0], [1], [0, 0, 1, 1], [], []>} : vector<2x64xf32>, vector<64x256xf32>, vector<2x256xf32> -> vector<2x256xf32>
    %403 = vector.extract_strided_slice %402 {offsets = [0, 0], sizes = [2, 128], strides = [1, 1]} : vector<2x256xf32> to vector<2x128xf32>
    %c5_151 = arith.constant 5 : index
    %c0_152 = arith.constant 0 : index
    %c0_153 = arith.constant 0 : index
    %404 = vector.load %arg13[%c5_151, %c0_152, %c0_153] : memref<8x2x256xf32, #tpu.memory_space<vmem>>, vector<1x2x128xf32>
    %405 = vector.shape_cast %404 : vector<1x2x128xf32> to vector<2x128xf32>
    %406 = arith.addf %403, %405 : vector<2x128xf32>
    %407 = vector.extract_strided_slice %402 {offsets = [0, 128], sizes = [2, 128], strides = [1, 1]} : vector<2x256xf32> to vector<2x128xf32>
    %c2_154 = arith.constant 2 : index
    %c0_155 = arith.constant 0 : index
    %c128_156 = arith.constant 128 : index
    %408 = vector.load %arg13[%c2_154, %c0_155, %c128_156] : memref<8x2x256xf32, #tpu.memory_space<vmem>>, vector<1x2x128xf32>
    %409 = vector.shape_cast %408 : vector<1x2x128xf32> to vector<2x128xf32>
    %410 = arith.addf %407, %409 : vector<2x128xf32>
    %411 = vector.extract_strided_slice %406 {offsets = [0, 0], sizes = [2, 32], strides = [1, 1]} : vector<2x128xf32> to vector<2x32xf32>
    %412 = arith.negf %411 : vector<2x32xf32>
    %413 = math.exp %412 : vector<2x32xf32>
    %cst_157 = arith.constant 1.000000e+00 : f32
    %414 = vector.broadcast %cst_157 : f32 to vector<2x32xf32>
    %415 = arith.addf %414, %413 : vector<2x32xf32>
    %416 = arith.divf %414, %415 : vector<2x32xf32>
    %417 = vector.extract_strided_slice %406 {offsets = [0, 32], sizes = [2, 32], strides = [1, 1]} : vector<2x128xf32> to vector<2x32xf32>
    %418 = arith.negf %417 : vector<2x32xf32>
    %419 = math.exp %418 : vector<2x32xf32>
    %cst_158 = arith.constant 1.000000e+00 : f32
    %420 = vector.broadcast %cst_158 : f32 to vector<2x32xf32>
    %421 = arith.addf %420, %419 : vector<2x32xf32>
    %422 = arith.divf %420, %421 : vector<2x32xf32>
    %423 = vector.extract_strided_slice %406 {offsets = [0, 64], sizes = [2, 32], strides = [1, 1]} : vector<2x128xf32> to vector<2x32xf32>
    %424 = math.tanh %423 : vector<2x32xf32>
    %425 = vector.extract_strided_slice %406 {offsets = [0, 96], sizes = [2, 32], strides = [1, 1]} : vector<2x128xf32> to vector<2x32xf32>
    %426 = arith.negf %425 : vector<2x32xf32>
    %427 = math.exp %426 : vector<2x32xf32>
    %cst_159 = arith.constant 1.000000e+00 : f32
    %428 = vector.broadcast %cst_159 : f32 to vector<2x32xf32>
    %429 = arith.addf %428, %427 : vector<2x32xf32>
    %430 = arith.divf %428, %429 : vector<2x32xf32>
    %431 = arith.mulf %422, %367 : vector<2x32xf32>
    %432 = arith.mulf %416, %424 : vector<2x32xf32>
    %433 = arith.addf %431, %432 : vector<2x32xf32>
    %434 = math.tanh %433 : vector<2x32xf32>
    %435 = arith.mulf %430, %434 : vector<2x32xf32>
    %436 = vector.extract_strided_slice %410 {offsets = [0, 0], sizes = [2, 32], strides = [1, 1]} : vector<2x128xf32> to vector<2x32xf32>
    %437 = arith.negf %436 : vector<2x32xf32>
    %438 = math.exp %437 : vector<2x32xf32>
    %cst_160 = arith.constant 1.000000e+00 : f32
    %439 = vector.broadcast %cst_160 : f32 to vector<2x32xf32>
    %440 = arith.addf %439, %438 : vector<2x32xf32>
    %441 = arith.divf %439, %440 : vector<2x32xf32>
    %442 = vector.extract_strided_slice %410 {offsets = [0, 32], sizes = [2, 32], strides = [1, 1]} : vector<2x128xf32> to vector<2x32xf32>
    %443 = arith.negf %442 : vector<2x32xf32>
    %444 = math.exp %443 : vector<2x32xf32>
    %cst_161 = arith.constant 1.000000e+00 : f32
    %445 = vector.broadcast %cst_161 : f32 to vector<2x32xf32>
    %446 = arith.addf %445, %444 : vector<2x32xf32>
    %447 = arith.divf %445, %446 : vector<2x32xf32>
    %448 = vector.extract_strided_slice %410 {offsets = [0, 64], sizes = [2, 32], strides = [1, 1]} : vector<2x128xf32> to vector<2x32xf32>
    %449 = math.tanh %448 : vector<2x32xf32>
    %450 = vector.extract_strided_slice %410 {offsets = [0, 96], sizes = [2, 32], strides = [1, 1]} : vector<2x128xf32> to vector<2x32xf32>
    %451 = arith.negf %450 : vector<2x32xf32>
    %452 = math.exp %451 : vector<2x32xf32>
    %cst_162 = arith.constant 1.000000e+00 : f32
    %453 = vector.broadcast %cst_162 : f32 to vector<2x32xf32>
    %454 = arith.addf %453, %452 : vector<2x32xf32>
    %455 = arith.divf %453, %454 : vector<2x32xf32>
    %456 = arith.mulf %447, %392 : vector<2x32xf32>
    %457 = arith.mulf %441, %449 : vector<2x32xf32>
    %458 = arith.addf %456, %457 : vector<2x32xf32>
    %459 = math.tanh %458 : vector<2x32xf32>
    %460 = arith.mulf %455, %459 : vector<2x32xf32>
    %c5_163 = arith.constant 5 : index
    %c0_164 = arith.constant 0 : index
    %c0_165 = arith.constant 0 : index
    %461 = vector.load %arg12[%c5_163, %c0_164, %c0_165] : memref<8x2x64xf32, #tpu.memory_space<vmem>>, vector<1x2x32xf32>
    %462 = vector.shape_cast %461 : vector<1x2x32xf32> to vector<2x32xf32>
    %463 = vector.shape_cast %435 : vector<2x32xf32> to vector<1x2x32xf32>
    tpu.vector_store %arg12[%c5_163, %c0_164, %c0_165], %463 {strides = array<i32>} : memref<8x2x64xf32, #tpu.memory_space<vmem>>, vector<1x2x32xf32>,
    %c2_166 = arith.constant 2 : index
    %c0_167 = arith.constant 0 : index
    %c32_168 = arith.constant 32 : index
    %464 = vector.load %arg12[%c2_166, %c0_167, %c32_168] : memref<8x2x64xf32, #tpu.memory_space<vmem>>, vector<1x2x32xf32>
    %465 = vector.shape_cast %464 : vector<1x2x32xf32> to vector<2x32xf32>
    %466 = vector.shape_cast %460 : vector<2x32xf32> to vector<1x2x32xf32>
    tpu.vector_store %arg12[%c2_166, %c0_167, %c32_168], %466 {strides = array<i32>} : memref<8x2x64xf32, #tpu.memory_space<vmem>>, vector<1x2x32xf32>,
    %467 = tpu.concatenate %435, %460 in 1 : vector<2x32xf32>, vector<2x32xf32> -> vector<2x64xf32>
    %cst_169 = arith.constant dense<0.000000e+00> : vector<2x256xf32>
    %468 = tpu.matmul %467, %1, %cst_169 {dimension_numbers = #tpu.dot_dimension_numbers<[1], [0], [0], [1], [0, 0, 1, 1], [], []>} : vector<2x64xf32>, vector<64x256xf32>, vector<2x256xf32> -> vector<2x256xf32>
    %469 = vector.extract_strided_slice %468 {offsets = [0, 0], sizes = [2, 128], strides = [1, 1]} : vector<2x256xf32> to vector<2x128xf32>
    %c6_170 = arith.constant 6 : index
    %c0_171 = arith.constant 0 : index
    %c0_172 = arith.constant 0 : index
    %470 = vector.load %arg13[%c6_170, %c0_171, %c0_172] : memref<8x2x256xf32, #tpu.memory_space<vmem>>, vector<1x2x128xf32>
    %471 = vector.shape_cast %470 : vector<1x2x128xf32> to vector<2x128xf32>
    %472 = arith.addf %469, %471 : vector<2x128xf32>
    %473 = vector.extract_strided_slice %468 {offsets = [0, 128], sizes = [2, 128], strides = [1, 1]} : vector<2x256xf32> to vector<2x128xf32>
    %c1_173 = arith.constant 1 : index
    %c0_174 = arith.constant 0 : index
    %c128_175 = arith.constant 128 : index
    %474 = vector.load %arg13[%c1_173, %c0_174, %c128_175] : memref<8x2x256xf32, #tpu.memory_space<vmem>>, vector<1x2x128xf32>
    %475 = vector.shape_cast %474 : vector<1x2x128xf32> to vector<2x128xf32>
    %476 = arith.addf %473, %475 : vector<2x128xf32>
    %477 = vector.extract_strided_slice %472 {offsets = [0, 0], sizes = [2, 32], strides = [1, 1]} : vector<2x128xf32> to vector<2x32xf32>
    %478 = arith.negf %477 : vector<2x32xf32>
    %479 = math.exp %478 : vector<2x32xf32>
    %cst_176 = arith.constant 1.000000e+00 : f32
    %480 = vector.broadcast %cst_176 : f32 to vector<2x32xf32>
    %481 = arith.addf %480, %479 : vector<2x32xf32>
    %482 = arith.divf %480, %481 : vector<2x32xf32>
    %483 = vector.extract_strided_slice %472 {offsets = [0, 32], sizes = [2, 32], strides = [1, 1]} : vector<2x128xf32> to vector<2x32xf32>
    %484 = arith.negf %483 : vector<2x32xf32>
    %485 = math.exp %484 : vector<2x32xf32>
    %cst_177 = arith.constant 1.000000e+00 : f32
    %486 = vector.broadcast %cst_177 : f32 to vector<2x32xf32>
    %487 = arith.addf %486, %485 : vector<2x32xf32>
    %488 = arith.divf %486, %487 : vector<2x32xf32>
    %489 = vector.extract_strided_slice %472 {offsets = [0, 64], sizes = [2, 32], strides = [1, 1]} : vector<2x128xf32> to vector<2x32xf32>
    %490 = math.tanh %489 : vector<2x32xf32>
    %491 = vector.extract_strided_slice %472 {offsets = [0, 96], sizes = [2, 32], strides = [1, 1]} : vector<2x128xf32> to vector<2x32xf32>
    %492 = arith.negf %491 : vector<2x32xf32>
    %493 = math.exp %492 : vector<2x32xf32>
    %cst_178 = arith.constant 1.000000e+00 : f32
    %494 = vector.broadcast %cst_178 : f32 to vector<2x32xf32>
    %495 = arith.addf %494, %493 : vector<2x32xf32>
    %496 = arith.divf %494, %495 : vector<2x32xf32>
    %497 = arith.mulf %488, %433 : vector<2x32xf32>
    %498 = arith.mulf %482, %490 : vector<2x32xf32>
    %499 = arith.addf %497, %498 : vector<2x32xf32>
    %500 = math.tanh %499 : vector<2x32xf32>
    %501 = arith.mulf %496, %500 : vector<2x32xf32>
    %502 = vector.extract_strided_slice %476 {offsets = [0, 0], sizes = [2, 32], strides = [1, 1]} : vector<2x128xf32> to vector<2x32xf32>
    %503 = arith.negf %502 : vector<2x32xf32>
    %504 = math.exp %503 : vector<2x32xf32>
    %cst_179 = arith.constant 1.000000e+00 : f32
    %505 = vector.broadcast %cst_179 : f32 to vector<2x32xf32>
    %506 = arith.addf %505, %504 : vector<2x32xf32>
    %507 = arith.divf %505, %506 : vector<2x32xf32>
    %508 = vector.extract_strided_slice %476 {offsets = [0, 32], sizes = [2, 32], strides = [1, 1]} : vector<2x128xf32> to vector<2x32xf32>
    %509 = arith.negf %508 : vector<2x32xf32>
    %510 = math.exp %509 : vector<2x32xf32>
    %cst_180 = arith.constant 1.000000e+00 : f32
    %511 = vector.broadcast %cst_180 : f32 to vector<2x32xf32>
    %512 = arith.addf %511, %510 : vector<2x32xf32>
    %513 = arith.divf %511, %512 : vector<2x32xf32>
    %514 = vector.extract_strided_slice %476 {offsets = [0, 64], sizes = [2, 32], strides = [1, 1]} : vector<2x128xf32> to vector<2x32xf32>
    %515 = math.tanh %514 : vector<2x32xf32>
    %516 = vector.extract_strided_slice %476 {offsets = [0, 96], sizes = [2, 32], strides = [1, 1]} : vector<2x128xf32> to vector<2x32xf32>
    %517 = arith.negf %516 : vector<2x32xf32>
    %518 = math.exp %517 : vector<2x32xf32>
    %cst_181 = arith.constant 1.000000e+00 : f32
    %519 = vector.broadcast %cst_181 : f32 to vector<2x32xf32>
    %520 = arith.addf %519, %518 : vector<2x32xf32>
    %521 = arith.divf %519, %520 : vector<2x32xf32>
    %522 = arith.mulf %513, %458 : vector<2x32xf32>
    %523 = arith.mulf %507, %515 : vector<2x32xf32>
    %524 = arith.addf %522, %523 : vector<2x32xf32>
    %525 = math.tanh %524 : vector<2x32xf32>
    %526 = arith.mulf %521, %525 : vector<2x32xf32>
    %c6_182 = arith.constant 6 : index
    %c0_183 = arith.constant 0 : index
    %c0_184 = arith.constant 0 : index
    %527 = vector.load %arg12[%c6_182, %c0_183, %c0_184] : memref<8x2x64xf32, #tpu.memory_space<vmem>>, vector<1x2x32xf32>
    %528 = vector.shape_cast %527 : vector<1x2x32xf32> to vector<2x32xf32>
    %529 = vector.shape_cast %501 : vector<2x32xf32> to vector<1x2x32xf32>
    tpu.vector_store %arg12[%c6_182, %c0_183, %c0_184], %529 {strides = array<i32>} : memref<8x2x64xf32, #tpu.memory_space<vmem>>, vector<1x2x32xf32>,
    %c1_185 = arith.constant 1 : index
    %c0_186 = arith.constant 0 : index
    %c32_187 = arith.constant 32 : index
    %530 = vector.load %arg12[%c1_185, %c0_186, %c32_187] : memref<8x2x64xf32, #tpu.memory_space<vmem>>, vector<1x2x32xf32>
    %531 = vector.shape_cast %530 : vector<1x2x32xf32> to vector<2x32xf32>
    %532 = vector.shape_cast %526 : vector<2x32xf32> to vector<1x2x32xf32>
    tpu.vector_store %arg12[%c1_185, %c0_186, %c32_187], %532 {strides = array<i32>} : memref<8x2x64xf32, #tpu.memory_space<vmem>>, vector<1x2x32xf32>,
    %533 = tpu.concatenate %501, %526 in 1 : vector<2x32xf32>, vector<2x32xf32> -> vector<2x64xf32>
    %cst_188 = arith.constant dense<0.000000e+00> : vector<2x256xf32>
    %534 = tpu.matmul %533, %1, %cst_188 {dimension_numbers = #tpu.dot_dimension_numbers<[1], [0], [0], [1], [0, 0, 1, 1], [], []>} : vector<2x64xf32>, vector<64x256xf32>, vector<2x256xf32> -> vector<2x256xf32>
    %535 = vector.extract_strided_slice %534 {offsets = [0, 0], sizes = [2, 128], strides = [1, 1]} : vector<2x256xf32> to vector<2x128xf32>
    %c7_189 = arith.constant 7 : index
    %c0_190 = arith.constant 0 : index
    %c0_191 = arith.constant 0 : index
    %536 = vector.load %arg13[%c7_189, %c0_190, %c0_191] : memref<8x2x256xf32, #tpu.memory_space<vmem>>, vector<1x2x128xf32>
    %537 = vector.shape_cast %536 : vector<1x2x128xf32> to vector<2x128xf32>
    %538 = arith.addf %535, %537 : vector<2x128xf32>
    %539 = vector.extract_strided_slice %534 {offsets = [0, 128], sizes = [2, 128], strides = [1, 1]} : vector<2x256xf32> to vector<2x128xf32>
    %c0_192 = arith.constant 0 : index
    %c0_193 = arith.constant 0 : index
    %c128_194 = arith.constant 128 : index
    %540 = vector.load %arg13[%c0_192, %c0_193, %c128_194] : memref<8x2x256xf32, #tpu.memory_space<vmem>>, vector<1x2x128xf32>
    %541 = vector.shape_cast %540 : vector<1x2x128xf32> to vector<2x128xf32>
    %542 = arith.addf %539, %541 : vector<2x128xf32>
    %543 = vector.extract_strided_slice %538 {offsets = [0, 0], sizes = [2, 32], strides = [1, 1]} : vector<2x128xf32> to vector<2x32xf32>
    %544 = arith.negf %543 : vector<2x32xf32>
    %545 = math.exp %544 : vector<2x32xf32>
    %cst_195 = arith.constant 1.000000e+00 : f32
    %546 = vector.broadcast %cst_195 : f32 to vector<2x32xf32>
    %547 = arith.addf %546, %545 : vector<2x32xf32>
    %548 = arith.divf %546, %547 : vector<2x32xf32>
    %549 = vector.extract_strided_slice %538 {offsets = [0, 32], sizes = [2, 32], strides = [1, 1]} : vector<2x128xf32> to vector<2x32xf32>
    %550 = arith.negf %549 : vector<2x32xf32>
    %551 = math.exp %550 : vector<2x32xf32>
    %cst_196 = arith.constant 1.000000e+00 : f32
    %552 = vector.broadcast %cst_196 : f32 to vector<2x32xf32>
    %553 = arith.addf %552, %551 : vector<2x32xf32>
    %554 = arith.divf %552, %553 : vector<2x32xf32>
    %555 = vector.extract_strided_slice %538 {offsets = [0, 64], sizes = [2, 32], strides = [1, 1]} : vector<2x128xf32> to vector<2x32xf32>
    %556 = math.tanh %555 : vector<2x32xf32>
    %557 = vector.extract_strided_slice %538 {offsets = [0, 96], sizes = [2, 32], strides = [1, 1]} : vector<2x128xf32> to vector<2x32xf32>
    %558 = arith.negf %557 : vector<2x32xf32>
    %559 = math.exp %558 : vector<2x32xf32>
    %cst_197 = arith.constant 1.000000e+00 : f32
    %560 = vector.broadcast %cst_197 : f32 to vector<2x32xf32>
    %561 = arith.addf %560, %559 : vector<2x32xf32>
    %562 = arith.divf %560, %561 : vector<2x32xf32>
    %563 = arith.mulf %554, %499 : vector<2x32xf32>
    %564 = arith.mulf %548, %556 : vector<2x32xf32>
    %565 = arith.addf %563, %564 : vector<2x32xf32>
    %566 = math.tanh %565 : vector<2x32xf32>
    %567 = arith.mulf %562, %566 : vector<2x32xf32>
    %568 = vector.extract_strided_slice %542 {offsets = [0, 0], sizes = [2, 32], strides = [1, 1]} : vector<2x128xf32> to vector<2x32xf32>
    %569 = arith.negf %568 : vector<2x32xf32>
    %570 = math.exp %569 : vector<2x32xf32>
    %cst_198 = arith.constant 1.000000e+00 : f32
    %571 = vector.broadcast %cst_198 : f32 to vector<2x32xf32>
    %572 = arith.addf %571, %570 : vector<2x32xf32>
    %573 = arith.divf %571, %572 : vector<2x32xf32>
    %574 = vector.extract_strided_slice %542 {offsets = [0, 32], sizes = [2, 32], strides = [1, 1]} : vector<2x128xf32> to vector<2x32xf32>
    %575 = arith.negf %574 : vector<2x32xf32>
    %576 = math.exp %575 : vector<2x32xf32>
    %cst_199 = arith.constant 1.000000e+00 : f32
    %577 = vector.broadcast %cst_199 : f32 to vector<2x32xf32>
    %578 = arith.addf %577, %576 : vector<2x32xf32>
    %579 = arith.divf %577, %578 : vector<2x32xf32>
    %580 = vector.extract_strided_slice %542 {offsets = [0, 64], sizes = [2, 32], strides = [1, 1]} : vector<2x128xf32> to vector<2x32xf32>
    %581 = math.tanh %580 : vector<2x32xf32>
    %582 = vector.extract_strided_slice %542 {offsets = [0, 96], sizes = [2, 32], strides = [1, 1]} : vector<2x128xf32> to vector<2x32xf32>
    %583 = arith.negf %582 : vector<2x32xf32>
    %584 = math.exp %583 : vector<2x32xf32>
    %cst_200 = arith.constant 1.000000e+00 : f32
    %585 = vector.broadcast %cst_200 : f32 to vector<2x32xf32>
    %586 = arith.addf %585, %584 : vector<2x32xf32>
    %587 = arith.divf %585, %586 : vector<2x32xf32>
    %588 = arith.mulf %579, %524 : vector<2x32xf32>
    %589 = arith.mulf %573, %581 : vector<2x32xf32>
    %590 = arith.addf %588, %589 : vector<2x32xf32>
    %591 = math.tanh %590 : vector<2x32xf32>
    %592 = arith.mulf %587, %591 : vector<2x32xf32>
    %c7_201 = arith.constant 7 : index
    %c0_202 = arith.constant 0 : index
    %c0_203 = arith.constant 0 : index
    %593 = vector.load %arg12[%c7_201, %c0_202, %c0_203] : memref<8x2x64xf32, #tpu.memory_space<vmem>>, vector<1x2x32xf32>
    %594 = vector.shape_cast %593 : vector<1x2x32xf32> to vector<2x32xf32>
    %595 = vector.shape_cast %567 : vector<2x32xf32> to vector<1x2x32xf32>
    tpu.vector_store %arg12[%c7_201, %c0_202, %c0_203], %595 {strides = array<i32>} : memref<8x2x64xf32, #tpu.memory_space<vmem>>, vector<1x2x32xf32>,
    %c0_204 = arith.constant 0 : index
    %c0_205 = arith.constant 0 : index
    %c32_206 = arith.constant 32 : index
    %596 = vector.load %arg12[%c0_204, %c0_205, %c32_206] : memref<8x2x64xf32, #tpu.memory_space<vmem>>, vector<1x2x32xf32>
    %597 = vector.shape_cast %596 : vector<1x2x32xf32> to vector<2x32xf32>
    %598 = vector.shape_cast %592 : vector<2x32xf32> to vector<1x2x32xf32>
    tpu.vector_store %arg12[%c0_204, %c0_205, %c32_206], %598 {strides = array<i32>} : memref<8x2x64xf32, #tpu.memory_space<vmem>>, vector<1x2x32xf32>,
    %c0_207 = arith.constant 0 : index
    %c0_208 = arith.constant 0 : index
    %599 = vector.load %arg4[%c0_207, %c0_208] : memref<64x256xf32, #tpu.memory_space<vmem>>, vector<64x256xf32>
    %c0_209 = arith.constant 0 : index
    %c0_210 = arith.constant 0 : index
    %600 = vector.load %arg5[%c0_209, %c0_210] : memref<64x256xf32, #tpu.memory_space<vmem>>, vector<64x256xf32>
    %c0_211 = arith.constant 0 : index
    %c0_212 = arith.constant 0 : index
    %601 = vector.load %arg6[%c0_211, %c0_212] : memref<1x256xf32, #tpu.memory_space<vmem>>, vector<1x256xf32>
    %c0_213 = arith.constant 0 : index
    %c0_214 = arith.constant 0 : index
    %c0_215 = arith.constant 0 : index
    %602 = vector.load %arg12[%c0_213, %c0_214, %c0_215] : memref<8x2x64xf32, #tpu.memory_space<vmem>>, vector<1x2x64xf32>
    %603 = vector.shape_cast %602 : vector<1x2x64xf32> to vector<2x64xf32>
    %cst_216 = arith.constant dense<0.000000e+00> : vector<2x256xf32>
    %604 = tpu.matmul %603, %599, %cst_216 {dimension_numbers = #tpu.dot_dimension_numbers<[1], [0], [0], [1], [0, 0, 1, 1], [], []>} : vector<2x64xf32>, vector<64x256xf32>, vector<2x256xf32> -> vector<2x256xf32>
    %605 = vector.broadcast %601 : vector<1x256xf32> to vector<2x256xf32>
    %606 = arith.addf %604, %605 : vector<2x256xf32>
    %c0_217 = arith.constant 0 : index
    %c0_218 = arith.constant 0 : index
    %c0_219 = arith.constant 0 : index
    %607 = vector.load %arg13[%c0_217, %c0_218, %c0_219] : memref<8x2x256xf32, #tpu.memory_space<vmem>>, vector<1x2x256xf32>
    %608 = vector.shape_cast %607 : vector<1x2x256xf32> to vector<2x256xf32>
    %609 = vector.shape_cast %606 : vector<2x256xf32> to vector<1x2x256xf32>
    tpu.vector_store %arg13[%c0_217, %c0_218, %c0_219], %609 {strides = array<i32>} : memref<8x2x256xf32, #tpu.memory_space<vmem>>, vector<1x2x256xf32>,
    %c1_220 = arith.constant 1 : index
    %c0_221 = arith.constant 0 : index
    %c0_222 = arith.constant 0 : index
    %610 = vector.load %arg12[%c1_220, %c0_221, %c0_222] : memref<8x2x64xf32, #tpu.memory_space<vmem>>, vector<1x2x64xf32>
    %611 = vector.shape_cast %610 : vector<1x2x64xf32> to vector<2x64xf32>
    %cst_223 = arith.constant dense<0.000000e+00> : vector<2x256xf32>
    %612 = tpu.matmul %611, %599, %cst_223 {dimension_numbers = #tpu.dot_dimension_numbers<[1], [0], [0], [1], [0, 0, 1, 1], [], []>} : vector<2x64xf32>, vector<64x256xf32>, vector<2x256xf32> -> vector<2x256xf32>
    %613 = vector.broadcast %601 : vector<1x256xf32> to vector<2x256xf32>
    %614 = arith.addf %612, %613 : vector<2x256xf32>
    %c1_224 = arith.constant 1 : index
    %c0_225 = arith.constant 0 : index
    %c0_226 = arith.constant 0 : index
    %615 = vector.load %arg13[%c1_224, %c0_225, %c0_226] : memref<8x2x256xf32, #tpu.memory_space<vmem>>, vector<1x2x256xf32>
    %616 = vector.shape_cast %615 : vector<1x2x256xf32> to vector<2x256xf32>
    %617 = vector.shape_cast %614 : vector<2x256xf32> to vector<1x2x256xf32>
    tpu.vector_store %arg13[%c1_224, %c0_225, %c0_226], %617 {strides = array<i32>} : memref<8x2x256xf32, #tpu.memory_space<vmem>>, vector<1x2x256xf32>,
    %c2_227 = arith.constant 2 : index
    %c0_228 = arith.constant 0 : index
    %c0_229 = arith.constant 0 : index
    %618 = vector.load %arg12[%c2_227, %c0_228, %c0_229] : memref<8x2x64xf32, #tpu.memory_space<vmem>>, vector<1x2x64xf32>
    %619 = vector.shape_cast %618 : vector<1x2x64xf32> to vector<2x64xf32>
    %cst_230 = arith.constant dense<0.000000e+00> : vector<2x256xf32>
    %620 = tpu.matmul %619, %599, %cst_230 {dimension_numbers = #tpu.dot_dimension_numbers<[1], [0], [0], [1], [0, 0, 1, 1], [], []>} : vector<2x64xf32>, vector<64x256xf32>, vector<2x256xf32> -> vector<2x256xf32>
    %621 = vector.broadcast %601 : vector<1x256xf32> to vector<2x256xf32>
    %622 = arith.addf %620, %621 : vector<2x256xf32>
    %c2_231 = arith.constant 2 : index
    %c0_232 = arith.constant 0 : index
    %c0_233 = arith.constant 0 : index
    %623 = vector.load %arg13[%c2_231, %c0_232, %c0_233] : memref<8x2x256xf32, #tpu.memory_space<vmem>>, vector<1x2x256xf32>
    %624 = vector.shape_cast %623 : vector<1x2x256xf32> to vector<2x256xf32>
    %625 = vector.shape_cast %622 : vector<2x256xf32> to vector<1x2x256xf32>
    tpu.vector_store %arg13[%c2_231, %c0_232, %c0_233], %625 {strides = array<i32>} : memref<8x2x256xf32, #tpu.memory_space<vmem>>, vector<1x2x256xf32>,
    %c3_234 = arith.constant 3 : index
    %c0_235 = arith.constant 0 : index
    %c0_236 = arith.constant 0 : index
    %626 = vector.load %arg12[%c3_234, %c0_235, %c0_236] : memref<8x2x64xf32, #tpu.memory_space<vmem>>, vector<1x2x64xf32>
    %627 = vector.shape_cast %626 : vector<1x2x64xf32> to vector<2x64xf32>
    %cst_237 = arith.constant dense<0.000000e+00> : vector<2x256xf32>
    %628 = tpu.matmul %627, %599, %cst_237 {dimension_numbers = #tpu.dot_dimension_numbers<[1], [0], [0], [1], [0, 0, 1, 1], [], []>} : vector<2x64xf32>, vector<64x256xf32>, vector<2x256xf32> -> vector<2x256xf32>
    %629 = vector.broadcast %601 : vector<1x256xf32> to vector<2x256xf32>
    %630 = arith.addf %628, %629 : vector<2x256xf32>
    %c3_238 = arith.constant 3 : index
    %c0_239 = arith.constant 0 : index
    %c0_240 = arith.constant 0 : index
    %631 = vector.load %arg13[%c3_238, %c0_239, %c0_240] : memref<8x2x256xf32, #tpu.memory_space<vmem>>, vector<1x2x256xf32>
    %632 = vector.shape_cast %631 : vector<1x2x256xf32> to vector<2x256xf32>
    %633 = vector.shape_cast %630 : vector<2x256xf32> to vector<1x2x256xf32>
    tpu.vector_store %arg13[%c3_238, %c0_239, %c0_240], %633 {strides = array<i32>} : memref<8x2x256xf32, #tpu.memory_space<vmem>>, vector<1x2x256xf32>,
    %c4_241 = arith.constant 4 : index
    %c0_242 = arith.constant 0 : index
    %c0_243 = arith.constant 0 : index
    %634 = vector.load %arg12[%c4_241, %c0_242, %c0_243] : memref<8x2x64xf32, #tpu.memory_space<vmem>>, vector<1x2x64xf32>
    %635 = vector.shape_cast %634 : vector<1x2x64xf32> to vector<2x64xf32>
    %cst_244 = arith.constant dense<0.000000e+00> : vector<2x256xf32>
    %636 = tpu.matmul %635, %599, %cst_244 {dimension_numbers = #tpu.dot_dimension_numbers<[1], [0], [0], [1], [0, 0, 1, 1], [], []>} : vector<2x64xf32>, vector<64x256xf32>, vector<2x256xf32> -> vector<2x256xf32>
    %637 = vector.broadcast %601 : vector<1x256xf32> to vector<2x256xf32>
    %638 = arith.addf %636, %637 : vector<2x256xf32>
    %c4_245 = arith.constant 4 : index
    %c0_246 = arith.constant 0 : index
    %c0_247 = arith.constant 0 : index
    %639 = vector.load %arg13[%c4_245, %c0_246, %c0_247] : memref<8x2x256xf32, #tpu.memory_space<vmem>>, vector<1x2x256xf32>
    %640 = vector.shape_cast %639 : vector<1x2x256xf32> to vector<2x256xf32>
    %641 = vector.shape_cast %638 : vector<2x256xf32> to vector<1x2x256xf32>
    tpu.vector_store %arg13[%c4_245, %c0_246, %c0_247], %641 {strides = array<i32>} : memref<8x2x256xf32, #tpu.memory_space<vmem>>, vector<1x2x256xf32>,
    %c5_248 = arith.constant 5 : index
    %c0_249 = arith.constant 0 : index
    %c0_250 = arith.constant 0 : index
    %642 = vector.load %arg12[%c5_248, %c0_249, %c0_250] : memref<8x2x64xf32, #tpu.memory_space<vmem>>, vector<1x2x64xf32>
    %643 = vector.shape_cast %642 : vector<1x2x64xf32> to vector<2x64xf32>
    %cst_251 = arith.constant dense<0.000000e+00> : vector<2x256xf32>
    %644 = tpu.matmul %643, %599, %cst_251 {dimension_numbers = #tpu.dot_dimension_numbers<[1], [0], [0], [1], [0, 0, 1, 1], [], []>} : vector<2x64xf32>, vector<64x256xf32>, vector<2x256xf32> -> vector<2x256xf32>
    %645 = vector.broadcast %601 : vector<1x256xf32> to vector<2x256xf32>
    %646 = arith.addf %644, %645 : vector<2x256xf32>
    %c5_252 = arith.constant 5 : index
    %c0_253 = arith.constant 0 : index
    %c0_254 = arith.constant 0 : index
    %647 = vector.load %arg13[%c5_252, %c0_253, %c0_254] : memref<8x2x256xf32, #tpu.memory_space<vmem>>, vector<1x2x256xf32>
    %648 = vector.shape_cast %647 : vector<1x2x256xf32> to vector<2x256xf32>
    %649 = vector.shape_cast %646 : vector<2x256xf32> to vector<1x2x256xf32>
    tpu.vector_store %arg13[%c5_252, %c0_253, %c0_254], %649 {strides = array<i32>} : memref<8x2x256xf32, #tpu.memory_space<vmem>>, vector<1x2x256xf32>,
    %c6_255 = arith.constant 6 : index
    %c0_256 = arith.constant 0 : index
    %c0_257 = arith.constant 0 : index
    %650 = vector.load %arg12[%c6_255, %c0_256, %c0_257] : memref<8x2x64xf32, #tpu.memory_space<vmem>>, vector<1x2x64xf32>
    %651 = vector.shape_cast %650 : vector<1x2x64xf32> to vector<2x64xf32>
    %cst_258 = arith.constant dense<0.000000e+00> : vector<2x256xf32>
    %652 = tpu.matmul %651, %599, %cst_258 {dimension_numbers = #tpu.dot_dimension_numbers<[1], [0], [0], [1], [0, 0, 1, 1], [], []>} : vector<2x64xf32>, vector<64x256xf32>, vector<2x256xf32> -> vector<2x256xf32>
    %653 = vector.broadcast %601 : vector<1x256xf32> to vector<2x256xf32>
    %654 = arith.addf %652, %653 : vector<2x256xf32>
    %c6_259 = arith.constant 6 : index
    %c0_260 = arith.constant 0 : index
    %c0_261 = arith.constant 0 : index
    %655 = vector.load %arg13[%c6_259, %c0_260, %c0_261] : memref<8x2x256xf32, #tpu.memory_space<vmem>>, vector<1x2x256xf32>
    %656 = vector.shape_cast %655 : vector<1x2x256xf32> to vector<2x256xf32>
    %657 = vector.shape_cast %654 : vector<2x256xf32> to vector<1x2x256xf32>
    tpu.vector_store %arg13[%c6_259, %c0_260, %c0_261], %657 {strides = array<i32>} : memref<8x2x256xf32, #tpu.memory_space<vmem>>, vector<1x2x256xf32>,
    %c7_262 = arith.constant 7 : index
    %c0_263 = arith.constant 0 : index
    %c0_264 = arith.constant 0 : index
    %658 = vector.load %arg12[%c7_262, %c0_263, %c0_264] : memref<8x2x64xf32, #tpu.memory_space<vmem>>, vector<1x2x64xf32>
    %659 = vector.shape_cast %658 : vector<1x2x64xf32> to vector<2x64xf32>
    %cst_265 = arith.constant dense<0.000000e+00> : vector<2x256xf32>
    %660 = tpu.matmul %659, %599, %cst_265 {dimension_numbers = #tpu.dot_dimension_numbers<[1], [0], [0], [1], [0, 0, 1, 1], [], []>} : vector<2x64xf32>, vector<64x256xf32>, vector<2x256xf32> -> vector<2x256xf32>
    %661 = vector.broadcast %601 : vector<1x256xf32> to vector<2x256xf32>
    %662 = arith.addf %660, %661 : vector<2x256xf32>
    %c7_266 = arith.constant 7 : index
    %c0_267 = arith.constant 0 : index
    %c0_268 = arith.constant 0 : index
    %663 = vector.load %arg13[%c7_266, %c0_267, %c0_268] : memref<8x2x256xf32, #tpu.memory_space<vmem>>, vector<1x2x256xf32>
    %664 = vector.shape_cast %663 : vector<1x2x256xf32> to vector<2x256xf32>
    %665 = vector.shape_cast %662 : vector<2x256xf32> to vector<1x2x256xf32>
    tpu.vector_store %arg13[%c7_266, %c0_267, %c0_268], %665 {strides = array<i32>} : memref<8x2x256xf32, #tpu.memory_space<vmem>>, vector<1x2x256xf32>,
    %cst_269 = arith.constant 0.000000e+00 : f32
    %666 = vector.broadcast %cst_269 : f32 to vector<2x32xf32>
    %cst_270 = arith.constant 0.000000e+00 : f32
    %667 = vector.broadcast %cst_270 : f32 to vector<2x32xf32>
    %cst_271 = arith.constant 0.000000e+00 : f32
    %668 = vector.broadcast %cst_271 : f32 to vector<2x32xf32>
    %cst_272 = arith.constant 0.000000e+00 : f32
    %669 = vector.broadcast %cst_272 : f32 to vector<2x32xf32>
    %670 = tpu.concatenate %666, %668 in 1 : vector<2x32xf32>, vector<2x32xf32> -> vector<2x64xf32>
    %cst_273 = arith.constant dense<0.000000e+00> : vector<2x256xf32>
    %671 = tpu.matmul %670, %600, %cst_273 {dimension_numbers = #tpu.dot_dimension_numbers<[1], [0], [0], [1], [0, 0, 1, 1], [], []>} : vector<2x64xf32>, vector<64x256xf32>, vector<2x256xf32> -> vector<2x256xf32>
    %672 = vector.extract_strided_slice %671 {offsets = [0, 0], sizes = [2, 128], strides = [1, 1]} : vector<2x256xf32> to vector<2x128xf32>
    %c0_274 = arith.constant 0 : index
    %c0_275 = arith.constant 0 : index
    %c0_276 = arith.constant 0 : index
    %673 = vector.load %arg13[%c0_274, %c0_275, %c0_276] : memref<8x2x256xf32, #tpu.memory_space<vmem>>, vector<1x2x128xf32>
    %674 = vector.shape_cast %673 : vector<1x2x128xf32> to vector<2x128xf32>
    %675 = arith.addf %672, %674 : vector<2x128xf32>
    %676 = vector.extract_strided_slice %671 {offsets = [0, 128], sizes = [2, 128], strides = [1, 1]} : vector<2x256xf32> to vector<2x128xf32>
    %c7_277 = arith.constant 7 : index
    %c0_278 = arith.constant 0 : index
    %c128_279 = arith.constant 128 : index
    %677 = vector.load %arg13[%c7_277, %c0_278, %c128_279] : memref<8x2x256xf32, #tpu.memory_space<vmem>>, vector<1x2x128xf32>
    %678 = vector.shape_cast %677 : vector<1x2x128xf32> to vector<2x128xf32>
    %679 = arith.addf %676, %678 : vector<2x128xf32>
    %680 = vector.extract_strided_slice %675 {offsets = [0, 0], sizes = [2, 32], strides = [1, 1]} : vector<2x128xf32> to vector<2x32xf32>
    %681 = arith.negf %680 : vector<2x32xf32>
    %682 = math.exp %681 : vector<2x32xf32>
    %cst_280 = arith.constant 1.000000e+00 : f32
    %683 = vector.broadcast %cst_280 : f32 to vector<2x32xf32>
    %684 = arith.addf %683, %682 : vector<2x32xf32>
    %685 = arith.divf %683, %684 : vector<2x32xf32>
    %686 = vector.extract_strided_slice %675 {offsets = [0, 32], sizes = [2, 32], strides = [1, 1]} : vector<2x128xf32> to vector<2x32xf32>
    %687 = arith.negf %686 : vector<2x32xf32>
    %688 = math.exp %687 : vector<2x32xf32>
    %cst_281 = arith.constant 1.000000e+00 : f32
    %689 = vector.broadcast %cst_281 : f32 to vector<2x32xf32>
    %690 = arith.addf %689, %688 : vector<2x32xf32>
    %691 = arith.divf %689, %690 : vector<2x32xf32>
    %692 = vector.extract_strided_slice %675 {offsets = [0, 64], sizes = [2, 32], strides = [1, 1]} : vector<2x128xf32> to vector<2x32xf32>
    %693 = math.tanh %692 : vector<2x32xf32>
    %694 = vector.extract_strided_slice %675 {offsets = [0, 96], sizes = [2, 32], strides = [1, 1]} : vector<2x128xf32> to vector<2x32xf32>
    %695 = arith.negf %694 : vector<2x32xf32>
    %696 = math.exp %695 : vector<2x32xf32>
    %cst_282 = arith.constant 1.000000e+00 : f32
    %697 = vector.broadcast %cst_282 : f32 to vector<2x32xf32>
    %698 = arith.addf %697, %696 : vector<2x32xf32>
    %699 = arith.divf %697, %698 : vector<2x32xf32>
    %700 = arith.mulf %691, %667 : vector<2x32xf32>
    %701 = arith.mulf %685, %693 : vector<2x32xf32>
    %702 = arith.addf %700, %701 : vector<2x32xf32>
    %703 = math.tanh %702 : vector<2x32xf32>
    %704 = arith.mulf %699, %703 : vector<2x32xf32>
    %705 = vector.extract_strided_slice %679 {offsets = [0, 0], sizes = [2, 32], strides = [1, 1]} : vector<2x128xf32> to vector<2x32xf32>
    %706 = arith.negf %705 : vector<2x32xf32>
    %707 = math.exp %706 : vector<2x32xf32>
    %cst_283 = arith.constant 1.000000e+00 : f32
    %708 = vector.broadcast %cst_283 : f32 to vector<2x32xf32>
    %709 = arith.addf %708, %707 : vector<2x32xf32>
    %710 = arith.divf %708, %709 : vector<2x32xf32>
    %711 = vector.extract_strided_slice %679 {offsets = [0, 32], sizes = [2, 32], strides = [1, 1]} : vector<2x128xf32> to vector<2x32xf32>
    %712 = arith.negf %711 : vector<2x32xf32>
    %713 = math.exp %712 : vector<2x32xf32>
    %cst_284 = arith.constant 1.000000e+00 : f32
    %714 = vector.broadcast %cst_284 : f32 to vector<2x32xf32>
    %715 = arith.addf %714, %713 : vector<2x32xf32>
    %716 = arith.divf %714, %715 : vector<2x32xf32>
    %717 = vector.extract_strided_slice %679 {offsets = [0, 64], sizes = [2, 32], strides = [1, 1]} : vector<2x128xf32> to vector<2x32xf32>
    %718 = math.tanh %717 : vector<2x32xf32>
    %719 = vector.extract_strided_slice %679 {offsets = [0, 96], sizes = [2, 32], strides = [1, 1]} : vector<2x128xf32> to vector<2x32xf32>
    %720 = arith.negf %719 : vector<2x32xf32>
    %721 = math.exp %720 : vector<2x32xf32>
    %cst_285 = arith.constant 1.000000e+00 : f32
    %722 = vector.broadcast %cst_285 : f32 to vector<2x32xf32>
    %723 = arith.addf %722, %721 : vector<2x32xf32>
    %724 = arith.divf %722, %723 : vector<2x32xf32>
    %725 = arith.mulf %716, %669 : vector<2x32xf32>
    %726 = arith.mulf %710, %718 : vector<2x32xf32>
    %727 = arith.addf %725, %726 : vector<2x32xf32>
    %728 = math.tanh %727 : vector<2x32xf32>
    %729 = arith.mulf %724, %728 : vector<2x32xf32>
    %c0_286 = arith.constant 0 : index
    %c0_287 = arith.constant 0 : index
    %c0_288 = arith.constant 0 : index
    %730 = vector.load %arg12[%c0_286, %c0_287, %c0_288] : memref<8x2x64xf32, #tpu.memory_space<vmem>>, vector<1x2x32xf32>
    %731 = vector.shape_cast %730 : vector<1x2x32xf32> to vector<2x32xf32>
    %732 = vector.shape_cast %704 : vector<2x32xf32> to vector<1x2x32xf32>
    tpu.vector_store %arg12[%c0_286, %c0_287, %c0_288], %732 {strides = array<i32>} : memref<8x2x64xf32, #tpu.memory_space<vmem>>, vector<1x2x32xf32>,
    %c7_289 = arith.constant 7 : index
    %c0_290 = arith.constant 0 : index
    %c32_291 = arith.constant 32 : index
    %733 = vector.load %arg12[%c7_289, %c0_290, %c32_291] : memref<8x2x64xf32, #tpu.memory_space<vmem>>, vector<1x2x32xf32>
    %734 = vector.shape_cast %733 : vector<1x2x32xf32> to vector<2x32xf32>
    %735 = vector.shape_cast %729 : vector<2x32xf32> to vector<1x2x32xf32>
    tpu.vector_store %arg12[%c7_289, %c0_290, %c32_291], %735 {strides = array<i32>} : memref<8x2x64xf32, #tpu.memory_space<vmem>>, vector<1x2x32xf32>,
    %736 = tpu.concatenate %704, %729 in 1 : vector<2x32xf32>, vector<2x32xf32> -> vector<2x64xf32>
    %cst_292 = arith.constant dense<0.000000e+00> : vector<2x256xf32>
    %737 = tpu.matmul %736, %600, %cst_292 {dimension_numbers = #tpu.dot_dimension_numbers<[1], [0], [0], [1], [0, 0, 1, 1], [], []>} : vector<2x64xf32>, vector<64x256xf32>, vector<2x256xf32> -> vector<2x256xf32>
    %738 = vector.extract_strided_slice %737 {offsets = [0, 0], sizes = [2, 128], strides = [1, 1]} : vector<2x256xf32> to vector<2x128xf32>
    %c1_293 = arith.constant 1 : index
    %c0_294 = arith.constant 0 : index
    %c0_295 = arith.constant 0 : index
    %739 = vector.load %arg13[%c1_293, %c0_294, %c0_295] : memref<8x2x256xf32, #tpu.memory_space<vmem>>, vector<1x2x128xf32>
    %740 = vector.shape_cast %739 : vector<1x2x128xf32> to vector<2x128xf32>
    %741 = arith.addf %738, %740 : vector<2x128xf32>
    %742 = vector.extract_strided_slice %737 {offsets = [0, 128], sizes = [2, 128], strides = [1, 1]} : vector<2x256xf32> to vector<2x128xf32>
    %c6_296 = arith.constant 6 : index
    %c0_297 = arith.constant 0 : index
    %c128_298 = arith.constant 128 : index
    %743 = vector.load %arg13[%c6_296, %c0_297, %c128_298] : memref<8x2x256xf32, #tpu.memory_space<vmem>>, vector<1x2x128xf32>
    %744 = vector.shape_cast %743 : vector<1x2x128xf32> to vector<2x128xf32>
    %745 = arith.addf %742, %744 : vector<2x128xf32>
    %746 = vector.extract_strided_slice %741 {offsets = [0, 0], sizes = [2, 32], strides = [1, 1]} : vector<2x128xf32> to vector<2x32xf32>
    %747 = arith.negf %746 : vector<2x32xf32>
    %748 = math.exp %747 : vector<2x32xf32>
    %cst_299 = arith.constant 1.000000e+00 : f32
    %749 = vector.broadcast %cst_299 : f32 to vector<2x32xf32>
    %750 = arith.addf %749, %748 : vector<2x32xf32>
    %751 = arith.divf %749, %750 : vector<2x32xf32>
    %752 = vector.extract_strided_slice %741 {offsets = [0, 32], sizes = [2, 32], strides = [1, 1]} : vector<2x128xf32> to vector<2x32xf32>
    %753 = arith.negf %752 : vector<2x32xf32>
    %754 = math.exp %753 : vector<2x32xf32>
    %cst_300 = arith.constant 1.000000e+00 : f32
    %755 = vector.broadcast %cst_300 : f32 to vector<2x32xf32>
    %756 = arith.addf %755, %754 : vector<2x32xf32>
    %757 = arith.divf %755, %756 : vector<2x32xf32>
    %758 = vector.extract_strided_slice %741 {offsets = [0, 64], sizes = [2, 32], strides = [1, 1]} : vector<2x128xf32> to vector<2x32xf32>
    %759 = math.tanh %758 : vector<2x32xf32>
    %760 = vector.extract_strided_slice %741 {offsets = [0, 96], sizes = [2, 32], strides = [1, 1]} : vector<2x128xf32> to vector<2x32xf32>
    %761 = arith.negf %760 : vector<2x32xf32>
    %762 = math.exp %761 : vector<2x32xf32>
    %cst_301 = arith.constant 1.000000e+00 : f32
    %763 = vector.broadcast %cst_301 : f32 to vector<2x32xf32>
    %764 = arith.addf %763, %762 : vector<2x32xf32>
    %765 = arith.divf %763, %764 : vector<2x32xf32>
    %766 = arith.mulf %757, %702 : vector<2x32xf32>
    %767 = arith.mulf %751, %759 : vector<2x32xf32>
    %768 = arith.addf %766, %767 : vector<2x32xf32>
    %769 = math.tanh %768 : vector<2x32xf32>
    %770 = arith.mulf %765, %769 : vector<2x32xf32>
    %771 = vector.extract_strided_slice %745 {offsets = [0, 0], sizes = [2, 32], strides = [1, 1]} : vector<2x128xf32> to vector<2x32xf32>
    %772 = arith.negf %771 : vector<2x32xf32>
    %773 = math.exp %772 : vector<2x32xf32>
    %cst_302 = arith.constant 1.000000e+00 : f32
    %774 = vector.broadcast %cst_302 : f32 to vector<2x32xf32>
    %775 = arith.addf %774, %773 : vector<2x32xf32>
    %776 = arith.divf %774, %775 : vector<2x32xf32>
    %777 = vector.extract_strided_slice %745 {offsets = [0, 32], sizes = [2, 32], strides = [1, 1]} : vector<2x128xf32> to vector<2x32xf32>
    %778 = arith.negf %777 : vector<2x32xf32>
    %779 = math.exp %778 : vector<2x32xf32>
    %cst_303 = arith.constant 1.000000e+00 : f32
    %780 = vector.broadcast %cst_303 : f32 to vector<2x32xf32>
    %781 = arith.addf %780, %779 : vector<2x32xf32>
    %782 = arith.divf %780, %781 : vector<2x32xf32>
    %783 = vector.extract_strided_slice %745 {offsets = [0, 64], sizes = [2, 32], strides = [1, 1]} : vector<2x128xf32> to vector<2x32xf32>
    %784 = math.tanh %783 : vector<2x32xf32>
    %785 = vector.extract_strided_slice %745 {offsets = [0, 96], sizes = [2, 32], strides = [1, 1]} : vector<2x128xf32> to vector<2x32xf32>
    %786 = arith.negf %785 : vector<2x32xf32>
    %787 = math.exp %786 : vector<2x32xf32>
    %cst_304 = arith.constant 1.000000e+00 : f32
    %788 = vector.broadcast %cst_304 : f32 to vector<2x32xf32>
    %789 = arith.addf %788, %787 : vector<2x32xf32>
    %790 = arith.divf %788, %789 : vector<2x32xf32>
    %791 = arith.mulf %782, %727 : vector<2x32xf32>
    %792 = arith.mulf %776, %784 : vector<2x32xf32>
    %793 = arith.addf %791, %792 : vector<2x32xf32>
    %794 = math.tanh %793 : vector<2x32xf32>
    %795 = arith.mulf %790, %794 : vector<2x32xf32>
    %c1_305 = arith.constant 1 : index
    %c0_306 = arith.constant 0 : index
    %c0_307 = arith.constant 0 : index
    %796 = vector.load %arg12[%c1_305, %c0_306, %c0_307] : memref<8x2x64xf32, #tpu.memory_space<vmem>>, vector<1x2x32xf32>
    %797 = vector.shape_cast %796 : vector<1x2x32xf32> to vector<2x32xf32>
    %798 = vector.shape_cast %770 : vector<2x32xf32> to vector<1x2x32xf32>
    tpu.vector_store %arg12[%c1_305, %c0_306, %c0_307], %798 {strides = array<i32>} : memref<8x2x64xf32, #tpu.memory_space<vmem>>, vector<1x2x32xf32>,
    %c6_308 = arith.constant 6 : index
    %c0_309 = arith.constant 0 : index
    %c32_310 = arith.constant 32 : index
    %799 = vector.load %arg12[%c6_308, %c0_309, %c32_310] : memref<8x2x64xf32, #tpu.memory_space<vmem>>, vector<1x2x32xf32>
    %800 = vector.shape_cast %799 : vector<1x2x32xf32> to vector<2x32xf32>
    %801 = vector.shape_cast %795 : vector<2x32xf32> to vector<1x2x32xf32>
    tpu.vector_store %arg12[%c6_308, %c0_309, %c32_310], %801 {strides = array<i32>} : memref<8x2x64xf32, #tpu.memory_space<vmem>>, vector<1x2x32xf32>,
    %802 = tpu.concatenate %770, %795 in 1 : vector<2x32xf32>, vector<2x32xf32> -> vector<2x64xf32>
    %cst_311 = arith.constant dense<0.000000e+00> : vector<2x256xf32>
    %803 = tpu.matmul %802, %600, %cst_311 {dimension_numbers = #tpu.dot_dimension_numbers<[1], [0], [0], [1], [0, 0, 1, 1], [], []>} : vector<2x64xf32>, vector<64x256xf32>, vector<2x256xf32> -> vector<2x256xf32>
    %804 = vector.extract_strided_slice %803 {offsets = [0, 0], sizes = [2, 128], strides = [1, 1]} : vector<2x256xf32> to vector<2x128xf32>
    %c2_312 = arith.constant 2 : index
    %c0_313 = arith.constant 0 : index
    %c0_314 = arith.constant 0 : index
    %805 = vector.load %arg13[%c2_312, %c0_313, %c0_314] : memref<8x2x256xf32, #tpu.memory_space<vmem>>, vector<1x2x128xf32>
    %806 = vector.shape_cast %805 : vector<1x2x128xf32> to vector<2x128xf32>
    %807 = arith.addf %804, %806 : vector<2x128xf32>
    %808 = vector.extract_strided_slice %803 {offsets = [0, 128], sizes = [2, 128], strides = [1, 1]} : vector<2x256xf32> to vector<2x128xf32>
    %c5_315 = arith.constant 5 : index
    %c0_316 = arith.constant 0 : index
    %c128_317 = arith.constant 128 : index
    %809 = vector.load %arg13[%c5_315, %c0_316, %c128_317] : memref<8x2x256xf32, #tpu.memory_space<vmem>>, vector<1x2x128xf32>
    %810 = vector.shape_cast %809 : vector<1x2x128xf32> to vector<2x128xf32>
    %811 = arith.addf %808, %810 : vector<2x128xf32>
    %812 = vector.extract_strided_slice %807 {offsets = [0, 0], sizes = [2, 32], strides = [1, 1]} : vector<2x128xf32> to vector<2x32xf32>
    %813 = arith.negf %812 : vector<2x32xf32>
    %814 = math.exp %813 : vector<2x32xf32>
    %cst_318 = arith.constant 1.000000e+00 : f32
    %815 = vector.broadcast %cst_318 : f32 to vector<2x32xf32>
    %816 = arith.addf %815, %814 : vector<2x32xf32>
    %817 = arith.divf %815, %816 : vector<2x32xf32>
    %818 = vector.extract_strided_slice %807 {offsets = [0, 32], sizes = [2, 32], strides = [1, 1]} : vector<2x128xf32> to vector<2x32xf32>
    %819 = arith.negf %818 : vector<2x32xf32>
    %820 = math.exp %819 : vector<2x32xf32>
    %cst_319 = arith.constant 1.000000e+00 : f32
    %821 = vector.broadcast %cst_319 : f32 to vector<2x32xf32>
    %822 = arith.addf %821, %820 : vector<2x32xf32>
    %823 = arith.divf %821, %822 : vector<2x32xf32>
    %824 = vector.extract_strided_slice %807 {offsets = [0, 64], sizes = [2, 32], strides = [1, 1]} : vector<2x128xf32> to vector<2x32xf32>
    %825 = math.tanh %824 : vector<2x32xf32>
    %826 = vector.extract_strided_slice %807 {offsets = [0, 96], sizes = [2, 32], strides = [1, 1]} : vector<2x128xf32> to vector<2x32xf32>
    %827 = arith.negf %826 : vector<2x32xf32>
    %828 = math.exp %827 : vector<2x32xf32>
    %cst_320 = arith.constant 1.000000e+00 : f32
    %829 = vector.broadcast %cst_320 : f32 to vector<2x32xf32>
    %830 = arith.addf %829, %828 : vector<2x32xf32>
    %831 = arith.divf %829, %830 : vector<2x32xf32>
    %832 = arith.mulf %823, %768 : vector<2x32xf32>
    %833 = arith.mulf %817, %825 : vector<2x32xf32>
    %834 = arith.addf %832, %833 : vector<2x32xf32>
    %835 = math.tanh %834 : vector<2x32xf32>
    %836 = arith.mulf %831, %835 : vector<2x32xf32>
    %837 = vector.extract_strided_slice %811 {offsets = [0, 0], sizes = [2, 32], strides = [1, 1]} : vector<2x128xf32> to vector<2x32xf32>
    %838 = arith.negf %837 : vector<2x32xf32>
    %839 = math.exp %838 : vector<2x32xf32>
    %cst_321 = arith.constant 1.000000e+00 : f32
    %840 = vector.broadcast %cst_321 : f32 to vector<2x32xf32>
    %841 = arith.addf %840, %839 : vector<2x32xf32>
    %842 = arith.divf %840, %841 : vector<2x32xf32>
    %843 = vector.extract_strided_slice %811 {offsets = [0, 32], sizes = [2, 32], strides = [1, 1]} : vector<2x128xf32> to vector<2x32xf32>
    %844 = arith.negf %843 : vector<2x32xf32>
    %845 = math.exp %844 : vector<2x32xf32>
    %cst_322 = arith.constant 1.000000e+00 : f32
    %846 = vector.broadcast %cst_322 : f32 to vector<2x32xf32>
    %847 = arith.addf %846, %845 : vector<2x32xf32>
    %848 = arith.divf %846, %847 : vector<2x32xf32>
    %849 = vector.extract_strided_slice %811 {offsets = [0, 64], sizes = [2, 32], strides = [1, 1]} : vector<2x128xf32> to vector<2x32xf32>
    %850 = math.tanh %849 : vector<2x32xf32>
    %851 = vector.extract_strided_slice %811 {offsets = [0, 96], sizes = [2, 32], strides = [1, 1]} : vector<2x128xf32> to vector<2x32xf32>
    %852 = arith.negf %851 : vector<2x32xf32>
    %853 = math.exp %852 : vector<2x32xf32>
    %cst_323 = arith.constant 1.000000e+00 : f32
    %854 = vector.broadcast %cst_323 : f32 to vector<2x32xf32>
    %855 = arith.addf %854, %853 : vector<2x32xf32>
    %856 = arith.divf %854, %855 : vector<2x32xf32>
    %857 = arith.mulf %848, %793 : vector<2x32xf32>
    %858 = arith.mulf %842, %850 : vector<2x32xf32>
    %859 = arith.addf %857, %858 : vector<2x32xf32>
    %860 = math.tanh %859 : vector<2x32xf32>
    %861 = arith.mulf %856, %860 : vector<2x32xf32>
    %c2_324 = arith.constant 2 : index
    %c0_325 = arith.constant 0 : index
    %c0_326 = arith.constant 0 : index
    %862 = vector.load %arg12[%c2_324, %c0_325, %c0_326] : memref<8x2x64xf32, #tpu.memory_space<vmem>>, vector<1x2x32xf32>
    %863 = vector.shape_cast %862 : vector<1x2x32xf32> to vector<2x32xf32>
    %864 = vector.shape_cast %836 : vector<2x32xf32> to vector<1x2x32xf32>
    tpu.vector_store %arg12[%c2_324, %c0_325, %c0_326], %864 {strides = array<i32>} : memref<8x2x64xf32, #tpu.memory_space<vmem>>, vector<1x2x32xf32>,
    %c5_327 = arith.constant 5 : index
    %c0_328 = arith.constant 0 : index
    %c32_329 = arith.constant 32 : index
    %865 = vector.load %arg12[%c5_327, %c0_328, %c32_329] : memref<8x2x64xf32, #tpu.memory_space<vmem>>, vector<1x2x32xf32>
    %866 = vector.shape_cast %865 : vector<1x2x32xf32> to vector<2x32xf32>
    %867 = vector.shape_cast %861 : vector<2x32xf32> to vector<1x2x32xf32>
    tpu.vector_store %arg12[%c5_327, %c0_328, %c32_329], %867 {strides = array<i32>} : memref<8x2x64xf32, #tpu.memory_space<vmem>>, vector<1x2x32xf32>,
    %868 = tpu.concatenate %836, %861 in 1 : vector<2x32xf32>, vector<2x32xf32> -> vector<2x64xf32>
    %cst_330 = arith.constant dense<0.000000e+00> : vector<2x256xf32>
    %869 = tpu.matmul %868, %600, %cst_330 {dimension_numbers = #tpu.dot_dimension_numbers<[1], [0], [0], [1], [0, 0, 1, 1], [], []>} : vector<2x64xf32>, vector<64x256xf32>, vector<2x256xf32> -> vector<2x256xf32>
    %870 = vector.extract_strided_slice %869 {offsets = [0, 0], sizes = [2, 128], strides = [1, 1]} : vector<2x256xf32> to vector<2x128xf32>
    %c3_331 = arith.constant 3 : index
    %c0_332 = arith.constant 0 : index
    %c0_333 = arith.constant 0 : index
    %871 = vector.load %arg13[%c3_331, %c0_332, %c0_333] : memref<8x2x256xf32, #tpu.memory_space<vmem>>, vector<1x2x128xf32>
    %872 = vector.shape_cast %871 : vector<1x2x128xf32> to vector<2x128xf32>
    %873 = arith.addf %870, %872 : vector<2x128xf32>
    %874 = vector.extract_strided_slice %869 {offsets = [0, 128], sizes = [2, 128], strides = [1, 1]} : vector<2x256xf32> to vector<2x128xf32>
    %c4_334 = arith.constant 4 : index
    %c0_335 = arith.constant 0 : index
    %c128_336 = arith.constant 128 : index
    %875 = vector.load %arg13[%c4_334, %c0_335, %c128_336] : memref<8x2x256xf32, #tpu.memory_space<vmem>>, vector<1x2x128xf32>
    %876 = vector.shape_cast %875 : vector<1x2x128xf32> to vector<2x128xf32>
    %877 = arith.addf %874, %876 : vector<2x128xf32>
    %878 = vector.extract_strided_slice %873 {offsets = [0, 0], sizes = [2, 32], strides = [1, 1]} : vector<2x128xf32> to vector<2x32xf32>
    %879 = arith.negf %878 : vector<2x32xf32>
    %880 = math.exp %879 : vector<2x32xf32>
    %cst_337 = arith.constant 1.000000e+00 : f32
    %881 = vector.broadcast %cst_337 : f32 to vector<2x32xf32>
    %882 = arith.addf %881, %880 : vector<2x32xf32>
    %883 = arith.divf %881, %882 : vector<2x32xf32>
    %884 = vector.extract_strided_slice %873 {offsets = [0, 32], sizes = [2, 32], strides = [1, 1]} : vector<2x128xf32> to vector<2x32xf32>
    %885 = arith.negf %884 : vector<2x32xf32>
    %886 = math.exp %885 : vector<2x32xf32>
    %cst_338 = arith.constant 1.000000e+00 : f32
    %887 = vector.broadcast %cst_338 : f32 to vector<2x32xf32>
    %888 = arith.addf %887, %886 : vector<2x32xf32>
    %889 = arith.divf %887, %888 : vector<2x32xf32>
    %890 = vector.extract_strided_slice %873 {offsets = [0, 64], sizes = [2, 32], strides = [1, 1]} : vector<2x128xf32> to vector<2x32xf32>
    %891 = math.tanh %890 : vector<2x32xf32>
    %892 = vector.extract_strided_slice %873 {offsets = [0, 96], sizes = [2, 32], strides = [1, 1]} : vector<2x128xf32> to vector<2x32xf32>
    %893 = arith.negf %892 : vector<2x32xf32>
    %894 = math.exp %893 : vector<2x32xf32>
    %cst_339 = arith.constant 1.000000e+00 : f32
    %895 = vector.broadcast %cst_339 : f32 to vector<2x32xf32>
    %896 = arith.addf %895, %894 : vector<2x32xf32>
    %897 = arith.divf %895, %896 : vector<2x32xf32>
    %898 = arith.mulf %889, %834 : vector<2x32xf32>
    %899 = arith.mulf %883, %891 : vector<2x32xf32>
    %900 = arith.addf %898, %899 : vector<2x32xf32>
    %901 = math.tanh %900 : vector<2x32xf32>
    %902 = arith.mulf %897, %901 : vector<2x32xf32>
    %903 = vector.extract_strided_slice %877 {offsets = [0, 0], sizes = [2, 32], strides = [1, 1]} : vector<2x128xf32> to vector<2x32xf32>
    %904 = arith.negf %903 : vector<2x32xf32>
    %905 = math.exp %904 : vector<2x32xf32>
    %cst_340 = arith.constant 1.000000e+00 : f32
    %906 = vector.broadcast %cst_340 : f32 to vector<2x32xf32>
    %907 = arith.addf %906, %905 : vector<2x32xf32>
    %908 = arith.divf %906, %907 : vector<2x32xf32>
    %909 = vector.extract_strided_slice %877 {offsets = [0, 32], sizes = [2, 32], strides = [1, 1]} : vector<2x128xf32> to vector<2x32xf32>
    %910 = arith.negf %909 : vector<2x32xf32>
    %911 = math.exp %910 : vector<2x32xf32>
    %cst_341 = arith.constant 1.000000e+00 : f32
    %912 = vector.broadcast %cst_341 : f32 to vector<2x32xf32>
    %913 = arith.addf %912, %911 : vector<2x32xf32>
    %914 = arith.divf %912, %913 : vector<2x32xf32>
    %915 = vector.extract_strided_slice %877 {offsets = [0, 64], sizes = [2, 32], strides = [1, 1]} : vector<2x128xf32> to vector<2x32xf32>
    %916 = math.tanh %915 : vector<2x32xf32>
    %917 = vector.extract_strided_slice %877 {offsets = [0, 96], sizes = [2, 32], strides = [1, 1]} : vector<2x128xf32> to vector<2x32xf32>
    %918 = arith.negf %917 : vector<2x32xf32>
    %919 = math.exp %918 : vector<2x32xf32>
    %cst_342 = arith.constant 1.000000e+00 : f32
    %920 = vector.broadcast %cst_342 : f32 to vector<2x32xf32>
    %921 = arith.addf %920, %919 : vector<2x32xf32>
    %922 = arith.divf %920, %921 : vector<2x32xf32>
    %923 = arith.mulf %914, %859 : vector<2x32xf32>
    %924 = arith.mulf %908, %916 : vector<2x32xf32>
    %925 = arith.addf %923, %924 : vector<2x32xf32>
    %926 = math.tanh %925 : vector<2x32xf32>
    %927 = arith.mulf %922, %926 : vector<2x32xf32>
    %c3_343 = arith.constant 3 : index
    %c0_344 = arith.constant 0 : index
    %c0_345 = arith.constant 0 : index
    %928 = vector.load %arg12[%c3_343, %c0_344, %c0_345] : memref<8x2x64xf32, #tpu.memory_space<vmem>>, vector<1x2x32xf32>
    %929 = vector.shape_cast %928 : vector<1x2x32xf32> to vector<2x32xf32>
    %930 = vector.shape_cast %902 : vector<2x32xf32> to vector<1x2x32xf32>
    tpu.vector_store %arg12[%c3_343, %c0_344, %c0_345], %930 {strides = array<i32>} : memref<8x2x64xf32, #tpu.memory_space<vmem>>, vector<1x2x32xf32>,
    %c4_346 = arith.constant 4 : index
    %c0_347 = arith.constant 0 : index
    %c32_348 = arith.constant 32 : index
    %931 = vector.load %arg12[%c4_346, %c0_347, %c32_348] : memref<8x2x64xf32, #tpu.memory_space<vmem>>, vector<1x2x32xf32>
    %932 = vector.shape_cast %931 : vector<1x2x32xf32> to vector<2x32xf32>
    %933 = vector.shape_cast %927 : vector<2x32xf32> to vector<1x2x32xf32>
    tpu.vector_store %arg12[%c4_346, %c0_347, %c32_348], %933 {strides = array<i32>} : memref<8x2x64xf32, #tpu.memory_space<vmem>>, vector<1x2x32xf32>,
    %934 = tpu.concatenate %902, %927 in 1 : vector<2x32xf32>, vector<2x32xf32> -> vector<2x64xf32>
    %cst_349 = arith.constant dense<0.000000e+00> : vector<2x256xf32>
    %935 = tpu.matmul %934, %600, %cst_349 {dimension_numbers = #tpu.dot_dimension_numbers<[1], [0], [0], [1], [0, 0, 1, 1], [], []>} : vector<2x64xf32>, vector<64x256xf32>, vector<2x256xf32> -> vector<2x256xf32>
    %936 = vector.extract_strided_slice %935 {offsets = [0, 0], sizes = [2, 128], strides = [1, 1]} : vector<2x256xf32> to vector<2x128xf32>
    %c4_350 = arith.constant 4 : index
    %c0_351 = arith.constant 0 : index
    %c0_352 = arith.constant 0 : index
    %937 = vector.load %arg13[%c4_350, %c0_351, %c0_352] : memref<8x2x256xf32, #tpu.memory_space<vmem>>, vector<1x2x128xf32>
    %938 = vector.shape_cast %937 : vector<1x2x128xf32> to vector<2x128xf32>
    %939 = arith.addf %936, %938 : vector<2x128xf32>
    %940 = vector.extract_strided_slice %935 {offsets = [0, 128], sizes = [2, 128], strides = [1, 1]} : vector<2x256xf32> to vector<2x128xf32>
    %c3_353 = arith.constant 3 : index
    %c0_354 = arith.constant 0 : index
    %c128_355 = arith.constant 128 : index
    %941 = vector.load %arg13[%c3_353, %c0_354, %c128_355] : memref<8x2x256xf32, #tpu.memory_space<vmem>>, vector<1x2x128xf32>
    %942 = vector.shape_cast %941 : vector<1x2x128xf32> to vector<2x128xf32>
    %943 = arith.addf %940, %942 : vector<2x128xf32>
    %944 = vector.extract_strided_slice %939 {offsets = [0, 0], sizes = [2, 32], strides = [1, 1]} : vector<2x128xf32> to vector<2x32xf32>
    %945 = arith.negf %944 : vector<2x32xf32>
    %946 = math.exp %945 : vector<2x32xf32>
    %cst_356 = arith.constant 1.000000e+00 : f32
    %947 = vector.broadcast %cst_356 : f32 to vector<2x32xf32>
    %948 = arith.addf %947, %946 : vector<2x32xf32>
    %949 = arith.divf %947, %948 : vector<2x32xf32>
    %950 = vector.extract_strided_slice %939 {offsets = [0, 32], sizes = [2, 32], strides = [1, 1]} : vector<2x128xf32> to vector<2x32xf32>
    %951 = arith.negf %950 : vector<2x32xf32>
    %952 = math.exp %951 : vector<2x32xf32>
    %cst_357 = arith.constant 1.000000e+00 : f32
    %953 = vector.broadcast %cst_357 : f32 to vector<2x32xf32>
    %954 = arith.addf %953, %952 : vector<2x32xf32>
    %955 = arith.divf %953, %954 : vector<2x32xf32>
    %956 = vector.extract_strided_slice %939 {offsets = [0, 64], sizes = [2, 32], strides = [1, 1]} : vector<2x128xf32> to vector<2x32xf32>
    %957 = math.tanh %956 : vector<2x32xf32>
    %958 = vector.extract_strided_slice %939 {offsets = [0, 96], sizes = [2, 32], strides = [1, 1]} : vector<2x128xf32> to vector<2x32xf32>
    %959 = arith.negf %958 : vector<2x32xf32>
    %960 = math.exp %959 : vector<2x32xf32>
    %cst_358 = arith.constant 1.000000e+00 : f32
    %961 = vector.broadcast %cst_358 : f32 to vector<2x32xf32>
    %962 = arith.addf %961, %960 : vector<2x32xf32>
    %963 = arith.divf %961, %962 : vector<2x32xf32>
    %964 = arith.mulf %955, %900 : vector<2x32xf32>
    %965 = arith.mulf %949, %957 : vector<2x32xf32>
    %966 = arith.addf %964, %965 : vector<2x32xf32>
    %967 = math.tanh %966 : vector<2x32xf32>
    %968 = arith.mulf %963, %967 : vector<2x32xf32>
    %969 = vector.extract_strided_slice %943 {offsets = [0, 0], sizes = [2, 32], strides = [1, 1]} : vector<2x128xf32> to vector<2x32xf32>
    %970 = arith.negf %969 : vector<2x32xf32>
    %971 = math.exp %970 : vector<2x32xf32>
    %cst_359 = arith.constant 1.000000e+00 : f32
    %972 = vector.broadcast %cst_359 : f32 to vector<2x32xf32>
    %973 = arith.addf %972, %971 : vector<2x32xf32>
    %974 = arith.divf %972, %973 : vector<2x32xf32>
    %975 = vector.extract_strided_slice %943 {offsets = [0, 32], sizes = [2, 32], strides = [1, 1]} : vector<2x128xf32> to vector<2x32xf32>
    %976 = arith.negf %975 : vector<2x32xf32>
    %977 = math.exp %976 : vector<2x32xf32>
    %cst_360 = arith.constant 1.000000e+00 : f32
    %978 = vector.broadcast %cst_360 : f32 to vector<2x32xf32>
    %979 = arith.addf %978, %977 : vector<2x32xf32>
    %980 = arith.divf %978, %979 : vector<2x32xf32>
    %981 = vector.extract_strided_slice %943 {offsets = [0, 64], sizes = [2, 32], strides = [1, 1]} : vector<2x128xf32> to vector<2x32xf32>
    %982 = math.tanh %981 : vector<2x32xf32>
    %983 = vector.extract_strided_slice %943 {offsets = [0, 96], sizes = [2, 32], strides = [1, 1]} : vector<2x128xf32> to vector<2x32xf32>
    %984 = arith.negf %983 : vector<2x32xf32>
    %985 = math.exp %984 : vector<2x32xf32>
    %cst_361 = arith.constant 1.000000e+00 : f32
    %986 = vector.broadcast %cst_361 : f32 to vector<2x32xf32>
    %987 = arith.addf %986, %985 : vector<2x32xf32>
    %988 = arith.divf %986, %987 : vector<2x32xf32>
    %989 = arith.mulf %980, %925 : vector<2x32xf32>
    %990 = arith.mulf %974, %982 : vector<2x32xf32>
    %991 = arith.addf %989, %990 : vector<2x32xf32>
    %992 = math.tanh %991 : vector<2x32xf32>
    %993 = arith.mulf %988, %992 : vector<2x32xf32>
    %c4_362 = arith.constant 4 : index
    %c0_363 = arith.constant 0 : index
    %c0_364 = arith.constant 0 : index
    %994 = vector.load %arg12[%c4_362, %c0_363, %c0_364] : memref<8x2x64xf32, #tpu.memory_space<vmem>>, vector<1x2x32xf32>
    %995 = vector.shape_cast %994 : vector<1x2x32xf32> to vector<2x32xf32>
    %996 = vector.shape_cast %968 : vector<2x32xf32> to vector<1x2x32xf32>
    tpu.vector_store %arg12[%c4_362, %c0_363, %c0_364], %996 {strides = array<i32>} : memref<8x2x64xf32, #tpu.memory_space<vmem>>, vector<1x2x32xf32>,
    %c3_365 = arith.constant 3 : index
    %c0_366 = arith.constant 0 : index
    %c32_367 = arith.constant 32 : index
    %997 = vector.load %arg12[%c3_365, %c0_366, %c32_367] : memref<8x2x64xf32, #tpu.memory_space<vmem>>, vector<1x2x32xf32>
    %998 = vector.shape_cast %997 : vector<1x2x32xf32> to vector<2x32xf32>
    %999 = vector.shape_cast %993 : vector<2x32xf32> to vector<1x2x32xf32>
    tpu.vector_store %arg12[%c3_365, %c0_366, %c32_367], %999 {strides = array<i32>} : memref<8x2x64xf32, #tpu.memory_space<vmem>>, vector<1x2x32xf32>,
    %1000 = tpu.concatenate %968, %993 in 1 : vector<2x32xf32>, vector<2x32xf32> -> vector<2x64xf32>
    %cst_368 = arith.constant dense<0.000000e+00> : vector<2x256xf32>
    %1001 = tpu.matmul %1000, %600, %cst_368 {dimension_numbers = #tpu.dot_dimension_numbers<[1], [0], [0], [1], [0, 0, 1, 1], [], []>} : vector<2x64xf32>, vector<64x256xf32>, vector<2x256xf32> -> vector<2x256xf32>
    %1002 = vector.extract_strided_slice %1001 {offsets = [0, 0], sizes = [2, 128], strides = [1, 1]} : vector<2x256xf32> to vector<2x128xf32>
    %c5_369 = arith.constant 5 : index
    %c0_370 = arith.constant 0 : index
    %c0_371 = arith.constant 0 : index
    %1003 = vector.load %arg13[%c5_369, %c0_370, %c0_371] : memref<8x2x256xf32, #tpu.memory_space<vmem>>, vector<1x2x128xf32>
    %1004 = vector.shape_cast %1003 : vector<1x2x128xf32> to vector<2x128xf32>
    %1005 = arith.addf %1002, %1004 : vector<2x128xf32>
    %1006 = vector.extract_strided_slice %1001 {offsets = [0, 128], sizes = [2, 128], strides = [1, 1]} : vector<2x256xf32> to vector<2x128xf32>
    %c2_372 = arith.constant 2 : index
    %c0_373 = arith.constant 0 : index
    %c128_374 = arith.constant 128 : index
    %1007 = vector.load %arg13[%c2_372, %c0_373, %c128_374] : memref<8x2x256xf32, #tpu.memory_space<vmem>>, vector<1x2x128xf32>
    %1008 = vector.shape_cast %1007 : vector<1x2x128xf32> to vector<2x128xf32>
    %1009 = arith.addf %1006, %1008 : vector<2x128xf32>
    %1010 = vector.extract_strided_slice %1005 {offsets = [0, 0], sizes = [2, 32], strides = [1, 1]} : vector<2x128xf32> to vector<2x32xf32>
    %1011 = arith.negf %1010 : vector<2x32xf32>
    %1012 = math.exp %1011 : vector<2x32xf32>
    %cst_375 = arith.constant 1.000000e+00 : f32
    %1013 = vector.broadcast %cst_375 : f32 to vector<2x32xf32>
    %1014 = arith.addf %1013, %1012 : vector<2x32xf32>
    %1015 = arith.divf %1013, %1014 : vector<2x32xf32>
    %1016 = vector.extract_strided_slice %1005 {offsets = [0, 32], sizes = [2, 32], strides = [1, 1]} : vector<2x128xf32> to vector<2x32xf32>
    %1017 = arith.negf %1016 : vector<2x32xf32>
    %1018 = math.exp %1017 : vector<2x32xf32>
    %cst_376 = arith.constant 1.000000e+00 : f32
    %1019 = vector.broadcast %cst_376 : f32 to vector<2x32xf32>
    %1020 = arith.addf %1019, %1018 : vector<2x32xf32>
    %1021 = arith.divf %1019, %1020 : vector<2x32xf32>
    %1022 = vector.extract_strided_slice %1005 {offsets = [0, 64], sizes = [2, 32], strides = [1, 1]} : vector<2x128xf32> to vector<2x32xf32>
    %1023 = math.tanh %1022 : vector<2x32xf32>
    %1024 = vector.extract_strided_slice %1005 {offsets = [0, 96], sizes = [2, 32], strides = [1, 1]} : vector<2x128xf32> to vector<2x32xf32>
    %1025 = arith.negf %1024 : vector<2x32xf32>
    %1026 = math.exp %1025 : vector<2x32xf32>
    %cst_377 = arith.constant 1.000000e+00 : f32
    %1027 = vector.broadcast %cst_377 : f32 to vector<2x32xf32>
    %1028 = arith.addf %1027, %1026 : vector<2x32xf32>
    %1029 = arith.divf %1027, %1028 : vector<2x32xf32>
    %1030 = arith.mulf %1021, %966 : vector<2x32xf32>
    %1031 = arith.mulf %1015, %1023 : vector<2x32xf32>
    %1032 = arith.addf %1030, %1031 : vector<2x32xf32>
    %1033 = math.tanh %1032 : vector<2x32xf32>
    %1034 = arith.mulf %1029, %1033 : vector<2x32xf32>
    %1035 = vector.extract_strided_slice %1009 {offsets = [0, 0], sizes = [2, 32], strides = [1, 1]} : vector<2x128xf32> to vector<2x32xf32>
    %1036 = arith.negf %1035 : vector<2x32xf32>
    %1037 = math.exp %1036 : vector<2x32xf32>
    %cst_378 = arith.constant 1.000000e+00 : f32
    %1038 = vector.broadcast %cst_378 : f32 to vector<2x32xf32>
    %1039 = arith.addf %1038, %1037 : vector<2x32xf32>
    %1040 = arith.divf %1038, %1039 : vector<2x32xf32>
    %1041 = vector.extract_strided_slice %1009 {offsets = [0, 32], sizes = [2, 32], strides = [1, 1]} : vector<2x128xf32> to vector<2x32xf32>
    %1042 = arith.negf %1041 : vector<2x32xf32>
    %1043 = math.exp %1042 : vector<2x32xf32>
    %cst_379 = arith.constant 1.000000e+00 : f32
    %1044 = vector.broadcast %cst_379 : f32 to vector<2x32xf32>
    %1045 = arith.addf %1044, %1043 : vector<2x32xf32>
    %1046 = arith.divf %1044, %1045 : vector<2x32xf32>
    %1047 = vector.extract_strided_slice %1009 {offsets = [0, 64], sizes = [2, 32], strides = [1, 1]} : vector<2x128xf32> to vector<2x32xf32>
    %1048 = math.tanh %1047 : vector<2x32xf32>
    %1049 = vector.extract_strided_slice %1009 {offsets = [0, 96], sizes = [2, 32], strides = [1, 1]} : vector<2x128xf32> to vector<2x32xf32>
    %1050 = arith.negf %1049 : vector<2x32xf32>
    %1051 = math.exp %1050 : vector<2x32xf32>
    %cst_380 = arith.constant 1.000000e+00 : f32
    %1052 = vector.broadcast %cst_380 : f32 to vector<2x32xf32>
    %1053 = arith.addf %1052, %1051 : vector<2x32xf32>
    %1054 = arith.divf %1052, %1053 : vector<2x32xf32>
    %1055 = arith.mulf %1046, %991 : vector<2x32xf32>
    %1056 = arith.mulf %1040, %1048 : vector<2x32xf32>
    %1057 = arith.addf %1055, %1056 : vector<2x32xf32>
    %1058 = math.tanh %1057 : vector<2x32xf32>
    %1059 = arith.mulf %1054, %1058 : vector<2x32xf32>
    %c5_381 = arith.constant 5 : index
    %c0_382 = arith.constant 0 : index
    %c0_383 = arith.constant 0 : index
    %1060 = vector.load %arg12[%c5_381, %c0_382, %c0_383] : memref<8x2x64xf32, #tpu.memory_space<vmem>>, vector<1x2x32xf32>
    %1061 = vector.shape_cast %1060 : vector<1x2x32xf32> to vector<2x32xf32>
    %1062 = vector.shape_cast %1034 : vector<2x32xf32> to vector<1x2x32xf32>
    tpu.vector_store %arg12[%c5_381, %c0_382, %c0_383], %1062 {strides = array<i32>} : memref<8x2x64xf32, #tpu.memory_space<vmem>>, vector<1x2x32xf32>,
    %c2_384 = arith.constant 2 : index
    %c0_385 = arith.constant 0 : index
    %c32_386 = arith.constant 32 : index
    %1063 = vector.load %arg12[%c2_384, %c0_385, %c32_386] : memref<8x2x64xf32, #tpu.memory_space<vmem>>, vector<1x2x32xf32>
    %1064 = vector.shape_cast %1063 : vector<1x2x32xf32> to vector<2x32xf32>
    %1065 = vector.shape_cast %1059 : vector<2x32xf32> to vector<1x2x32xf32>
    tpu.vector_store %arg12[%c2_384, %c0_385, %c32_386], %1065 {strides = array<i32>} : memref<8x2x64xf32, #tpu.memory_space<vmem>>, vector<1x2x32xf32>,
    %1066 = tpu.concatenate %1034, %1059 in 1 : vector<2x32xf32>, vector<2x32xf32> -> vector<2x64xf32>
    %cst_387 = arith.constant dense<0.000000e+00> : vector<2x256xf32>
    %1067 = tpu.matmul %1066, %600, %cst_387 {dimension_numbers = #tpu.dot_dimension_numbers<[1], [0], [0], [1], [0, 0, 1, 1], [], []>} : vector<2x64xf32>, vector<64x256xf32>, vector<2x256xf32> -> vector<2x256xf32>
    %1068 = vector.extract_strided_slice %1067 {offsets = [0, 0], sizes = [2, 128], strides = [1, 1]} : vector<2x256xf32> to vector<2x128xf32>
    %c6_388 = arith.constant 6 : index
    %c0_389 = arith.constant 0 : index
    %c0_390 = arith.constant 0 : index
    %1069 = vector.load %arg13[%c6_388, %c0_389, %c0_390] : memref<8x2x256xf32, #tpu.memory_space<vmem>>, vector<1x2x128xf32>
    %1070 = vector.shape_cast %1069 : vector<1x2x128xf32> to vector<2x128xf32>
    %1071 = arith.addf %1068, %1070 : vector<2x128xf32>
    %1072 = vector.extract_strided_slice %1067 {offsets = [0, 128], sizes = [2, 128], strides = [1, 1]} : vector<2x256xf32> to vector<2x128xf32>
    %c1_391 = arith.constant 1 : index
    %c0_392 = arith.constant 0 : index
    %c128_393 = arith.constant 128 : index
    %1073 = vector.load %arg13[%c1_391, %c0_392, %c128_393] : memref<8x2x256xf32, #tpu.memory_space<vmem>>, vector<1x2x128xf32>
    %1074 = vector.shape_cast %1073 : vector<1x2x128xf32> to vector<2x128xf32>
    %1075 = arith.addf %1072, %1074 : vector<2x128xf32>
    %1076 = vector.extract_strided_slice %1071 {offsets = [0, 0], sizes = [2, 32], strides = [1, 1]} : vector<2x128xf32> to vector<2x32xf32>
    %1077 = arith.negf %1076 : vector<2x32xf32>
    %1078 = math.exp %1077 : vector<2x32xf32>
    %cst_394 = arith.constant 1.000000e+00 : f32
    %1079 = vector.broadcast %cst_394 : f32 to vector<2x32xf32>
    %1080 = arith.addf %1079, %1078 : vector<2x32xf32>
    %1081 = arith.divf %1079, %1080 : vector<2x32xf32>
    %1082 = vector.extract_strided_slice %1071 {offsets = [0, 32], sizes = [2, 32], strides = [1, 1]} : vector<2x128xf32> to vector<2x32xf32>
    %1083 = arith.negf %1082 : vector<2x32xf32>
    %1084 = math.exp %1083 : vector<2x32xf32>
    %cst_395 = arith.constant 1.000000e+00 : f32
    %1085 = vector.broadcast %cst_395 : f32 to vector<2x32xf32>
    %1086 = arith.addf %1085, %1084 : vector<2x32xf32>
    %1087 = arith.divf %1085, %1086 : vector<2x32xf32>
    %1088 = vector.extract_strided_slice %1071 {offsets = [0, 64], sizes = [2, 32], strides = [1, 1]} : vector<2x128xf32> to vector<2x32xf32>
    %1089 = math.tanh %1088 : vector<2x32xf32>
    %1090 = vector.extract_strided_slice %1071 {offsets = [0, 96], sizes = [2, 32], strides = [1, 1]} : vector<2x128xf32> to vector<2x32xf32>
    %1091 = arith.negf %1090 : vector<2x32xf32>
    %1092 = math.exp %1091 : vector<2x32xf32>
    %cst_396 = arith.constant 1.000000e+00 : f32
    %1093 = vector.broadcast %cst_396 : f32 to vector<2x32xf32>
    %1094 = arith.addf %1093, %1092 : vector<2x32xf32>
    %1095 = arith.divf %1093, %1094 : vector<2x32xf32>
    %1096 = arith.mulf %1087, %1032 : vector<2x32xf32>
    %1097 = arith.mulf %1081, %1089 : vector<2x32xf32>
    %1098 = arith.addf %1096, %1097 : vector<2x32xf32>
    %1099 = math.tanh %1098 : vector<2x32xf32>
    %1100 = arith.mulf %1095, %1099 : vector<2x32xf32>
    %1101 = vector.extract_strided_slice %1075 {offsets = [0, 0], sizes = [2, 32], strides = [1, 1]} : vector<2x128xf32> to vector<2x32xf32>
    %1102 = arith.negf %1101 : vector<2x32xf32>
    %1103 = math.exp %1102 : vector<2x32xf32>
    %cst_397 = arith.constant 1.000000e+00 : f32
    %1104 = vector.broadcast %cst_397 : f32 to vector<2x32xf32>
    %1105 = arith.addf %1104, %1103 : vector<2x32xf32>
    %1106 = arith.divf %1104, %1105 : vector<2x32xf32>
    %1107 = vector.extract_strided_slice %1075 {offsets = [0, 32], sizes = [2, 32], strides = [1, 1]} : vector<2x128xf32> to vector<2x32xf32>
    %1108 = arith.negf %1107 : vector<2x32xf32>
    %1109 = math.exp %1108 : vector<2x32xf32>
    %cst_398 = arith.constant 1.000000e+00 : f32
    %1110 = vector.broadcast %cst_398 : f32 to vector<2x32xf32>
    %1111 = arith.addf %1110, %1109 : vector<2x32xf32>
    %1112 = arith.divf %1110, %1111 : vector<2x32xf32>
    %1113 = vector.extract_strided_slice %1075 {offsets = [0, 64], sizes = [2, 32], strides = [1, 1]} : vector<2x128xf32> to vector<2x32xf32>
    %1114 = math.tanh %1113 : vector<2x32xf32>
    %1115 = vector.extract_strided_slice %1075 {offsets = [0, 96], sizes = [2, 32], strides = [1, 1]} : vector<2x128xf32> to vector<2x32xf32>
    %1116 = arith.negf %1115 : vector<2x32xf32>
    %1117 = math.exp %1116 : vector<2x32xf32>
    %cst_399 = arith.constant 1.000000e+00 : f32
    %1118 = vector.broadcast %cst_399 : f32 to vector<2x32xf32>
    %1119 = arith.addf %1118, %1117 : vector<2x32xf32>
    %1120 = arith.divf %1118, %1119 : vector<2x32xf32>
    %1121 = arith.mulf %1112, %1057 : vector<2x32xf32>
    %1122 = arith.mulf %1106, %1114 : vector<2x32xf32>
    %1123 = arith.addf %1121, %1122 : vector<2x32xf32>
    %1124 = math.tanh %1123 : vector<2x32xf32>
    %1125 = arith.mulf %1120, %1124 : vector<2x32xf32>
    %c6_400 = arith.constant 6 : index
    %c0_401 = arith.constant 0 : index
    %c0_402 = arith.constant 0 : index
    %1126 = vector.load %arg12[%c6_400, %c0_401, %c0_402] : memref<8x2x64xf32, #tpu.memory_space<vmem>>, vector<1x2x32xf32>
    %1127 = vector.shape_cast %1126 : vector<1x2x32xf32> to vector<2x32xf32>
    %1128 = vector.shape_cast %1100 : vector<2x32xf32> to vector<1x2x32xf32>
    tpu.vector_store %arg12[%c6_400, %c0_401, %c0_402], %1128 {strides = array<i32>} : memref<8x2x64xf32, #tpu.memory_space<vmem>>, vector<1x2x32xf32>,
    %c1_403 = arith.constant 1 : index
    %c0_404 = arith.constant 0 : index
    %c32_405 = arith.constant 32 : index
    %1129 = vector.load %arg12[%c1_403, %c0_404, %c32_405] : memref<8x2x64xf32, #tpu.memory_space<vmem>>, vector<1x2x32xf32>
    %1130 = vector.shape_cast %1129 : vector<1x2x32xf32> to vector<2x32xf32>
    %1131 = vector.shape_cast %1125 : vector<2x32xf32> to vector<1x2x32xf32>
    tpu.vector_store %arg12[%c1_403, %c0_404, %c32_405], %1131 {strides = array<i32>} : memref<8x2x64xf32, #tpu.memory_space<vmem>>, vector<1x2x32xf32>,
    %1132 = tpu.concatenate %1100, %1125 in 1 : vector<2x32xf32>, vector<2x32xf32> -> vector<2x64xf32>
    %cst_406 = arith.constant dense<0.000000e+00> : vector<2x256xf32>
    %1133 = tpu.matmul %1132, %600, %cst_406 {dimension_numbers = #tpu.dot_dimension_numbers<[1], [0], [0], [1], [0, 0, 1, 1], [], []>} : vector<2x64xf32>, vector<64x256xf32>, vector<2x256xf32> -> vector<2x256xf32>
    %1134 = vector.extract_strided_slice %1133 {offsets = [0, 0], sizes = [2, 128], strides = [1, 1]} : vector<2x256xf32> to vector<2x128xf32>
    %c7_407 = arith.constant 7 : index
    %c0_408 = arith.constant 0 : index
    %c0_409 = arith.constant 0 : index
    %1135 = vector.load %arg13[%c7_407, %c0_408, %c0_409] : memref<8x2x256xf32, #tpu.memory_space<vmem>>, vector<1x2x128xf32>
    %1136 = vector.shape_cast %1135 : vector<1x2x128xf32> to vector<2x128xf32>
    %1137 = arith.addf %1134, %1136 : vector<2x128xf32>
    %1138 = vector.extract_strided_slice %1133 {offsets = [0, 128], sizes = [2, 128], strides = [1, 1]} : vector<2x256xf32> to vector<2x128xf32>
    %c0_410 = arith.constant 0 : index
    %c0_411 = arith.constant 0 : index
    %c128_412 = arith.constant 128 : index
    %1139 = vector.load %arg13[%c0_410, %c0_411, %c128_412] : memref<8x2x256xf32, #tpu.memory_space<vmem>>, vector<1x2x128xf32>
    %1140 = vector.shape_cast %1139 : vector<1x2x128xf32> to vector<2x128xf32>
    %1141 = arith.addf %1138, %1140 : vector<2x128xf32>
    %1142 = vector.extract_strided_slice %1137 {offsets = [0, 0], sizes = [2, 32], strides = [1, 1]} : vector<2x128xf32> to vector<2x32xf32>
    %1143 = arith.negf %1142 : vector<2x32xf32>
    %1144 = math.exp %1143 : vector<2x32xf32>
    %cst_413 = arith.constant 1.000000e+00 : f32
    %1145 = vector.broadcast %cst_413 : f32 to vector<2x32xf32>
    %1146 = arith.addf %1145, %1144 : vector<2x32xf32>
    %1147 = arith.divf %1145, %1146 : vector<2x32xf32>
    %1148 = vector.extract_strided_slice %1137 {offsets = [0, 32], sizes = [2, 32], strides = [1, 1]} : vector<2x128xf32> to vector<2x32xf32>
    %1149 = arith.negf %1148 : vector<2x32xf32>
    %1150 = math.exp %1149 : vector<2x32xf32>
    %cst_414 = arith.constant 1.000000e+00 : f32
    %1151 = vector.broadcast %cst_414 : f32 to vector<2x32xf32>
    %1152 = arith.addf %1151, %1150 : vector<2x32xf32>
    %1153 = arith.divf %1151, %1152 : vector<2x32xf32>
    %1154 = vector.extract_strided_slice %1137 {offsets = [0, 64], sizes = [2, 32], strides = [1, 1]} : vector<2x128xf32> to vector<2x32xf32>
    %1155 = math.tanh %1154 : vector<2x32xf32>
    %1156 = vector.extract_strided_slice %1137 {offsets = [0, 96], sizes = [2, 32], strides = [1, 1]} : vector<2x128xf32> to vector<2x32xf32>
    %1157 = arith.negf %1156 : vector<2x32xf32>
    %1158 = math.exp %1157 : vector<2x32xf32>
    %cst_415 = arith.constant 1.000000e+00 : f32
    %1159 = vector.broadcast %cst_415 : f32 to vector<2x32xf32>
    %1160 = arith.addf %1159, %1158 : vector<2x32xf32>
    %1161 = arith.divf %1159, %1160 : vector<2x32xf32>
    %1162 = arith.mulf %1153, %1098 : vector<2x32xf32>
    %1163 = arith.mulf %1147, %1155 : vector<2x32xf32>
    %1164 = arith.addf %1162, %1163 : vector<2x32xf32>
    %1165 = math.tanh %1164 : vector<2x32xf32>
    %1166 = arith.mulf %1161, %1165 : vector<2x32xf32>
    %1167 = vector.extract_strided_slice %1141 {offsets = [0, 0], sizes = [2, 32], strides = [1, 1]} : vector<2x128xf32> to vector<2x32xf32>
    %1168 = arith.negf %1167 : vector<2x32xf32>
    %1169 = math.exp %1168 : vector<2x32xf32>
    %cst_416 = arith.constant 1.000000e+00 : f32
    %1170 = vector.broadcast %cst_416 : f32 to vector<2x32xf32>
    %1171 = arith.addf %1170, %1169 : vector<2x32xf32>
    %1172 = arith.divf %1170, %1171 : vector<2x32xf32>
    %1173 = vector.extract_strided_slice %1141 {offsets = [0, 32], sizes = [2, 32], strides = [1, 1]} : vector<2x128xf32> to vector<2x32xf32>
    %1174 = arith.negf %1173 : vector<2x32xf32>
    %1175 = math.exp %1174 : vector<2x32xf32>
    %cst_417 = arith.constant 1.000000e+00 : f32
    %1176 = vector.broadcast %cst_417 : f32 to vector<2x32xf32>
    %1177 = arith.addf %1176, %1175 : vector<2x32xf32>
    %1178 = arith.divf %1176, %1177 : vector<2x32xf32>
    %1179 = vector.extract_strided_slice %1141 {offsets = [0, 64], sizes = [2, 32], strides = [1, 1]} : vector<2x128xf32> to vector<2x32xf32>
    %1180 = math.tanh %1179 : vector<2x32xf32>
    %1181 = vector.extract_strided_slice %1141 {offsets = [0, 96], sizes = [2, 32], strides = [1, 1]} : vector<2x128xf32> to vector<2x32xf32>
    %1182 = arith.negf %1181 : vector<2x32xf32>
    %1183 = math.exp %1182 : vector<2x32xf32>
    %cst_418 = arith.constant 1.000000e+00 : f32
    %1184 = vector.broadcast %cst_418 : f32 to vector<2x32xf32>
    %1185 = arith.addf %1184, %1183 : vector<2x32xf32>
    %1186 = arith.divf %1184, %1185 : vector<2x32xf32>
    %1187 = arith.mulf %1178, %1123 : vector<2x32xf32>
    %1188 = arith.mulf %1172, %1180 : vector<2x32xf32>
    %1189 = arith.addf %1187, %1188 : vector<2x32xf32>
    %1190 = math.tanh %1189 : vector<2x32xf32>
    %1191 = arith.mulf %1186, %1190 : vector<2x32xf32>
    %c7_419 = arith.constant 7 : index
    %c0_420 = arith.constant 0 : index
    %c0_421 = arith.constant 0 : index
    %1192 = vector.load %arg12[%c7_419, %c0_420, %c0_421] : memref<8x2x64xf32, #tpu.memory_space<vmem>>, vector<1x2x32xf32>
    %1193 = vector.shape_cast %1192 : vector<1x2x32xf32> to vector<2x32xf32>
    %1194 = vector.shape_cast %1166 : vector<2x32xf32> to vector<1x2x32xf32>
    tpu.vector_store %arg12[%c7_419, %c0_420, %c0_421], %1194 {strides = array<i32>} : memref<8x2x64xf32, #tpu.memory_space<vmem>>, vector<1x2x32xf32>,
    %c0_422 = arith.constant 0 : index
    %c0_423 = arith.constant 0 : index
    %c32_424 = arith.constant 32 : index
    %1195 = vector.load %arg12[%c0_422, %c0_423, %c32_424] : memref<8x2x64xf32, #tpu.memory_space<vmem>>, vector<1x2x32xf32>
    %1196 = vector.shape_cast %1195 : vector<1x2x32xf32> to vector<2x32xf32>
    %1197 = vector.shape_cast %1191 : vector<2x32xf32> to vector<1x2x32xf32>
    tpu.vector_store %arg12[%c0_422, %c0_423, %c32_424], %1197 {strides = array<i32>} : memref<8x2x64xf32, #tpu.memory_space<vmem>>, vector<1x2x32xf32>,
    %c0_425 = arith.constant 0 : index
    %c0_426 = arith.constant 0 : index
    %c0_427 = arith.constant 0 : index
    %1198 = vector.load %arg12[%c0_425, %c0_426, %c0_427] : memref<8x2x64xf32, #tpu.memory_space<vmem>>, vector<8x2x64xf32>
    %c0_428 = arith.constant 0 : index
    %c0_429 = arith.constant 0 : index
    %1199 = vector.load %arg7[%c0_428, %c0_429] : memref<1x64xf32, #tpu.memory_space<vmem>>, vector<1x64xf32>
    %1200 = vector.shape_cast %1199 : vector<1x64xf32> to vector<1x1x64xf32>
    %1201 = vector.broadcast %1200 : vector<1x1x64xf32> to vector<8x2x64xf32>
    %1202 = arith.mulf %1198, %1201 : vector<8x2x64xf32>
    %cst_430 = arith.constant dense<0.000000e+00> : vector<8x2xf32>
    %1203 = vector.multi_reduction <add>, %1202, %cst_430 [2] : vector<8x2x64xf32> to vector<8x2xf32>
    %1204 = vector.shape_cast %1203 : vector<8x2xf32> to vector<8x2x1xf32>
    %c0_431 = arith.constant 0 : index
    %c0_432 = arith.constant 0 : index
    %1205 = vector.load %arg8[%c0_431, %c0_432] : memref<1x1xf32, #tpu.memory_space<vmem>>, vector<1x1xf32>
    %1206 = vector.shape_cast %1205 : vector<1x1xf32> to vector<1x1x1xf32>
    %1207 = vector.broadcast %1206 : vector<1x1x1xf32> to vector<8x2x1xf32>
    %1208 = arith.addf %1204, %1207 : vector<8x2x1xf32>
    %cst_433 = arith.constant dense<0xFF800000> : vector<2x1xf32>
    %1209 = vector.multi_reduction <maximumf>, %1208, %cst_433 [0] : vector<8x2x1xf32> to vector<2x1xf32>
    %1210 = vector.shape_cast %1209 : vector<2x1xf32> to vector<1x2x1xf32>
    %1211 = vector.broadcast %1210 : vector<1x2x1xf32> to vector<8x2x1xf32>
    %1212 = arith.subf %1208, %1211 : vector<8x2x1xf32>
    %1213 = math.exp %1212 : vector<8x2x1xf32>
    %cst_434 = arith.constant dense<0.000000e+00> : vector<2x1xf32>
    %1214 = vector.multi_reduction <add>, %1213, %cst_434 [0] : vector<8x2x1xf32> to vector<2x1xf32>
    %1215 = vector.shape_cast %1214 : vector<2x1xf32> to vector<1x2x1xf32>
    %1216 = vector.broadcast %1215 : vector<1x2x1xf32> to vector<8x2x1xf32>
    %1217 = arith.divf %1213, %1216 : vector<8x2x1xf32>
    %1218 = vector.broadcast %1217 : vector<8x2x1xf32> to vector<8x2x64xf32>
    %1219 = arith.mulf %1198, %1218 : vector<8x2x64xf32>
    %cst_435 = arith.constant dense<0.000000e+00> : vector<2x64xf32>
    %1220 = vector.multi_reduction <add>, %1219, %cst_435 [0] : vector<8x2x64xf32> to vector<2x64xf32>
    %c0_436 = arith.constant 0 : index
    %c0_437 = arith.constant 0 : index
    %1221 = vector.load %arg9[%c0_436, %c0_437] : memref<64x1xf32, #tpu.memory_space<vmem>>, vector<64x1xf32>
    %cst_438 = arith.constant dense<0.000000e+00> : vector<2x1xf32>
    %1222 = tpu.matmul %1220, %1221, %cst_438 {dimension_numbers = #tpu.dot_dimension_numbers<[1], [0], [0], [1], [0, 0, 1, 1], [], []>} : vector<2x64xf32>, vector<64x1xf32>, vector<2x1xf32> -> vector<2x1xf32>
    %c0_439 = arith.constant 0 : index
    %c0_440 = arith.constant 0 : index
    %1223 = vector.load %arg10[%c0_439, %c0_440] : memref<1x1xf32, #tpu.memory_space<vmem>>, vector<1x1xf32>
    %1224 = vector.broadcast %1223 : vector<1x1xf32> to vector<2x1xf32>
    %1225 = arith.addf %1222, %1224 : vector<2x1xf32>
    %1226 = arith.negf %1225 : vector<2x1xf32>
    %1227 = math.exp %1226 : vector<2x1xf32>
    %cst_441 = arith.constant 1.000000e+00 : f32
    %1228 = vector.broadcast %cst_441 : f32 to vector<2x1xf32>
    %1229 = arith.addf %1228, %1227 : vector<2x1xf32>
    %1230 = arith.divf %1228, %1229 : vector<2x1xf32>
    %c0_442 = arith.constant 0 : index
    %c0_443 = arith.constant 0 : index
    %1231 = vector.load %arg11[%c0_442, %c0_443] : memref<2x1xf32, #tpu.memory_space<vmem>>, vector<2x1xf32>
    tpu.vector_store %arg11[%c0_442, %c0_443], %1230 {strides = array<i32>} : memref<2x1xf32, #tpu.memory_space<vmem>>, vector<2x1xf32>,
    return
  }
}

</mosaic_0001>

<llo_original>
// kernel: advanced_lstm_forward.1
$region0: #{advanced_lstm_forward.1}
  #allocation0 [shape = 'u32[]', space=smem, size = 0x4, offset = 0x4, fixed_abs, tag = 'smem constant byte address 0x4 - core index']
  #allocation1 [shape = 'u32[144,128]{1,0:T(1,128)}', space=vmem, size = 0x12000, scoped, tag = 'internal scratch']
  #allocation2 [shape = 'f32[8,2,64]{2,1,0:T(2,128)}', space=vmem, size = 0x2000, scoped, tag = 'scratch operand']
  #allocation3 [shape = 'f32[8,2,256]{2,1,0:T(2,128)}', space=vmem, size = 0x4000, scoped, tag = 'scratch operand']
  #allocation4 [shape = 'f32[1,1]{1,0:T(1,128)S(1)}', space=vmem, size = 0x200, scoped, tag = 'scoped memory for advanced_lstm_forward.1']
  #allocation5 [shape = 'f32[1,1]{1,0:T(1,128)S(1)}', space=vmem, size = 0x200, scoped, tag = 'scoped memory for advanced_lstm_forward.1']
  %s0 = inlined_call_operand.vmem [shape: f32[8,2,4], index: 0, kind: input, shape index: {}]
  %s1 = inlined_call_operand.vmem [shape: f32[4,256], index: 1, kind: input, shape index: {}]
  %s2 = inlined_call_operand.hbm [shape: f32[64,256], index: 2, kind: input, shape index: {}]
  %s3 = inlined_call_operand.vmem [shape: f32[1,256], index: 3, kind: input, shape index: {}]
  %s4 = inlined_call_operand.hbm [shape: f32[64,256], index: 4, kind: input, shape index: {}]
  %s5 = inlined_call_operand.hbm [shape: f32[64,256], index: 5, kind: input, shape index: {}]
  %s6 = inlined_call_operand.vmem [shape: f32[1,256], index: 6, kind: input, shape index: {}]
  %s7 = inlined_call_operand.vmem [shape: f32[1,64], index: 7, kind: input, shape index: {}]
  %s8 = inlined_call_operand.<no memory space> [shape: f32[1,1], index: 8, kind: input, shape index: {}]
  %s9 = inlined_call_operand.vmem [shape: f32[64,1], index: 9, kind: input, shape index: {}]
  %s10 = inlined_call_operand.<no memory space> [shape: f32[1,1], index: 10, kind: input, shape index: {}]
  %s11 = inlined_call_operand.vmem [shape: f32[2,1], index: 11, kind: output, shape index: {}]
  %s12 = sld [smem:[#allocation0]]
  $region66: #{advanced_lstm_forward.1} parent=0
    _
  %s14 = ssub.s32 1, %s12
  %s15 = scalar_select 0, %s14, %s12
  %v16 = vstv %s8
  %17 = vst [vmem:[#allocation4] sm:$0x1] %v16
  %v18 = vstv %s10
  %19 = vst [vmem:[#allocation5] sm:$0x1] %v18
  $region1: #{advanced_lstm_forward.1} parent=0
    #allocation6 [shape = 'u8[65536]{0}', space=vmem, size = 0x10000, scoped, tag = 'input window, operand 2, single buffered']
    #allocation7 [shape = 's32[1]{0}', space=sflag, size = 0x4, scoped, tag = 'scoped memory for advanced_lstm_forward.1']
    #allocation8 [shape = 'u8[65536]{0}', space=vmem, size = 0x10000, scoped, tag = 'input window, operand 4, single buffered']
    #allocation9 [shape = 's32[1]{0}', space=sflag, size = 0x4, scoped, tag = 'scoped memory for advanced_lstm_forward.1']
    #allocation10 [shape = 'u8[65536]{0}', space=vmem, size = 0x10000, scoped, tag = 'input window, operand 5, single buffered']
    %20 = vsyncpa [#allocation7], 0
    %21 = vsyncpa [#allocation9], 0
    // Predicated region
    $region2: #{advanced_lstm_forward.1} parent=1 // pred_check
      _
    $region3: #{advanced_lstm_forward.1} parent=1 // pred_check_branch
      %23 = sbr.rel (0) target = $region5
    $region4: #{advanced_lstm_forward.1} parent=1 // pred_region
      _
    $region5: #{advanced_lstm_forward.1} parent=1 // pred_fallthru
      _
    // Predicated region
    $region6: #{advanced_lstm_forward.1} parent=1 // pred_check
      _
    $region7: #{advanced_lstm_forward.1} parent=1 // pred_check_branch
      %25 = sbr.rel (0) target = $region9
    $region8: #{advanced_lstm_forward.1} parent=1 // pred_region
      _
    $region9: #{advanced_lstm_forward.1} parent=1 // pred_fallthru
      _
    // Predicated region
    $region10: #{advanced_lstm_forward.1} parent=1 // pred_check
      _
    $region11: #{advanced_lstm_forward.1} parent=1 // pred_check_branch
      %27 = sbr.rel (0) target = $region13
    $region12: #{advanced_lstm_forward.1} parent=1 // pred_region
      %s29 = ssub.s32 2048, 2048
      %30 = vsyncadd [#allocation7], %s29
      %s31 = sshll.u32 [#allocation6], 4
      %s32 = int_to_ptr.vmem [resolvable:$true] %s31
      %37 = dma.hbm_to_vmem [thread:$0]  %s2, 2048, %s32, [#allocation7], 256, 256, 16
    $region13: #{advanced_lstm_forward.1} parent=1 // pred_fallthru
      _
    // Predicated region
    $region14: #{advanced_lstm_forward.1} parent=1 // pred_check
      _
    $region15: #{advanced_lstm_forward.1} parent=1 // pred_check_branch
      %39 = sbr.rel (0) target = $region17
    $region16: #{advanced_lstm_forward.1} parent=1 // pred_region
      _
    $region17: #{advanced_lstm_forward.1} parent=1 // pred_fallthru
      _
    // Predicated region
    $region18: #{advanced_lstm_forward.1} parent=1 // pred_check
      _
    $region19: #{advanced_lstm_forward.1} parent=1 // pred_check_branch
      %41 = sbr.rel (0) target = $region21
    $region20: #{advanced_lstm_forward.1} parent=1 // pred_region
      %s43 = ssub.s32 2048, 2048
      %44 = vsyncadd [#allocation9], %s43
      %s45 = sshll.u32 [#allocation8], 4
      %s46 = int_to_ptr.vmem [resolvable:$true] %s45
      %51 = dma.hbm_to_vmem [thread:$0]  %s4, 2048, %s46, [#allocation9], 256, 256, 16
    $region21: #{advanced_lstm_forward.1} parent=1 // pred_fallthru
      _
    // Predicated region
    $region22: #{advanced_lstm_forward.1} parent=1 // pred_check
      _
    $region23: #{advanced_lstm_forward.1} parent=1 // pred_check_branch
      %53 = sbr.rel (0) target = $region25
    $region24: #{advanced_lstm_forward.1} parent=1 // pred_region
      %s55 = ssub.s32 2048, 2048
      %56 = vsyncadd [#allocation9], %s55
      %s57 = sshll.u32 [#allocation10], 4
      %s58 = int_to_ptr.vmem [resolvable:$true] %s57
      %63 = dma.hbm_to_vmem [thread:$0]  %s5, 2048, %s58, [#allocation9], 256, 256, 16
    $region25: #{advanced_lstm_forward.1} parent=1 // pred_fallthru
      _
    // Predicated region
    $region26: #{advanced_lstm_forward.1} parent=1 // pred_check
      _
    $region27: #{advanced_lstm_forward.1} parent=1 // pred_check_branch
      %65 = sbr.rel (0) target = $region29
    $region28: #{advanced_lstm_forward.1} parent=1 // pred_region
      _
    $region29: #{advanced_lstm_forward.1} parent=1 // pred_fallthru
      _
    // Predicated region
    $region30: #{advanced_lstm_forward.1} parent=1 // pred_check
      _
    $region31: #{advanced_lstm_forward.1} parent=1 // pred_check_branch
      %67 = sbr.rel (0) target = $region33
    $region32: #{advanced_lstm_forward.1} parent=1 // pred_region
      _
    $region33: #{advanced_lstm_forward.1} parent=1 // pred_fallthru
      _
    // Predicated region
    $region34: #{advanced_lstm_forward.1} parent=1 // pred_check
      _
    $region35: #{advanced_lstm_forward.1} parent=1 // pred_check_branch
      %69 = sbr.rel (0) target = $region37
    $region36: #{advanced_lstm_forward.1} parent=1 // pred_region
      _
    $region37: #{advanced_lstm_forward.1} parent=1 // pred_fallthru
      _
    // Predicated region
    $region38: #{advanced_lstm_forward.1} parent=1 // pred_check
      _
    $region39: #{advanced_lstm_forward.1} parent=1 // pred_check_branch
      %71 = sbr.rel (0) target = $region41
    $region40: #{advanced_lstm_forward.1} parent=1 // pred_region
      _
    $region41: #{advanced_lstm_forward.1} parent=1 // pred_fallthru
      _
    // Predicated region
    $region42: #{advanced_lstm_forward.1} parent=1 // pred_check
      _
    $region43: #{advanced_lstm_forward.1} parent=1 // pred_check_branch
      %73 = sbr.rel (0) target = $region45
    $region44: #{advanced_lstm_forward.1} parent=1 // pred_region
      _
    $region45: #{advanced_lstm_forward.1} parent=1 // pred_fallthru
      _
    // Predicated region
    $region46: #{advanced_lstm_forward.1} parent=1 // pred_check
      _
    $region47: #{advanced_lstm_forward.1} parent=1 // pred_check_branch
      %75 = sbr.rel (0) target = $region49
    $region48: #{advanced_lstm_forward.1} parent=1 // pred_region
      %76 = dma.done [#allocation7], 2048
    $region49: #{advanced_lstm_forward.1} parent=1 // pred_fallthru
      _
    // Predicated region
    $region50: #{advanced_lstm_forward.1} parent=1 // pred_check
      _
    $region51: #{advanced_lstm_forward.1} parent=1 // pred_check_branch
      %78 = sbr.rel (0) target = $region53
    $region52: #{advanced_lstm_forward.1} parent=1 // pred_region
      %79 = dma.done [#allocation9], 2048
    $region53: #{advanced_lstm_forward.1} parent=1 // pred_fallthru
      _
    // Predicated region
    $region54: #{advanced_lstm_forward.1} parent=1 // pred_check
      _
    $region55: #{advanced_lstm_forward.1} parent=1 // pred_check_branch
      %81 = sbr.rel (0) target = $region57
    $region56: #{advanced_lstm_forward.1} parent=1 // pred_region
      %82 = dma.done [#allocation9], 2048
    $region57: #{advanced_lstm_forward.1} parent=1 // pred_fallthru
      _
    %v83 = vld [vmem:[%s1] sm:$0xff]
    %v84 = vld [vmem:[#allocation6] sm:$0xff]
    %v85 = vld [vmem:[#allocation6 + $0x8] sm:$0xff]
    %v86 = vld [vmem:[#allocation6 + $0x10] sm:$0xff]
    %v87 = vld [vmem:[#allocation6 + $0x18] sm:$0xff]
    %v88 = vld [vmem:[#allocation6 + $0x20] sm:$0xff]
    %v89 = vld [vmem:[#allocation6 + $0x28] sm:$0xff]
    %v90 = vld [vmem:[#allocation6 + $0x30] sm:$0xff]
    %v91 = vld [vmem:[#allocation6 + $0x38] sm:$0xff]
    %v92 = vld [vmem:[#allocation6 + $0x40] sm:$0xff]
    %v93 = vld [vmem:[#allocation6 + $0x48] sm:$0xff]
    %v94 = vld [vmem:[#allocation6 + $0x50] sm:$0xff]
    %v95 = vld [vmem:[#allocation6 + $0x58] sm:$0xff]
    %v96 = vld [vmem:[#allocation6 + $0x60] sm:$0xff]
    %v97 = vld [vmem:[#allocation6 + $0x68] sm:$0xff]
    %v98 = vld [vmem:[#allocation6 + $0x70] sm:$0xff]
    %v99 = vld [vmem:[#allocation6 + $0x78] sm:$0xff]
    %v100 = vld [vmem:[%s3] sm:$0x3]
    %v101 = vld [vmem:[%s0] sm:$0x3]
    %v103 = vlaneseq
    %v104 = vshrl.u32 %v103, 7
    %v105 = vsub.s32 0, %v104
    %v106 = vrot.slane %v100, %v105
    %v107 = vlaneseq
    %v108 = vshrl.u32 %v107, 7
    %v109 = vsub.s32 1, %v108
    %v110 = vrot.slane %v100, %v109
    %v114 = vcombine.high %v83, %v83
    %vm115 = vcmask 31744
    %v117 = vsel %vm115, %v101, 0
    %vm119 = vcmask 1043456
    %v120 = vsel %vm119, %v83, 0
    %v122 = vsel %vm119, %v114, 0
    %124 = vmatprep.subr.mxu0 0.0
    %125 = vmatpush1.msra.mxu0 0.0
    %126 = vmatprep.subr.mxu0 0.0
    %127 = vmatpush1.msra.mxu0 0.0
    %128 = vmatprep.subr.mxu0 0.0
    %129 = vmatpush1.msra.mxu0 0.0
    %130 = vmatprep.subr.mxu0 0.0
    %131 = vmatpush1.msra.mxu0 0.0
    %132 = vmatprep.subr.mxu0 0.0
    %133 = vmatpush1.msra.mxu0 0.0
    %134 = vmatprep.subr.mxu0 0.0
    %135 = vmatpush1.msra.mxu0 0.0
    %136 = vmatprep.subr.mxu0 0.0
    %137 = vmatpush1.msra.mxu0 0.0
    %138 = vmatprep.subr.mxu0 0.0
    %139 = vmatpush1.msra.mxu0 0.0
    %140 = vmatprep.subr.mxu0 0.0
    %141 = vmatpush1.msra.mxu0 0.0
    %142 = vmatprep.subr.mxu0 0.0
    %143 = vmatpush1.msra.mxu0 0.0
    %144 = vmatprep.subr.mxu0 0.0
    %145 = vmatpush1.msra.mxu0 0.0
    %146 = vmatprep.subr.mxu0 0.0
    %147 = vmatpush1.msra.mxu0 0.0
    %148 = vmatprep.subr.mxu0 0.0
    %149 = vmatpush1.msra.mxu0 0.0
    %150 = vmatprep.subr.mxu0 0.0
    %151 = vmatpush1.msra.mxu0 0.0
    %152 = vmatprep.subr.mxu0 0.0
    %153 = vmatpush1.msra.mxu0 0.0
    %154 = vmatprep.subr.mxu0 %v122
    %155 = vmatpush1.msra.mxu0 %v120
    %156 = vmatprep.subr.mxu0 0.0
    %157 = vmatpush2.msra.mxu0 0.0
    %158 = vmatprep.subr.mxu0 0.0
    %159 = vmatpush2.msra.mxu0 0.0
    %160 = vmatprep.subr.mxu0 0.0
    %161 = vmatpush2.msra.mxu0 0.0
    %162 = vmatprep.subr.mxu0 0.0
    %163 = vmatpush2.msra.mxu0 0.0
    %164 = vmatprep.subr.mxu0 0.0
    %165 = vmatpush2.msra.mxu0 0.0
    %166 = vmatprep.subr.mxu0 0.0
    %167 = vmatpush2.msra.mxu0 0.0
    %168 = vmatprep.subr.mxu0 0.0
    %169 = vmatpush2.msra.mxu0 0.0
    %170 = vmatprep.subr.mxu0 0.0
    %171 = vmatpush2.msra.mxu0 0.0
    %172 = vmatprep.subr.mxu0 0.0
    %173 = vmatpush2.msra.mxu0 0.0
    %174 = vmatprep.subr.mxu0 0.0
    %175 = vmatpush2.msra.mxu0 0.0
    %176 = vmatprep.subr.mxu0 0.0
    %177 = vmatpush2.msra.mxu0 0.0
    %178 = vmatprep.subr.mxu0 0.0
    %179 = vmatpush2.msra.mxu0 0.0
    %180 = vmatprep.subr.mxu0 0.0
    %181 = vmatpush2.msra.mxu0 0.0
    %182 = vmatprep.subr.mxu0 0.0
    %183 = vmatpush2.msra.mxu0 0.0
    %184 = vmatprep.subr.mxu0 0.0
    %185 = vmatpush2.msra.mxu0 0.0
    %186 = vmatprep.subr.mxu0 0.0
    %187 = vmatpush2.msra.mxu0 0.0
    %188 = vmatprep.mubr.f32.mxu0 0.0
    %189 = vmatmul.mubr.f32.gmra.mxu0 %v117
    %v190 = vpop.f32.mrf.mxu0
    %v191 = vadd.f32 %v106, %v190
    %v192 = vpop.f32.mrf.mxu0
    %v193 = vadd.f32 %v110, %v192
    %194 = vdwg.mxu0
    %v197 = vcombine.low %v191, %v193
    %v199 = vunpack.c.l.s4 1983009808
    %v200 = vunpack.c.0.s8 %v199
    %v201 = vlaneseq
    %v202 = vshrl.u32 %v201, 7
    %v203 = vsub.s32 %v200, %v202
    %v204 = vrot.slane %v197, %v203
    %206 = vst [vmem:[#allocation3] sm:$0xf] %v204
    %s207 = scalar_lea.vmem %s0, 2
    %v208 = vld [vmem:[%s207] sm:$0x3]
    %v210 = vsel %vm115, %v208, 0
    %212 = vmatprep.subr.mxu0 0.0
    %213 = vmatpush1.msra.mxu0 0.0
    %214 = vmatprep.subr.mxu0 0.0
    %215 = vmatpush1.msra.mxu0 0.0
    %216 = vmatprep.subr.mxu0 0.0
    %217 = vmatpush1.msra.mxu0 0.0
    %218 = vmatprep.subr.mxu0 0.0
    %219 = vmatpush1.msra.mxu0 0.0
    %220 = vmatprep.subr.mxu0 0.0
    %221 = vmatpush1.msra.mxu0 0.0
    %222 = vmatprep.subr.mxu0 0.0
    %223 = vmatpush1.msra.mxu0 0.0
    %224 = vmatprep.subr.mxu0 0.0
    %225 = vmatpush1.msra.mxu0 0.0
    %226 = vmatprep.subr.mxu0 0.0
    %227 = vmatpush1.msra.mxu0 0.0
    %228 = vmatprep.subr.mxu0 0.0
    %229 = vmatpush1.msra.mxu0 0.0
    %230 = vmatprep.subr.mxu0 0.0
    %231 = vmatpush1.msra.mxu0 0.0
    %232 = vmatprep.subr.mxu0 0.0
    %233 = vmatpush1.msra.mxu0 0.0
    %234 = vmatprep.subr.mxu0 0.0
    %235 = vmatpush1.msra.mxu0 0.0
    %236 = vmatprep.subr.mxu0 0.0
    %237 = vmatpush1.msra.mxu0 0.0
    %238 = vmatprep.subr.mxu0 0.0
    %239 = vmatpush1.msra.mxu0 0.0
    %240 = vmatprep.subr.mxu0 0.0
    %241 = vmatpush1.msra.mxu0 0.0
    %242 = vmatprep.subr.mxu0 %v122
    %243 = vmatpush1.msra.mxu0 %v120
    %244 = vmatprep.subr.mxu0 0.0
    %245 = vmatpush2.msra.mxu0 0.0
    %246 = vmatprep.subr.mxu0 0.0
    %247 = vmatpush2.msra.mxu0 0.0
    %248 = vmatprep.subr.mxu0 0.0
    %249 = vmatpush2.msra.mxu0 0.0
    %250 = vmatprep.subr.mxu0 0.0
    %251 = vmatpush2.msra.mxu0 0.0
    %252 = vmatprep.subr.mxu0 0.0
    %253 = vmatpush2.msra.mxu0 0.0
    %254 = vmatprep.subr.mxu0 0.0
    %255 = vmatpush2.msra.mxu0 0.0
    %256 = vmatprep.subr.mxu0 0.0
    %257 = vmatpush2.msra.mxu0 0.0
    %258 = vmatprep.subr.mxu0 0.0
    %259 = vmatpush2.msra.mxu0 0.0
    %260 = vmatprep.subr.mxu0 0.0
    %261 = vmatpush2.msra.mxu0 0.0
    %262 = vmatprep.subr.mxu0 0.0
    %263 = vmatpush2.msra.mxu0 0.0
    %264 = vmatprep.subr.mxu0 0.0
    %265 = vmatpush2.msra.mxu0 0.0
    %266 = vmatprep.subr.mxu0 0.0
    %267 = vmatpush2.msra.mxu0 0.0
    %268 = vmatprep.subr.mxu0 0.0
    %269 = vmatpush2.msra.mxu0 0.0
    %270 = vmatprep.subr.mxu0 0.0
    %271 = vmatpush2.msra.mxu0 0.0
    %272 = vmatprep.subr.mxu0 0.0
    %273 = vmatpush2.msra.mxu0 0.0
    %274 = vmatprep.subr.mxu0 0.0
    %275 = vmatpush2.msra.mxu0 0.0
    %276 = vmatprep.mubr.f32.mxu0 0.0
    %277 = vmatmul.mubr.f32.gmra.mxu0 %v210
    %v278 = vpop.f32.mrf.mxu0
    %v279 = vadd.f32 %v106, %v278
    %v280 = vpop.f32.mrf.mxu0
    %v281 = vadd.f32 %v110, %v280
    %282 = vdwg.mxu0
    %v285 = vcombine.low %v279, %v281
    %v287 = vunpack.c.l.s4 1983009808
    %v288 = vunpack.c.0.s8 %v287
    %v289 = vlaneseq
    %v290 = vshrl.u32 %v289, 7
    %v291 = vsub.s32 %v288, %v290
    %v292 = vrot.slane %v285, %v291
    %s294 = scalar_lea.vmem [#allocation3], 4
    %295 = vst [vmem:[%s294] sm:$0xf] %v292
    %s296 = scalar_lea.vmem %s0, 4
    %v297 = vld [vmem:[%s296] sm:$0x3]
    %v299 = vsel %vm115, %v297, 0
    %301 = vmatprep.subr.mxu0 0.0
    %302 = vmatpush1.msra.mxu0 0.0
    %303 = vmatprep.subr.mxu0 0.0
    %304 = vmatpush1.msra.mxu0 0.0
    %305 = vmatprep.subr.mxu0 0.0
    %306 = vmatpush1.msra.mxu0 0.0
    %307 = vmatprep.subr.mxu0 0.0
    %308 = vmatpush1.msra.mxu0 0.0
    %309 = vmatprep.subr.mxu0 0.0
    %310 = vmatpush1.msra.mxu0 0.0
    %311 = vmatprep.subr.mxu0 0.0
    %312 = vmatpush1.msra.mxu0 0.0
    %313 = vmatprep.subr.mxu0 0.0
    %314 = vmatpush1.msra.mxu0 0.0
    %315 = vmatprep.subr.mxu0 0.0
    %316 = vmatpush1.msra.mxu0 0.0
    %317 = vmatprep.subr.mxu0 0.0
    %318 = vmatpush1.msra.mxu0 0.0
    %319 = vmatprep.subr.mxu0 0.0
    %320 = vmatpush1.msra.mxu0 0.0
    %321 = vmatprep.subr.mxu0 0.0
    %322 = vmatpush1.msra.mxu0 0.0
    %323 = vmatprep.subr.mxu0 0.0
    %324 = vmatpush1.msra.mxu0 0.0
    %325 = vmatprep.subr.mxu0 0.0
    %326 = vmatpush1.msra.mxu0 0.0
    %327 = vmatprep.subr.mxu0 0.0
    %328 = vmatpush1.msra.mxu0 0.0
    %329 = vmatprep.subr.mxu0 0.0
    %330 = vmatpush1.msra.mxu0 0.0
    %331 = vmatprep.subr.mxu0 %v122
    %332 = vmatpush1.msra.mxu0 %v120
    %333 = vmatprep.subr.mxu0 0.0
    %334 = vmatpush2.msra.mxu0 0.0
    %335 = vmatprep.subr.mxu0 0.0
    %336 = vmatpush2.msra.mxu0 0.0
    %337 = vmatprep.subr.mxu0 0.0
    %338 = vmatpush2.msra.mxu0 0.0
    %339 = vmatprep.subr.mxu0 0.0
    %340 = vmatpush2.msra.mxu0 0.0
    %341 = vmatprep.subr.mxu0 0.0
    %342 = vmatpush2.msra.mxu0 0.0
    %343 = vmatprep.subr.mxu0 0.0
    %344 = vmatpush2.msra.mxu0 0.0
    %345 = vmatprep.subr.mxu0 0.0
    %346 = vmatpush2.msra.mxu0 0.0
    %347 = vmatprep.subr.mxu0 0.0
    %348 = vmatpush2.msra.mxu0 0.0
    %349 = vmatprep.subr.mxu0 0.0
    %350 = vmatpush2.msra.mxu0 0.0
    %351 = vmatprep.subr.mxu0 0.0
    %352 = vmatpush2.msra.mxu0 0.0
    %353 = vmatprep.subr.mxu0 0.0
    %354 = vmatpush2.msra.mxu0 0.0
    %355 = vmatprep.subr.mxu0 0.0
    %356 = vmatpush2.msra.mxu0 0.0
    %357 = vmatprep.subr.mxu0 0.0
    %358 = vmatpush2.msra.mxu0 0.0
    %359 = vmatprep.subr.mxu0 0.0
    %360 = vmatpush2.msra.mxu0 0.0
    %361 = vmatprep.subr.mxu0 0.0
    %362 = vmatpush2.msra.mxu0 0.0
    %363 = vmatprep.subr.mxu0 0.0
    %364 = vmatpush2.msra.mxu0 0.0
    %365 = vmatprep.mubr.f32.mxu0 0.0
    %366 = vmatmul.mubr.f32.gmra.mxu0 %v299
    %v367 = vpop.f32.mrf.mxu0
    %v368 = vadd.f32 %v106, %v367
    %v369 = vpop.f32.mrf.mxu0
    %v370 = vadd.f32 %v110, %v369
    %371 = vdwg.mxu0
    %v374 = vcombine.low %v368, %v370
    %v376 = vunpack.c.l.s4 1983009808
    %v377 = vunpack.c.0.s8 %v376
    %v378 = vlaneseq
    %v379 = vshrl.u32 %v378, 7
    %v380 = vsub.s32 %v377, %v379
    %v381 = vrot.slane %v374, %v380
    %s383 = scalar_lea.vmem [#allocation3], 8
    %384 = vst [vmem:[%s383] sm:$0xf] %v381
    %s385 = scalar_lea.vmem %s0, 6
    %v386 = vld [vmem:[%s385] sm:$0x3]
    %v388 = vsel %vm115, %v386, 0
    %390 = vmatprep.subr.mxu0 0.0
    %391 = vmatpush1.msra.mxu0 0.0
    %392 = vmatprep.subr.mxu0 0.0
    %393 = vmatpush1.msra.mxu0 0.0
    %394 = vmatprep.subr.mxu0 0.0
    %395 = vmatpush1.msra.mxu0 0.0
    %396 = vmatprep.subr.mxu0 0.0
    %397 = vmatpush1.msra.mxu0 0.0
    %398 = vmatprep.subr.mxu0 0.0
    %399 = vmatpush1.msra.mxu0 0.0
    %400 = vmatprep.subr.mxu0 0.0
    %401 = vmatpush1.msra.mxu0 0.0
    %402 = vmatprep.subr.mxu0 0.0
    %403 = vmatpush1.msra.mxu0 0.0
    %404 = vmatprep.subr.mxu0 0.0
    %405 = vmatpush1.msra.mxu0 0.0
    %406 = vmatprep.subr.mxu0 0.0
    %407 = vmatpush1.msra.mxu0 0.0
    %408 = vmatprep.subr.mxu0 0.0
    %409 = vmatpush1.msra.mxu0 0.0
    %410 = vmatprep.subr.mxu0 0.0
    %411 = vmatpush1.msra.mxu0 0.0
    %412 = vmatprep.subr.mxu0 0.0
    %413 = vmatpush1.msra.mxu0 0.0
    %414 = vmatprep.subr.mxu0 0.0
    %415 = vmatpush1.msra.mxu0 0.0
    %416 = vmatprep.subr.mxu0 0.0
    %417 = vmatpush1.msra.mxu0 0.0
    %418 = vmatprep.subr.mxu0 0.0
    %419 = vmatpush1.msra.mxu0 0.0
    %420 = vmatprep.subr.mxu0 %v122
    %421 = vmatpush1.msra.mxu0 %v120
    %422 = vmatprep.subr.mxu0 0.0
    %423 = vmatpush2.msra.mxu0 0.0
    %424 = vmatprep.subr.mxu0 0.0
    %425 = vmatpush2.msra.mxu0 0.0
    %426 = vmatprep.subr.mxu0 0.0
    %427 = vmatpush2.msra.mxu0 0.0
    %428 = vmatprep.subr.mxu0 0.0
    %429 = vmatpush2.msra.mxu0 0.0
    %430 = vmatprep.subr.mxu0 0.0
    %431 = vmatpush2.msra.mxu0 0.0
    %432 = vmatprep.subr.mxu0 0.0
    %433 = vmatpush2.msra.mxu0 0.0
    %434 = vmatprep.subr.mxu0 0.0
    %435 = vmatpush2.msra.mxu0 0.0
    %436 = vmatprep.subr.mxu0 0.0
    %437 = vmatpush2.msra.mxu0 0.0
    %438 = vmatprep.subr.mxu0 0.0
    %439 = vmatpush2.msra.mxu0 0.0
    %440 = vmatprep.subr.mxu0 0.0
    %441 = vmatpush2.msra.mxu0 0.0
    %442 = vmatprep.subr.mxu0 0.0
    %443 = vmatpush2.msra.mxu0 0.0
    %444 = vmatprep.subr.mxu0 0.0
    %445 = vmatpush2.msra.mxu0 0.0
    %446 = vmatprep.subr.mxu0 0.0
    %447 = vmatpush2.msra.mxu0 0.0
    %448 = vmatprep.subr.mxu0 0.0
    %449 = vmatpush2.msra.mxu0 0.0
    %450 = vmatprep.subr.mxu0 0.0
    %451 = vmatpush2.msra.mxu0 0.0
    %452 = vmatprep.subr.mxu0 0.0
    %453 = vmatpush2.msra.mxu0 0.0
    %454 = vmatprep.mubr.f32.mxu0 0.0
    %455 = vmatmul.mubr.f32.gmra.mxu0 %v388
    %v456 = vpop.f32.mrf.mxu0
    %v457 = vadd.f32 %v106, %v456
    %v458 = vpop.f32.mrf.mxu0
    %v459 = vadd.f32 %v110, %v458
    %460 = vdwg.mxu0
    %v463 = vcombine.low %v457, %v459
    %v465 = vunpack.c.l.s4 1983009808
    %v466 = vunpack.c.0.s8 %v465
    %v467 = vlaneseq
    %v468 = vshrl.u32 %v467, 7
    %v469 = vsub.s32 %v466, %v468
    %v470 = vrot.slane %v463, %v469
    %s472 = scalar_lea.vmem [#allocation3], 12
    %473 = vst [vmem:[%s472] sm:$0xf] %v470
    %s474 = scalar_lea.vmem %s0, 8
    %v475 = vld [vmem:[%s474] sm:$0x3]
    %v477 = vsel %vm115, %v475, 0
    %479 = vmatprep.subr.mxu0 0.0
    %480 = vmatpush1.msra.mxu0 0.0
    %481 = vmatprep.subr.mxu0 0.0
    %482 = vmatpush1.msra.mxu0 0.0
    %483 = vmatprep.subr.mxu0 0.0
    %484 = vmatpush1.msra.mxu0 0.0
    %485 = vmatprep.subr.mxu0 0.0
    %486 = vmatpush1.msra.mxu0 0.0
    %487 = vmatprep.subr.mxu0 0.0
    %488 = vmatpush1.msra.mxu0 0.0
    %489 = vmatprep.subr.mxu0 0.0
    %490 = vmatpush1.msra.mxu0 0.0
    %491 = vmatprep.subr.mxu0 0.0
    %492 = vmatpush1.msra.mxu0 0.0
    %493 = vmatprep.subr.mxu0 0.0
    %494 = vmatpush1.msra.mxu0 0.0
    %495 = vmatprep.subr.mxu0 0.0
    %496 = vmatpush1.msra.mxu0 0.0
    %497 = vmatprep.subr.mxu0 0.0
    %498 = vmatpush1.msra.mxu0 0.0
    %499 = vmatprep.subr.mxu0 0.0
    %500 = vmatpush1.msra.mxu0 0.0
    %501 = vmatprep.subr.mxu0 0.0
    %502 = vmatpush1.msra.mxu0 0.0
    %503 = vmatprep.subr.mxu0 0.0
    %504 = vmatpush1.msra.mxu0 0.0
    %505 = vmatprep.subr.mxu0 0.0
    %506 = vmatpush1.msra.mxu0 0.0
    %507 = vmatprep.subr.mxu0 0.0
    %508 = vmatpush1.msra.mxu0 0.0
    %509 = vmatprep.subr.mxu0 %v122
    %510 = vmatpush1.msra.mxu0 %v120
    %511 = vmatprep.subr.mxu0 0.0
    %512 = vmatpush2.msra.mxu0 0.0
    %513 = vmatprep.subr.mxu0 0.0
    %514 = vmatpush2.msra.mxu0 0.0
    %515 = vmatprep.subr.mxu0 0.0
    %516 = vmatpush2.msra.mxu0 0.0
    %517 = vmatprep.subr.mxu0 0.0
    %518 = vmatpush2.msra.mxu0 0.0
    %519 = vmatprep.subr.mxu0 0.0
    %520 = vmatpush2.msra.mxu0 0.0
    %521 = vmatprep.subr.mxu0 0.0
    %522 = vmatpush2.msra.mxu0 0.0
    %523 = vmatprep.subr.mxu0 0.0
    %524 = vmatpush2.msra.mxu0 0.0
    %525 = vmatprep.subr.mxu0 0.0
    %526 = vmatpush2.msra.mxu0 0.0
    %527 = vmatprep.subr.mxu0 0.0
    %528 = vmatpush2.msra.mxu0 0.0
    %529 = vmatprep.subr.mxu0 0.0
    %530 = vmatpush2.msra.mxu0 0.0
    %531 = vmatprep.subr.mxu0 0.0
    %532 = vmatpush2.msra.mxu0 0.0
    %533 = vmatprep.subr.mxu0 0.0
    %534 = vmatpush2.msra.mxu0 0.0
    %535 = vmatprep.subr.mxu0 0.0
    %536 = vmatpush2.msra.mxu0 0.0
    %537 = vmatprep.subr.mxu0 0.0
    %538 = vmatpush2.msra.mxu0 0.0
    %539 = vmatprep.subr.mxu0 0.0
    %540 = vmatpush2.msra.mxu0 0.0
    %541 = vmatprep.subr.mxu0 0.0
    %542 = vmatpush2.msra.mxu0 0.0
    %543 = vmatprep.mubr.f32.mxu0 0.0
    %544 = vmatmul.mubr.f32.gmra.mxu0 %v477
    %v545 = vpop.f32.mrf.mxu0
    %v546 = vadd.f32 %v106, %v545
    %v547 = vpop.f32.mrf.mxu0
    %v548 = vadd.f32 %v110, %v547
    %549 = vdwg.mxu0
    %v552 = vcombine.low %v546, %v548
    %v554 = vunpack.c.l.s4 1983009808
    %v555 = vunpack.c.0.s8 %v554
    %v556 = vlaneseq
    %v557 = vshrl.u32 %v556, 7
    %v558 = vsub.s32 %v555, %v557
    %v559 = vrot.slane %v552, %v558
    %s561 = scalar_lea.vmem [#allocation3], 16
    %562 = vst [vmem:[%s561] sm:$0xf] %v559
    %s563 = scalar_lea.vmem %s0, 10
    %v564 = vld [vmem:[%s563] sm:$0x3]
    %v566 = vsel %vm115, %v564, 0
    %568 = vmatprep.subr.mxu0 0.0
    %569 = vmatpush1.msra.mxu0 0.0
    %570 = vmatprep.subr.mxu0 0.0
    %571 = vmatpush1.msra.mxu0 0.0
    %572 = vmatprep.subr.mxu0 0.0
    %573 = vmatpush1.msra.mxu0 0.0
    %574 = vmatprep.subr.mxu0 0.0
    %575 = vmatpush1.msra.mxu0 0.0
    %576 = vmatprep.subr.mxu0 0.0
    %577 = vmatpush1.msra.mxu0 0.0
    %578 = vmatprep.subr.mxu0 0.0
    %579 = vmatpush1.msra.mxu0 0.0
    %580 = vmatprep.subr.mxu0 0.0
    %581 = vmatpush1.msra.mxu0 0.0
    %582 = vmatprep.subr.mxu0 0.0
    %583 = vmatpush1.msra.mxu0 0.0
    %584 = vmatprep.subr.mxu0 0.0
    %585 = vmatpush1.msra.mxu0 0.0
    %586 = vmatprep.subr.mxu0 0.0
    %587 = vmatpush1.msra.mxu0 0.0
    %588 = vmatprep.subr.mxu0 0.0
    %589 = vmatpush1.msra.mxu0 0.0
    %590 = vmatprep.subr.mxu0 0.0
    %591 = vmatpush1.msra.mxu0 0.0
    %592 = vmatprep.subr.mxu0 0.0
    %593 = vmatpush1.msra.mxu0 0.0
    %594 = vmatprep.subr.mxu0 0.0
    %595 = vmatpush1.msra.mxu0 0.0
    %596 = vmatprep.subr.mxu0 0.0
    %597 = vmatpush1.msra.mxu0 0.0
    %598 = vmatprep.subr.mxu0 %v122
    %599 = vmatpush1.msra.mxu0 %v120
    %600 = vmatprep.subr.mxu0 0.0
    %601 = vmatpush2.msra.mxu0 0.0
    %602 = vmatprep.subr.mxu0 0.0
    %603 = vmatpush2.msra.mxu0 0.0
    %604 = vmatprep.subr.mxu0 0.0
    %605 = vmatpush2.msra.mxu0 0.0
    %606 = vmatprep.subr.mxu0 0.0
    %607 = vmatpush2.msra.mxu0 0.0
    %608 = vmatprep.subr.mxu0 0.0
    %609 = vmatpush2.msra.mxu0 0.0
    %610 = vmatprep.subr.mxu0 0.0
    %611 = vmatpush2.msra.mxu0 0.0
    %612 = vmatprep.subr.mxu0 0.0
    %613 = vmatpush2.msra.mxu0 0.0
    %614 = vmatprep.subr.mxu0 0.0
    %615 = vmatpush2.msra.mxu0 0.0
    %616 = vmatprep.subr.mxu0 0.0
    %617 = vmatpush2.msra.mxu0 0.0
    %618 = vmatprep.subr.mxu0 0.0
    %619 = vmatpush2.msra.mxu0 0.0
    %620 = vmatprep.subr.mxu0 0.0
    %621 = vmatpush2.msra.mxu0 0.0
    %622 = vmatprep.subr.mxu0 0.0
    %623 = vmatpush2.msra.mxu0 0.0
    %624 = vmatprep.subr.mxu0 0.0
    %625 = vmatpush2.msra.mxu0 0.0
    %626 = vmatprep.subr.mxu0 0.0
    %627 = vmatpush2.msra.mxu0 0.0
    %628 = vmatprep.subr.mxu0 0.0
    %629 = vmatpush2.msra.mxu0 0.0
    %630 = vmatprep.subr.mxu0 0.0
    %631 = vmatpush2.msra.mxu0 0.0
    %632 = vmatprep.mubr.f32.mxu0 0.0
    %633 = vmatmul.mubr.f32.gmra.mxu0 %v566
    %v634 = vpop.f32.mrf.mxu0
    %v635 = vadd.f32 %v106, %v634
    %v636 = vpop.f32.mrf.mxu0
    %v637 = vadd.f32 %v110, %v636
    %638 = vdwg.mxu0
    %v641 = vcombine.low %v635, %v637
    %v643 = vunpack.c.l.s4 1983009808
    %v644 = vunpack.c.0.s8 %v643
    %v645 = vlaneseq
    %v646 = vshrl.u32 %v645, 7
    %v647 = vsub.s32 %v644, %v646
    %v648 = vrot.slane %v641, %v647
    %s650 = scalar_lea.vmem [#allocation3], 20
    %651 = vst [vmem:[%s650] sm:$0xf] %v648
    %s652 = scalar_lea.vmem %s0, 12
    %v653 = vld [vmem:[%s652] sm:$0x3]
    %v655 = vsel %vm115, %v653, 0
    %657 = vmatprep.subr.mxu0 0.0
    %658 = vmatpush1.msra.mxu0 0.0
    %659 = vmatprep.subr.mxu0 0.0
    %660 = vmatpush1.msra.mxu0 0.0
    %661 = vmatprep.subr.mxu0 0.0
    %662 = vmatpush1.msra.mxu0 0.0
    %663 = vmatprep.subr.mxu0 0.0
    %664 = vmatpush1.msra.mxu0 0.0
    %665 = vmatprep.subr.mxu0 0.0
    %666 = vmatpush1.msra.mxu0 0.0
    %667 = vmatprep.subr.mxu0 0.0
    %668 = vmatpush1.msra.mxu0 0.0
    %669 = vmatprep.subr.mxu0 0.0
    %670 = vmatpush1.msra.mxu0 0.0
    %671 = vmatprep.subr.mxu0 0.0
    %672 = vmatpush1.msra.mxu0 0.0
    %673 = vmatprep.subr.mxu0 0.0
    %674 = vmatpush1.msra.mxu0 0.0
    %675 = vmatprep.subr.mxu0 0.0
    %676 = vmatpush1.msra.mxu0 0.0
    %677 = vmatprep.subr.mxu0 0.0
    %678 = vmatpush1.msra.mxu0 0.0
    %679 = vmatprep.subr.mxu0 0.0
    %680 = vmatpush1.msra.mxu0 0.0
    %681 = vmatprep.subr.mxu0 0.0
    %682 = vmatpush1.msra.mxu0 0.0
    %683 = vmatprep.subr.mxu0 0.0
    %684 = vmatpush1.msra.mxu0 0.0
    %685 = vmatprep.subr.mxu0 0.0
    %686 = vmatpush1.msra.mxu0 0.0
    %687 = vmatprep.subr.mxu0 %v122
    %688 = vmatpush1.msra.mxu0 %v120
    %689 = vmatprep.subr.mxu0 0.0
    %690 = vmatpush2.msra.mxu0 0.0
    %691 = vmatprep.subr.mxu0 0.0
    %692 = vmatpush2.msra.mxu0 0.0
    %693 = vmatprep.subr.mxu0 0.0
    %694 = vmatpush2.msra.mxu0 0.0
    %695 = vmatprep.subr.mxu0 0.0
    %696 = vmatpush2.msra.mxu0 0.0
    %697 = vmatprep.subr.mxu0 0.0
    %698 = vmatpush2.msra.mxu0 0.0
    %699 = vmatprep.subr.mxu0 0.0
    %700 = vmatpush2.msra.mxu0 0.0
    %701 = vmatprep.subr.mxu0 0.0
    %702 = vmatpush2.msra.mxu0 0.0
    %703 = vmatprep.subr.mxu0 0.0
    %704 = vmatpush2.msra.mxu0 0.0
    %705 = vmatprep.subr.mxu0 0.0
    %706 = vmatpush2.msra.mxu0 0.0
    %707 = vmatprep.subr.mxu0 0.0
    %708 = vmatpush2.msra.mxu0 0.0
    %709 = vmatprep.subr.mxu0 0.0
    %710 = vmatpush2.msra.mxu0 0.0
    %711 = vmatprep.subr.mxu0 0.0
    %712 = vmatpush2.msra.mxu0 0.0
    %713 = vmatprep.subr.mxu0 0.0
    %714 = vmatpush2.msra.mxu0 0.0
    %715 = vmatprep.subr.mxu0 0.0
    %716 = vmatpush2.msra.mxu0 0.0
    %717 = vmatprep.subr.mxu0 0.0
    %718 = vmatpush2.msra.mxu0 0.0
    %719 = vmatprep.subr.mxu0 0.0
    %720 = vmatpush2.msra.mxu0 0.0
    %721 = vmatprep.mubr.f32.mxu0 0.0
    %722 = vmatmul.mubr.f32.gmra.mxu0 %v655
    %v723 = vpop.f32.mrf.mxu0
    %v724 = vadd.f32 %v106, %v723
    %v725 = vpop.f32.mrf.mxu0
    %v726 = vadd.f32 %v110, %v725
    %727 = vdwg.mxu0
    %v730 = vcombine.low %v724, %v726
    %v732 = vunpack.c.l.s4 1983009808
    %v733 = vunpack.c.0.s8 %v732
    %v734 = vlaneseq
    %v735 = vshrl.u32 %v734, 7
    %v736 = vsub.s32 %v733, %v735
    %v737 = vrot.slane %v730, %v736
    %s739 = scalar_lea.vmem [#allocation3], 24
    %740 = vst [vmem:[%s739] sm:$0xf] %v737
    %s741 = scalar_lea.vmem %s0, 14
    %v742 = vld [vmem:[%s741] sm:$0x3]
    %v744 = vsel %vm115, %v742, 0
    %746 = vmatprep.subr.mxu0 0.0
    %747 = vmatpush1.msra.mxu0 0.0
    %748 = vmatprep.subr.mxu0 0.0
    %749 = vmatpush1.msra.mxu0 0.0
    %750 = vmatprep.subr.mxu0 0.0
    %751 = vmatpush1.msra.mxu0 0.0
    %752 = vmatprep.subr.mxu0 0.0
    %753 = vmatpush1.msra.mxu0 0.0
    %754 = vmatprep.subr.mxu0 0.0
    %755 = vmatpush1.msra.mxu0 0.0
    %756 = vmatprep.subr.mxu0 0.0
    %757 = vmatpush1.msra.mxu0 0.0
    %758 = vmatprep.subr.mxu0 0.0
    %759 = vmatpush1.msra.mxu0 0.0
    %760 = vmatprep.subr.mxu0 0.0
    %761 = vmatpush1.msra.mxu0 0.0
    %762 = vmatprep.subr.mxu0 0.0
    %763 = vmatpush1.msra.mxu0 0.0
    %764 = vmatprep.subr.mxu0 0.0
    %765 = vmatpush1.msra.mxu0 0.0
    %766 = vmatprep.subr.mxu0 0.0
    %767 = vmatpush1.msra.mxu0 0.0
    %768 = vmatprep.subr.mxu0 0.0
    %769 = vmatpush1.msra.mxu0 0.0
    %770 = vmatprep.subr.mxu0 0.0
    %771 = vmatpush1.msra.mxu0 0.0
    %772 = vmatprep.subr.mxu0 0.0
    %773 = vmatpush1.msra.mxu0 0.0
    %774 = vmatprep.subr.mxu0 0.0
    %775 = vmatpush1.msra.mxu0 0.0
    %776 = vmatprep.subr.mxu0 %v122
    %777 = vmatpush1.msra.mxu0 %v120
    %778 = vmatprep.subr.mxu0 0.0
    %779 = vmatpush2.msra.mxu0 0.0
    %780 = vmatprep.subr.mxu0 0.0
    %781 = vmatpush2.msra.mxu0 0.0
    %782 = vmatprep.subr.mxu0 0.0
    %783 = vmatpush2.msra.mxu0 0.0
    %784 = vmatprep.subr.mxu0 0.0
    %785 = vmatpush2.msra.mxu0 0.0
    %786 = vmatprep.subr.mxu0 0.0
    %787 = vmatpush2.msra.mxu0 0.0
    %788 = vmatprep.subr.mxu0 0.0
    %789 = vmatpush2.msra.mxu0 0.0
    %790 = vmatprep.subr.mxu0 0.0
    %791 = vmatpush2.msra.mxu0 0.0
    %792 = vmatprep.subr.mxu0 0.0
    %793 = vmatpush2.msra.mxu0 0.0
    %794 = vmatprep.subr.mxu0 0.0
    %795 = vmatpush2.msra.mxu0 0.0
    %796 = vmatprep.subr.mxu0 0.0
    %797 = vmatpush2.msra.mxu0 0.0
    %798 = vmatprep.subr.mxu0 0.0
    %799 = vmatpush2.msra.mxu0 0.0
    %800 = vmatprep.subr.mxu0 0.0
    %801 = vmatpush2.msra.mxu0 0.0
    %802 = vmatprep.subr.mxu0 0.0
    %803 = vmatpush2.msra.mxu0 0.0
    %804 = vmatprep.subr.mxu0 0.0
    %805 = vmatpush2.msra.mxu0 0.0
    %806 = vmatprep.subr.mxu0 0.0
    %807 = vmatpush2.msra.mxu0 0.0
    %808 = vmatprep.subr.mxu0 0.0
    %809 = vmatpush2.msra.mxu0 0.0
    %810 = vmatprep.mubr.f32.mxu0 0.0
    %811 = vmatmul.mubr.f32.gmra.mxu0 %v744
    %v812 = vpop.f32.mrf.mxu0
    %v813 = vadd.f32 %v106, %v812
    %v814 = vpop.f32.mrf.mxu0
    %v815 = vadd.f32 %v110, %v814
    %816 = vdwg.mxu0
    %v819 = vcombine.low %v813, %v815
    %v821 = vunpack.c.l.s4 1983009808
    %v822 = vunpack.c.0.s8 %v821
    %v823 = vlaneseq
    %v824 = vshrl.u32 %v823, 7
    %v825 = vsub.s32 %v822, %v824
    %v826 = vrot.slane %v819, %v825
    %s828 = scalar_lea.vmem [#allocation3], 28
    %829 = vst [vmem:[%s828] sm:$0xf] %v826
    %vm830 = vcmask 523264
    %v832 = vsel %vm830, 0.0, 0
    %834 = vmatprep.subr.mxu0 0.0
    %835 = vmatpush1.msra.mxu0 0.0
    %836 = vmatprep.subr.mxu0 0.0
    %837 = vmatpush1.msra.mxu0 0.0
    %838 = vmatprep.subr.mxu0 0.0
    %839 = vmatpush1.msra.mxu0 0.0
    %840 = vmatprep.subr.mxu0 0.0
    %841 = vmatpush1.msra.mxu0 0.0
    %842 = vmatprep.subr.mxu0 0.0
    %843 = vmatpush1.msra.mxu0 0.0
    %844 = vmatprep.subr.mxu0 0.0
    %845 = vmatpush1.msra.mxu0 0.0
    %846 = vmatprep.subr.mxu0 0.0
    %847 = vmatpush1.msra.mxu0 0.0
    %848 = vmatprep.subr.mxu0 0.0
    %849 = vmatpush1.msra.mxu0 0.0
    %850 = vmatprep.subr.mxu0 %v99
    %851 = vmatpush1.msra.mxu0 %v98
    %852 = vmatprep.subr.mxu0 %v97
    %853 = vmatpush1.msra.mxu0 %v96
    %854 = vmatprep.subr.mxu0 %v95
    %855 = vmatpush1.msra.mxu0 %v94
    %856 = vmatprep.subr.mxu0 %v93
    %857 = vmatpush1.msra.mxu0 %v92
    %858 = vmatprep.subr.mxu0 %v91
    %859 = vmatpush1.msra.mxu0 %v90
    %860 = vmatprep.subr.mxu0 %v89
    %861 = vmatpush1.msra.mxu0 %v88
    %862 = vmatprep.subr.mxu0 %v87
    %863 = vmatpush1.msra.mxu0 %v86
    %864 = vmatprep.subr.mxu0 %v85
    %865 = vmatpush1.msra.mxu0 %v84
    %866 = vmatprep.subr.mxu0 0.0
    %867 = vmatpush2.msra.mxu0 0.0
    %868 = vmatprep.subr.mxu0 0.0
    %869 = vmatpush2.msra.mxu0 0.0
    %870 = vmatprep.subr.mxu0 0.0
    %871 = vmatpush2.msra.mxu0 0.0
    %872 = vmatprep.subr.mxu0 0.0
    %873 = vmatpush2.msra.mxu0 0.0
    %874 = vmatprep.subr.mxu0 0.0
    %875 = vmatpush2.msra.mxu0 0.0
    %876 = vmatprep.subr.mxu0 0.0
    %877 = vmatpush2.msra.mxu0 0.0
    %878 = vmatprep.subr.mxu0 0.0
    %879 = vmatpush2.msra.mxu0 0.0
    %880 = vmatprep.subr.mxu0 0.0
    %881 = vmatpush2.msra.mxu0 0.0
    %882 = vmatprep.subr.mxu0 0.0
    %883 = vmatpush2.msra.mxu0 0.0
    %884 = vmatprep.subr.mxu0 0.0
    %885 = vmatpush2.msra.mxu0 0.0
    %886 = vmatprep.subr.mxu0 0.0
    %887 = vmatpush2.msra.mxu0 0.0
    %888 = vmatprep.subr.mxu0 0.0
    %889 = vmatpush2.msra.mxu0 0.0
    %890 = vmatprep.subr.mxu0 0.0
    %891 = vmatpush2.msra.mxu0 0.0
    %892 = vmatprep.subr.mxu0 0.0
    %893 = vmatpush2.msra.mxu0 0.0
    %894 = vmatprep.subr.mxu0 0.0
    %895 = vmatpush2.msra.mxu0 0.0
    %896 = vmatprep.subr.mxu0 0.0
    %897 = vmatpush2.msra.mxu0 0.0
    %898 = vmatprep.mubr.f32.mxu0 0.0
    %899 = vmatmul.mubr.f32.gmra.mxu0 %v832
    %v900 = vpop.f32.mrf.mxu0
    %v901 = vadd.f32 0.0, %v900
    %v902 = vpop.f32.mrf.mxu0
    %v903 = vadd.f32 0.0, %v902
    %904 = vdwg.mxu0
    %v905 = vld [vmem:[#allocation3] sm:$0x3]
    %v906 = vadd.f32 %v901, %v905
    %v907 = vld [vmem:[%s828 + $0x2] sm:$0x3]
    %v908 = vadd.f32 %v903, %v907
    %v909 = vxor.u32 %v906, 2147483648
    %v910 = vmul.f32 %v909, 1.442695
    %v911 = vpow.pop %v910
    %v912 = vadd.f32 %v911, 1.0
    %v913 = vrcp.pop %v912
    %v914 = vmul.f32 1.0, %v913
    %v915 = vtanh.pop %v906
    %v916 = vmul.f32 %v914, 0.0
    %918 = vrot.lane.b32.xlu0 %v915, 64
    %v919 = vpop.permute.xlu0 %918
    %v921 = vmul.f32 %v914, %v919
    %923 = vrot.lane.b32.xlu0 %v921, 32
    %v924 = vpop.permute.xlu0 %923
    %v926 = vadd.f32 %v916, %v924
    %v927 = vtanh.pop %v926
    %929 = vrot.lane.b32.xlu0 %v927, 64
    %v930 = vpop.permute.xlu0 %929
    %v932 = vmul.f32 %v914, %v930
    %v933 = vxor.u32 %v908, 2147483648
    %v934 = vmul.f32 %v933, 1.442695
    %v935 = vpow.pop %v934
    %v936 = vadd.f32 %v935, 1.0
    %v937 = vrcp.pop %v936
    %v938 = vmul.f32 1.0, %v937
    %v939 = vtanh.pop %v908
    %v940 = vmul.f32 %v938, 0.0
    %942 = vrot.lane.b32.xlu0 %v939, 64
    %v943 = vpop.permute.xlu0 %942
    %v945 = vmul.f32 %v938, %v943
    %947 = vrot.lane.b32.xlu0 %v945, 32
    %v948 = vpop.permute.xlu0 %947
    %v950 = vadd.f32 %v940, %v948
    %v951 = vtanh.pop %v950
    %953 = vrot.lane.b32.xlu0 %v951, 64
    %v954 = vpop.permute.xlu0 %953
    %v956 = vmul.f32 %v938, %v954
    %958 = vrot.lane.b32.xlu0 %v932, 32
    %v959 = vpop.permute.xlu0 %958
    %vm961 = vcmask 254976
    %962 = vst.msk [vmem:[#allocation2] sm:$0x3] %vm961, %v959
    %964 = vrot.lane.b32.xlu0 %v956, 64
    %v965 = vpop.permute.xlu0 %964
    %s967 = scalar_lea.vmem [#allocation2], 14
    %vm968 = vcmask 517376
    %969 = vst.msk [vmem:[%s967] sm:$0x3] %vm968, %v965
    %vm970 = vcmask 261120
    %v971 = vsel %vm970, %v959, %v965
    %v973 = vsel %vm830, %v971, 0
    %975 = vmatprep.subr.mxu0 0.0
    %976 = vmatpush1.msra.mxu0 0.0
    %977 = vmatprep.subr.mxu0 0.0
    %978 = vmatpush1.msra.mxu0 0.0
    %979 = vmatprep.subr.mxu0 0.0
    %980 = vmatpush1.msra.mxu0 0.0
    %981 = vmatprep.subr.mxu0 0.0
    %982 = vmatpush1.msra.mxu0 0.0
    %983 = vmatprep.subr.mxu0 0.0
    %984 = vmatpush1.msra.mxu0 0.0
    %985 = vmatprep.subr.mxu0 0.0
    %986 = vmatpush1.msra.mxu0 0.0
    %987 = vmatprep.subr.mxu0 0.0
    %988 = vmatpush1.msra.mxu0 0.0
    %989 = vmatprep.subr.mxu0 0.0
    %990 = vmatpush1.msra.mxu0 0.0
    %991 = vmatprep.subr.mxu0 %v99
    %992 = vmatpush1.msra.mxu0 %v98
    %993 = vmatprep.subr.mxu0 %v97
    %994 = vmatpush1.msra.mxu0 %v96
    %995 = vmatprep.subr.mxu0 %v95
    %996 = vmatpush1.msra.mxu0 %v94
    %997 = vmatprep.subr.mxu0 %v93
    %998 = vmatpush1.msra.mxu0 %v92
    %999 = vmatprep.subr.mxu0 %v91
    %1000 = vmatpush1.msra.mxu0 %v90
    %1001 = vmatprep.subr.mxu0 %v89
    %1002 = vmatpush1.msra.mxu0 %v88
    %1003 = vmatprep.subr.mxu0 %v87
    %1004 = vmatpush1.msra.mxu0 %v86
    %1005 = vmatprep.subr.mxu0 %v85
    %1006 = vmatpush1.msra.mxu0 %v84
    %1007 = vmatprep.subr.mxu0 0.0
    %1008 = vmatpush2.msra.mxu0 0.0
    %1009 = vmatprep.subr.mxu0 0.0
    %1010 = vmatpush2.msra.mxu0 0.0
    %1011 = vmatprep.subr.mxu0 0.0
    %1012 = vmatpush2.msra.mxu0 0.0
    %1013 = vmatprep.subr.mxu0 0.0
    %1014 = vmatpush2.msra.mxu0 0.0
    %1015 = vmatprep.subr.mxu0 0.0
    %1016 = vmatpush2.msra.mxu0 0.0
    %1017 = vmatprep.subr.mxu0 0.0
    %1018 = vmatpush2.msra.mxu0 0.0
    %1019 = vmatprep.subr.mxu0 0.0
    %1020 = vmatpush2.msra.mxu0 0.0
    %1021 = vmatprep.subr.mxu0 0.0
    %1022 = vmatpush2.msra.mxu0 0.0
    %1023 = vmatprep.subr.mxu0 0.0
    %1024 = vmatpush2.msra.mxu0 0.0
    %1025 = vmatprep.subr.mxu0 0.0
    %1026 = vmatpush2.msra.mxu0 0.0
    %1027 = vmatprep.subr.mxu0 0.0
    %1028 = vmatpush2.msra.mxu0 0.0
    %1029 = vmatprep.subr.mxu0 0.0
    %1030 = vmatpush2.msra.mxu0 0.0
    %1031 = vmatprep.subr.mxu0 0.0
    %1032 = vmatpush2.msra.mxu0 0.0
    %1033 = vmatprep.subr.mxu0 0.0
    %1034 = vmatpush2.msra.mxu0 0.0
    %1035 = vmatprep.subr.mxu0 0.0
    %1036 = vmatpush2.msra.mxu0 0.0
    %1037 = vmatprep.subr.mxu0 0.0
    %1038 = vmatpush2.msra.mxu0 0.0
    %1039 = vmatprep.mubr.f32.mxu0 0.0
    %1040 = vmatmul.mubr.f32.gmra.mxu0 %v973
    %v1041 = vpop.f32.mrf.mxu0
    %v1042 = vadd.f32 0.0, %v1041
    %v1043 = vpop.f32.mrf.mxu0
    %v1044 = vadd.f32 0.0, %v1043
    %1045 = vdwg.mxu0
    %v1046 = vld [vmem:[%s294] sm:$0x3]
    %v1047 = vadd.f32 %v1042, %v1046
    %v1048 = vld [vmem:[%s739 + $0x2] sm:$0x3]
    %v1049 = vadd.f32 %v1044, %v1048
    %v1050 = vxor.u32 %v1047, 2147483648
    %v1051 = vmul.f32 %v1050, 1.442695
    %v1052 = vpow.pop %v1051
    %v1053 = vadd.f32 %v1052, 1.0
    %v1054 = vrcp.pop %v1053
    %v1055 = vmul.f32 1.0, %v1054
    %v1056 = vtanh.pop %v1047
    %v1057 = vmul.f32 %v1055, %v926
    %1059 = vrot.lane.b32.xlu0 %v1056, 64
    %v1060 = vpop.permute.xlu0 %1059
    %v1062 = vmul.f32 %v1055, %v1060
    %1064 = vrot.lane.b32.xlu0 %v1062, 32
    %v1065 = vpop.permute.xlu0 %1064
    %v1067 = vadd.f32 %v1057, %v1065
    %v1068 = vtanh.pop %v1067
    %1070 = vrot.lane.b32.xlu0 %v1068, 64
    %v1071 = vpop.permute.xlu0 %1070
    %v1073 = vmul.f32 %v1055, %v1071
    %v1074 = vxor.u32 %v1049, 2147483648
    %v1075 = vmul.f32 %v1074, 1.442695
    %v1076 = vpow.pop %v1075
    %v1077 = vadd.f32 %v1076, 1.0
    %v1078 = vrcp.pop %v1077
    %v1079 = vmul.f32 1.0, %v1078
    %v1080 = vtanh.pop %v1049
    %v1081 = vmul.f32 %v1079, %v950
    %1083 = vrot.lane.b32.xlu0 %v1080, 64
    %v1084 = vpop.permute.xlu0 %1083
    %v1086 = vmul.f32 %v1079, %v1084
    %1088 = vrot.lane.b32.xlu0 %v1086, 32
    %v1089 = vpop.permute.xlu0 %1088
    %v1091 = vadd.f32 %v1081, %v1089
    %v1092 = vtanh.pop %v1091
    %1094 = vrot.lane.b32.xlu0 %v1092, 64
    %v1095 = vpop.permute.xlu0 %1094
    %v1097 = vmul.f32 %v1079, %v1095
    %1099 = vrot.lane.b32.xlu0 %v1073, 32
    %v1100 = vpop.permute.xlu0 %1099
    %s1102 = scalar_lea.vmem [#allocation2], 2
    %1103 = vst.msk [vmem:[%s1102] sm:$0x3] %vm961, %v1100
    %1105 = vrot.lane.b32.xlu0 %v1097, 64
    %v1106 = vpop.permute.xlu0 %1105
    %s1108 = scalar_lea.vmem [#allocation2], 12
    %1109 = vst.msk [vmem:[%s1108] sm:$0x3] %vm968, %v1106
    %v1110 = vsel %vm970, %v1100, %v1106
    %v1112 = vsel %vm830, %v1110, 0
    %1114 = vmatprep.subr.mxu0 0.0
    %1115 = vmatpush1.msra.mxu0 0.0
    %1116 = vmatprep.subr.mxu0 0.0
    %1117 = vmatpush1.msra.mxu0 0.0
    %1118 = vmatprep.subr.mxu0 0.0
    %1119 = vmatpush1.msra.mxu0 0.0
    %1120 = vmatprep.subr.mxu0 0.0
    %1121 = vmatpush1.msra.mxu0 0.0
    %1122 = vmatprep.subr.mxu0 0.0
    %1123 = vmatpush1.msra.mxu0 0.0
    %1124 = vmatprep.subr.mxu0 0.0
    %1125 = vmatpush1.msra.mxu0 0.0
    %1126 = vmatprep.subr.mxu0 0.0
    %1127 = vmatpush1.msra.mxu0 0.0
    %1128 = vmatprep.subr.mxu0 0.0
    %1129 = vmatpush1.msra.mxu0 0.0
    %1130 = vmatprep.subr.mxu0 %v99
    %1131 = vmatpush1.msra.mxu0 %v98
    %1132 = vmatprep.subr.mxu0 %v97
    %1133 = vmatpush1.msra.mxu0 %v96
    %1134 = vmatprep.subr.mxu0 %v95
    %1135 = vmatpush1.msra.mxu0 %v94
    %1136 = vmatprep.subr.mxu0 %v93
    %1137 = vmatpush1.msra.mxu0 %v92
    %1138 = vmatprep.subr.mxu0 %v91
    %1139 = vmatpush1.msra.mxu0 %v90
    %1140 = vmatprep.subr.mxu0 %v89
    %1141 = vmatpush1.msra.mxu0 %v88
    %1142 = vmatprep.subr.mxu0 %v87
    %1143 = vmatpush1.msra.mxu0 %v86
    %1144 = vmatprep.subr.mxu0 %v85
    %1145 = vmatpush1.msra.mxu0 %v84
    %1146 = vmatprep.subr.mxu0 0.0
    %1147 = vmatpush2.msra.mxu0 0.0
    %1148 = vmatprep.subr.mxu0 0.0
    %1149 = vmatpush2.msra.mxu0 0.0
    %1150 = vmatprep.subr.mxu0 0.0
    %1151 = vmatpush2.msra.mxu0 0.0
    %1152 = vmatprep.subr.mxu0 0.0
    %1153 = vmatpush2.msra.mxu0 0.0
    %1154 = vmatprep.subr.mxu0 0.0
    %1155 = vmatpush2.msra.mxu0 0.0
    %1156 = vmatprep.subr.mxu0 0.0
    %1157 = vmatpush2.msra.mxu0 0.0
    %1158 = vmatprep.subr.mxu0 0.0
    %1159 = vmatpush2.msra.mxu0 0.0
    %1160 = vmatprep.subr.mxu0 0.0
    %1161 = vmatpush2.msra.mxu0 0.0
    %1162 = vmatprep.subr.mxu0 0.0
    %1163 = vmatpush2.msra.mxu0 0.0
    %1164 = vmatprep.subr.mxu0 0.0
    %1165 = vmatpush2.msra.mxu0 0.0
    %1166 = vmatprep.subr.mxu0 0.0
    %1167 = vmatpush2.msra.mxu0 0.0
    %1168 = vmatprep.subr.mxu0 0.0
    %1169 = vmatpush2.msra.mxu0 0.0
    %1170 = vmatprep.subr.mxu0 0.0
    %1171 = vmatpush2.msra.mxu0 0.0
    %1172 = vmatprep.subr.mxu0 0.0
    %1173 = vmatpush2.msra.mxu0 0.0
    %1174 = vmatprep.subr.mxu0 0.0
    %1175 = vmatpush2.msra.mxu0 0.0
    %1176 = vmatprep.subr.mxu0 0.0
    %1177 = vmatpush2.msra.mxu0 0.0
    %1178 = vmatprep.mubr.f32.mxu0 0.0
    %1179 = vmatmul.mubr.f32.gmra.mxu0 %v1112
    %v1180 = vpop.f32.mrf.mxu0
    %v1181 = vadd.f32 0.0, %v1180
    %v1182 = vpop.f32.mrf.mxu0
    %v1183 = vadd.f32 0.0, %v1182
    %1184 = vdwg.mxu0
    %v1185 = vld [vmem:[%s383] sm:$0x3]
    %v1186 = vadd.f32 %v1181, %v1185
    %v1187 = vld [vmem:[%s650 + $0x2] sm:$0x3]
    %v1188 = vadd.f32 %v1183, %v1187
    %v1189 = vxor.u32 %v1186, 2147483648
    %v1190 = vmul.f32 %v1189, 1.442695
    %v1191 = vpow.pop %v1190
    %v1192 = vadd.f32 %v1191, 1.0
    %v1193 = vrcp.pop %v1192
    %v1194 = vmul.f32 1.0, %v1193
    %v1195 = vtanh.pop %v1186
    %v1196 = vmul.f32 %v1194, %v1067
    %1198 = vrot.lane.b32.xlu0 %v1195, 64
    %v1199 = vpop.permute.xlu0 %1198
    %v1201 = vmul.f32 %v1194, %v1199
    %1203 = vrot.lane.b32.xlu0 %v1201, 32
    %v1204 = vpop.permute.xlu0 %1203
    %v1206 = vadd.f32 %v1196, %v1204
    %v1207 = vtanh.pop %v1206
    %1209 = vrot.lane.b32.xlu0 %v1207, 64
    %v1210 = vpop.permute.xlu0 %1209
    %v1212 = vmul.f32 %v1194, %v1210
    %v1213 = vxor.u32 %v1188, 2147483648
    %v1214 = vmul.f32 %v1213, 1.442695
    %v1215 = vpow.pop %v1214
    %v1216 = vadd.f32 %v1215, 1.0
    %v1217 = vrcp.pop %v1216
    %v1218 = vmul.f32 1.0, %v1217
    %v1219 = vtanh.pop %v1188
    %v1220 = vmul.f32 %v1218, %v1091
    %1222 = vrot.lane.b32.xlu0 %v1219, 64
    %v1223 = vpop.permute.xlu0 %1222
    %v1225 = vmul.f32 %v1218, %v1223
    %1227 = vrot.lane.b32.xlu0 %v1225, 32
    %v1228 = vpop.permute.xlu0 %1227
    %v1230 = vadd.f32 %v1220, %v1228
    %v1231 = vtanh.pop %v1230
    %1233 = vrot.lane.b32.xlu0 %v1231, 64
    %v1234 = vpop.permute.xlu0 %1233
    %v1236 = vmul.f32 %v1218, %v1234
    %1238 = vrot.lane.b32.xlu0 %v1212, 32
    %v1239 = vpop.permute.xlu0 %1238
    %s1241 = scalar_lea.vmem [#allocation2], 4
    %1242 = vst.msk [vmem:[%s1241] sm:$0x3] %vm961, %v1239
    %1244 = vrot.lane.b32.xlu0 %v1236, 64
    %v1245 = vpop.permute.xlu0 %1244
    %s1247 = scalar_lea.vmem [#allocation2], 10
    %1248 = vst.msk [vmem:[%s1247] sm:$0x3] %vm968, %v1245
    %v1249 = vsel %vm970, %v1239, %v1245
    %v1251 = vsel %vm830, %v1249, 0
    %1253 = vmatprep.subr.mxu0 0.0
    %1254 = vmatpush1.msra.mxu0 0.0
    %1255 = vmatprep.subr.mxu0 0.0
    %1256 = vmatpush1.msra.mxu0 0.0
    %1257 = vmatprep.subr.mxu0 0.0
    %1258 = vmatpush1.msra.mxu0 0.0
    %1259 = vmatprep.subr.mxu0 0.0
    %1260 = vmatpush1.msra.mxu0 0.0
    %1261 = vmatprep.subr.mxu0 0.0
    %1262 = vmatpush1.msra.mxu0 0.0
    %1263 = vmatprep.subr.mxu0 0.0
    %1264 = vmatpush1.msra.mxu0 0.0
    %1265 = vmatprep.subr.mxu0 0.0
    %1266 = vmatpush1.msra.mxu0 0.0
    %1267 = vmatprep.subr.mxu0 0.0
    %1268 = vmatpush1.msra.mxu0 0.0
    %1269 = vmatprep.subr.mxu0 %v99
    %1270 = vmatpush1.msra.mxu0 %v98
    %1271 = vmatprep.subr.mxu0 %v97
    %1272 = vmatpush1.msra.mxu0 %v96
    %1273 = vmatprep.subr.mxu0 %v95
    %1274 = vmatpush1.msra.mxu0 %v94
    %1275 = vmatprep.subr.mxu0 %v93
    %1276 = vmatpush1.msra.mxu0 %v92
    %1277 = vmatprep.subr.mxu0 %v91
    %1278 = vmatpush1.msra.mxu0 %v90
    %1279 = vmatprep.subr.mxu0 %v89
    %1280 = vmatpush1.msra.mxu0 %v88
    %1281 = vmatprep.subr.mxu0 %v87
    %1282 = vmatpush1.msra.mxu0 %v86
    %1283 = vmatprep.subr.mxu0 %v85
    %1284 = vmatpush1.msra.mxu0 %v84
    %1285 = vmatprep.subr.mxu0 0.0
    %1286 = vmatpush2.msra.mxu0 0.0
    %1287 = vmatprep.subr.mxu0 0.0
    %1288 = vmatpush2.msra.mxu0 0.0
    %1289 = vmatprep.subr.mxu0 0.0
    %1290 = vmatpush2.msra.mxu0 0.0
    %1291 = vmatprep.subr.mxu0 0.0
    %1292 = vmatpush2.msra.mxu0 0.0
    %1293 = vmatprep.subr.mxu0 0.0
    %1294 = vmatpush2.msra.mxu0 0.0
    %1295 = vmatprep.subr.mxu0 0.0
    %1296 = vmatpush2.msra.mxu0 0.0
    %1297 = vmatprep.subr.mxu0 0.0
    %1298 = vmatpush2.msra.mxu0 0.0
    %1299 = vmatprep.subr.mxu0 0.0
    %1300 = vmatpush2.msra.mxu0 0.0
    %1301 = vmatprep.subr.mxu0 0.0
    %1302 = vmatpush2.msra.mxu0 0.0
    %1303 = vmatprep.subr.mxu0 0.0
    %1304 = vmatpush2.msra.mxu0 0.0
    %1305 = vmatprep.subr.mxu0 0.0
    %1306 = vmatpush2.msra.mxu0 0.0
    %1307 = vmatprep.subr.mxu0 0.0
    %1308 = vmatpush2.msra.mxu0 0.0
    %1309 = vmatprep.subr.mxu0 0.0
    %1310 = vmatpush2.msra.mxu0 0.0
    %1311 = vmatprep.subr.mxu0 0.0
    %1312 = vmatpush2.msra.mxu0 0.0
    %1313 = vmatprep.subr.mxu0 0.0
    %1314 = vmatpush2.msra.mxu0 0.0
    %1315 = vmatprep.subr.mxu0 0.0
    %1316 = vmatpush2.msra.mxu0 0.0
    %1317 = vmatprep.mubr.f32.mxu0 0.0
    %1318 = vmatmul.mubr.f32.gmra.mxu0 %v1251
    %v1319 = vpop.f32.mrf.mxu0
    %v1320 = vadd.f32 0.0, %v1319
    %v1321 = vpop.f32.mrf.mxu0
    %v1322 = vadd.f32 0.0, %v1321
    %1323 = vdwg.mxu0
    %v1324 = vld [vmem:[%s472] sm:$0x3]
    %v1325 = vadd.f32 %v1320, %v1324
    %v1326 = vld [vmem:[%s561 + $0x2] sm:$0x3]
    %v1327 = vadd.f32 %v1322, %v1326
    %v1328 = vxor.u32 %v1325, 2147483648
    %v1329 = vmul.f32 %v1328, 1.442695
    %v1330 = vpow.pop %v1329
    %v1331 = vadd.f32 %v1330, 1.0
    %v1332 = vrcp.pop %v1331
    %v1333 = vmul.f32 1.0, %v1332
    %v1334 = vtanh.pop %v1325
    %v1335 = vmul.f32 %v1333, %v1206
    %1337 = vrot.lane.b32.xlu0 %v1334, 64
    %v1338 = vpop.permute.xlu0 %1337
    %v1340 = vmul.f32 %v1333, %v1338
    %1342 = vrot.lane.b32.xlu0 %v1340, 32
    %v1343 = vpop.permute.xlu0 %1342
    %v1345 = vadd.f32 %v1335, %v1343
    %v1346 = vtanh.pop %v1345
    %1348 = vrot.lane.b32.xlu0 %v1346, 64
    %v1349 = vpop.permute.xlu0 %1348
    %v1351 = vmul.f32 %v1333, %v1349
    %v1352 = vxor.u32 %v1327, 2147483648
    %v1353 = vmul.f32 %v1352, 1.442695
    %v1354 = vpow.pop %v1353
    %v1355 = vadd.f32 %v1354, 1.0
    %v1356 = vrcp.pop %v1355
    %v1357 = vmul.f32 1.0, %v1356
    %v1358 = vtanh.pop %v1327
    %v1359 = vmul.f32 %v1357, %v1230
    %1361 = vrot.lane.b32.xlu0 %v1358, 64
    %v1362 = vpop.permute.xlu0 %1361
    %v1364 = vmul.f32 %v1357, %v1362
    %1366 = vrot.lane.b32.xlu0 %v1364, 32
    %v1367 = vpop.permute.xlu0 %1366
    %v1369 = vadd.f32 %v1359, %v1367
    %v1370 = vtanh.pop %v1369
    %1372 = vrot.lane.b32.xlu0 %v1370, 64
    %v1373 = vpop.permute.xlu0 %1372
    %v1375 = vmul.f32 %v1357, %v1373
    %1377 = vrot.lane.b32.xlu0 %v1351, 32
    %v1378 = vpop.permute.xlu0 %1377
    %s1380 = scalar_lea.vmem [#allocation2], 6
    %1381 = vst.msk [vmem:[%s1380] sm:$0x3] %vm961, %v1378
    %1383 = vrot.lane.b32.xlu0 %v1375, 64
    %v1384 = vpop.permute.xlu0 %1383
    %s1386 = scalar_lea.vmem [#allocation2], 8
    %1387 = vst.msk [vmem:[%s1386] sm:$0x3] %vm968, %v1384
    %v1388 = vsel %vm970, %v1378, %v1384
    %v1390 = vsel %vm830, %v1388, 0
    %1392 = vmatprep.subr.mxu0 0.0
    %1393 = vmatpush1.msra.mxu0 0.0
    %1394 = vmatprep.subr.mxu0 0.0
    %1395 = vmatpush1.msra.mxu0 0.0
    %1396 = vmatprep.subr.mxu0 0.0
    %1397 = vmatpush1.msra.mxu0 0.0
    %1398 = vmatprep.subr.mxu0 0.0
    %1399 = vmatpush1.msra.mxu0 0.0
    %1400 = vmatprep.subr.mxu0 0.0
    %1401 = vmatpush1.msra.mxu0 0.0
    %1402 = vmatprep.subr.mxu0 0.0
    %1403 = vmatpush1.msra.mxu0 0.0
    %1404 = vmatprep.subr.mxu0 0.0
    %1405 = vmatpush1.msra.mxu0 0.0
    %1406 = vmatprep.subr.mxu0 0.0
    %1407 = vmatpush1.msra.mxu0 0.0
    %1408 = vmatprep.subr.mxu0 %v99
    %1409 = vmatpush1.msra.mxu0 %v98
    %1410 = vmatprep.subr.mxu0 %v97
    %1411 = vmatpush1.msra.mxu0 %v96
    %1412 = vmatprep.subr.mxu0 %v95
    %1413 = vmatpush1.msra.mxu0 %v94
    %1414 = vmatprep.subr.mxu0 %v93
    %1415 = vmatpush1.msra.mxu0 %v92
    %1416 = vmatprep.subr.mxu0 %v91
    %1417 = vmatpush1.msra.mxu0 %v90
    %1418 = vmatprep.subr.mxu0 %v89
    %1419 = vmatpush1.msra.mxu0 %v88
    %1420 = vmatprep.subr.mxu0 %v87
    %1421 = vmatpush1.msra.mxu0 %v86
    %1422 = vmatprep.subr.mxu0 %v85
    %1423 = vmatpush1.msra.mxu0 %v84
    %1424 = vmatprep.subr.mxu0 0.0
    %1425 = vmatpush2.msra.mxu0 0.0
    %1426 = vmatprep.subr.mxu0 0.0
    %1427 = vmatpush2.msra.mxu0 0.0
    %1428 = vmatprep.subr.mxu0 0.0
    %1429 = vmatpush2.msra.mxu0 0.0
    %1430 = vmatprep.subr.mxu0 0.0
    %1431 = vmatpush2.msra.mxu0 0.0
    %1432 = vmatprep.subr.mxu0 0.0
    %1433 = vmatpush2.msra.mxu0 0.0
    %1434 = vmatprep.subr.mxu0 0.0
    %1435 = vmatpush2.msra.mxu0 0.0
    %1436 = vmatprep.subr.mxu0 0.0
    %1437 = vmatpush2.msra.mxu0 0.0
    %1438 = vmatprep.subr.mxu0 0.0
    %1439 = vmatpush2.msra.mxu0 0.0
    %1440 = vmatprep.subr.mxu0 0.0
    %1441 = vmatpush2.msra.mxu0 0.0
    %1442 = vmatprep.subr.mxu0 0.0
    %1443 = vmatpush2.msra.mxu0 0.0
    %1444 = vmatprep.subr.mxu0 0.0
    %1445 = vmatpush2.msra.mxu0 0.0
    %1446 = vmatprep.subr.mxu0 0.0
    %1447 = vmatpush2.msra.mxu0 0.0
    %1448 = vmatprep.subr.mxu0 0.0
    %1449 = vmatpush2.msra.mxu0 0.0
    %1450 = vmatprep.subr.mxu0 0.0
    %1451 = vmatpush2.msra.mxu0 0.0
    %1452 = vmatprep.subr.mxu0 0.0
    %1453 = vmatpush2.msra.mxu0 0.0
    %1454 = vmatprep.subr.mxu0 0.0
    %1455 = vmatpush2.msra.mxu0 0.0
    %1456 = vmatprep.mubr.f32.mxu0 0.0
    %1457 = vmatmul.mubr.f32.gmra.mxu0 %v1390
    %v1458 = vpop.f32.mrf.mxu0
    %v1459 = vadd.f32 0.0, %v1458
    %v1460 = vpop.f32.mrf.mxu0
    %v1461 = vadd.f32 0.0, %v1460
    %1462 = vdwg.mxu0
    %v1463 = vld [vmem:[%s561] sm:$0x3]
    %v1464 = vadd.f32 %v1459, %v1463
    %v1465 = vld [vmem:[%s472 + $0x2] sm:$0x3]
    %v1466 = vadd.f32 %v1461, %v1465
    %v1467 = vxor.u32 %v1464, 2147483648
    %v1468 = vmul.f32 %v1467, 1.442695
    %v1469 = vpow.pop %v1468
    %v1470 = vadd.f32 %v1469, 1.0
    %v1471 = vrcp.pop %v1470
    %v1472 = vmul.f32 1.0, %v1471
    %v1473 = vtanh.pop %v1464
    %v1474 = vmul.f32 %v1472, %v1345
    %1476 = vrot.lane.b32.xlu0 %v1473, 64
    %v1477 = vpop.permute.xlu0 %1476
    %v1479 = vmul.f32 %v1472, %v1477
    %1481 = vrot.lane.b32.xlu0 %v1479, 32
    %v1482 = vpop.permute.xlu0 %1481
    %v1484 = vadd.f32 %v1474, %v1482
    %v1485 = vtanh.pop %v1484
    %1487 = vrot.lane.b32.xlu0 %v1485, 64
    %v1488 = vpop.permute.xlu0 %1487
    %v1490 = vmul.f32 %v1472, %v1488
    %v1491 = vxor.u32 %v1466, 2147483648
    %v1492 = vmul.f32 %v1491, 1.442695
    %v1493 = vpow.pop %v1492
    %v1494 = vadd.f32 %v1493, 1.0
    %v1495 = vrcp.pop %v1494
    %v1496 = vmul.f32 1.0, %v1495
    %v1497 = vtanh.pop %v1466
    %v1498 = vmul.f32 %v1496, %v1369
    %1500 = vrot.lane.b32.xlu0 %v1497, 64
    %v1501 = vpop.permute.xlu0 %1500
    %v1503 = vmul.f32 %v1496, %v1501
    %1505 = vrot.lane.b32.xlu0 %v1503, 32
    %v1506 = vpop.permute.xlu0 %1505
    %v1508 = vadd.f32 %v1498, %v1506
    %v1509 = vtanh.pop %v1508
    %1511 = vrot.lane.b32.xlu0 %v1509, 64
    %v1512 = vpop.permute.xlu0 %1511
    %v1514 = vmul.f32 %v1496, %v1512
    %1516 = vrot.lane.b32.xlu0 %v1490, 32
    %v1517 = vpop.permute.xlu0 %1516
    %1519 = vst.msk [vmem:[%s1386] sm:$0x3] %vm961, %v1517
    %1521 = vrot.lane.b32.xlu0 %v1514, 64
    %v1522 = vpop.permute.xlu0 %1521
    %1524 = vst.msk [vmem:[%s1380] sm:$0x3] %vm968, %v1522
    %v1525 = vsel %vm970, %v1517, %v1522
    %v1527 = vsel %vm830, %v1525, 0
    %1529 = vmatprep.subr.mxu0 0.0
    %1530 = vmatpush1.msra.mxu0 0.0
    %1531 = vmatprep.subr.mxu0 0.0
    %1532 = vmatpush1.msra.mxu0 0.0
    %1533 = vmatprep.subr.mxu0 0.0
    %1534 = vmatpush1.msra.mxu0 0.0
    %1535 = vmatprep.subr.mxu0 0.0
    %1536 = vmatpush1.msra.mxu0 0.0
    %1537 = vmatprep.subr.mxu0 0.0
    %1538 = vmatpush1.msra.mxu0 0.0
    %1539 = vmatprep.subr.mxu0 0.0
    %1540 = vmatpush1.msra.mxu0 0.0
    %1541 = vmatprep.subr.mxu0 0.0
    %1542 = vmatpush1.msra.mxu0 0.0
    %1543 = vmatprep.subr.mxu0 0.0
    %1544 = vmatpush1.msra.mxu0 0.0
    %1545 = vmatprep.subr.mxu0 %v99
    %1546 = vmatpush1.msra.mxu0 %v98
    %1547 = vmatprep.subr.mxu0 %v97
    %1548 = vmatpush1.msra.mxu0 %v96
    %1549 = vmatprep.subr.mxu0 %v95
    %1550 = vmatpush1.msra.mxu0 %v94
    %1551 = vmatprep.subr.mxu0 %v93
    %1552 = vmatpush1.msra.mxu0 %v92
    %1553 = vmatprep.subr.mxu0 %v91
    %1554 = vmatpush1.msra.mxu0 %v90
    %1555 = vmatprep.subr.mxu0 %v89
    %1556 = vmatpush1.msra.mxu0 %v88
    %1557 = vmatprep.subr.mxu0 %v87
    %1558 = vmatpush1.msra.mxu0 %v86
    %1559 = vmatprep.subr.mxu0 %v85
    %1560 = vmatpush1.msra.mxu0 %v84
    %1561 = vmatprep.subr.mxu0 0.0
    %1562 = vmatpush2.msra.mxu0 0.0
    %1563 = vmatprep.subr.mxu0 0.0
    %1564 = vmatpush2.msra.mxu0 0.0
    %1565 = vmatprep.subr.mxu0 0.0
    %1566 = vmatpush2.msra.mxu0 0.0
    %1567 = vmatprep.subr.mxu0 0.0
    %1568 = vmatpush2.msra.mxu0 0.0
    %1569 = vmatprep.subr.mxu0 0.0
    %1570 = vmatpush2.msra.mxu0 0.0
    %1571 = vmatprep.subr.mxu0 0.0
    %1572 = vmatpush2.msra.mxu0 0.0
    %1573 = vmatprep.subr.mxu0 0.0
    %1574 = vmatpush2.msra.mxu0 0.0
    %1575 = vmatprep.subr.mxu0 0.0
    %1576 = vmatpush2.msra.mxu0 0.0
    %1577 = vmatprep.subr.mxu0 0.0
    %1578 = vmatpush2.msra.mxu0 0.0
    %1579 = vmatprep.subr.mxu0 0.0
    %1580 = vmatpush2.msra.mxu0 0.0
    %1581 = vmatprep.subr.mxu0 0.0
    %1582 = vmatpush2.msra.mxu0 0.0
    %1583 = vmatprep.subr.mxu0 0.0
    %1584 = vmatpush2.msra.mxu0 0.0
    %1585 = vmatprep.subr.mxu0 0.0
    %1586 = vmatpush2.msra.mxu0 0.0
    %1587 = vmatprep.subr.mxu0 0.0
    %1588 = vmatpush2.msra.mxu0 0.0
    %1589 = vmatprep.subr.mxu0 0.0
    %1590 = vmatpush2.msra.mxu0 0.0
    %1591 = vmatprep.subr.mxu0 0.0
    %1592 = vmatpush2.msra.mxu0 0.0
    %1593 = vmatprep.mubr.f32.mxu0 0.0
    %1594 = vmatmul.mubr.f32.gmra.mxu0 %v1527
    %v1595 = vpop.f32.mrf.mxu0
    %v1596 = vadd.f32 0.0, %v1595
    %v1597 = vpop.f32.mrf.mxu0
    %v1598 = vadd.f32 0.0, %v1597
    %1599 = vdwg.mxu0
    %v1600 = vld [vmem:[%s650] sm:$0x3]
    %v1601 = vadd.f32 %v1596, %v1600
    %v1602 = vld [vmem:[%s383 + $0x2] sm:$0x3]
    %v1603 = vadd.f32 %v1598, %v1602
    %v1604 = vxor.u32 %v1601, 2147483648
    %v1605 = vmul.f32 %v1604, 1.442695
    %v1606 = vpow.pop %v1605
    %v1607 = vadd.f32 %v1606, 1.0
    %v1608 = vrcp.pop %v1607
    %v1609 = vmul.f32 1.0, %v1608
    %v1610 = vtanh.pop %v1601
    %v1611 = vmul.f32 %v1609, %v1484
    %1613 = vrot.lane.b32.xlu0 %v1610, 64
    %v1614 = vpop.permute.xlu0 %1613
    %v1616 = vmul.f32 %v1609, %v1614
    %1618 = vrot.lane.b32.xlu0 %v1616, 32
    %v1619 = vpop.permute.xlu0 %1618
    %v1621 = vadd.f32 %v1611, %v1619
    %v1622 = vtanh.pop %v1621
    %1624 = vrot.lane.b32.xlu0 %v1622, 64
    %v1625 = vpop.permute.xlu0 %1624
    %v1627 = vmul.f32 %v1609, %v1625
    %v1628 = vxor.u32 %v1603, 2147483648
    %v1629 = vmul.f32 %v1628, 1.442695
    %v1630 = vpow.pop %v1629
    %v1631 = vadd.f32 %v1630, 1.0
    %v1632 = vrcp.pop %v1631
    %v1633 = vmul.f32 1.0, %v1632
    %v1634 = vtanh.pop %v1603
    %v1635 = vmul.f32 %v1633, %v1508
    %1637 = vrot.lane.b32.xlu0 %v1634, 64
    %v1638 = vpop.permute.xlu0 %1637
    %v1640 = vmul.f32 %v1633, %v1638
    %1642 = vrot.lane.b32.xlu0 %v1640, 32
    %v1643 = vpop.permute.xlu0 %1642
    %v1645 = vadd.f32 %v1635, %v1643
    %v1646 = vtanh.pop %v1645
    %1648 = vrot.lane.b32.xlu0 %v1646, 64
    %v1649 = vpop.permute.xlu0 %1648
    %v1651 = vmul.f32 %v1633, %v1649
    %1653 = vrot.lane.b32.xlu0 %v1627, 32
    %v1654 = vpop.permute.xlu0 %1653
    %1656 = vst.msk [vmem:[%s1247] sm:$0x3] %vm961, %v1654
    %1658 = vrot.lane.b32.xlu0 %v1651, 64
    %v1659 = vpop.permute.xlu0 %1658
    %1661 = vst.msk [vmem:[%s1241] sm:$0x3] %vm968, %v1659
    %v1662 = vsel %vm970, %v1654, %v1659
    %v1664 = vsel %vm830, %v1662, 0
    %1666 = vmatprep.subr.mxu0 0.0
    %1667 = vmatpush1.msra.mxu0 0.0
    %1668 = vmatprep.subr.mxu0 0.0
    %1669 = vmatpush1.msra.mxu0 0.0
    %1670 = vmatprep.subr.mxu0 0.0
    %1671 = vmatpush1.msra.mxu0 0.0
    %1672 = vmatprep.subr.mxu0 0.0
    %1673 = vmatpush1.msra.mxu0 0.0
    %1674 = vmatprep.subr.mxu0 0.0
    %1675 = vmatpush1.msra.mxu0 0.0
    %1676 = vmatprep.subr.mxu0 0.0
    %1677 = vmatpush1.msra.mxu0 0.0
    %1678 = vmatprep.subr.mxu0 0.0
    %1679 = vmatpush1.msra.mxu0 0.0
    %1680 = vmatprep.subr.mxu0 0.0
    %1681 = vmatpush1.msra.mxu0 0.0
    %1682 = vmatprep.subr.mxu0 %v99
    %1683 = vmatpush1.msra.mxu0 %v98
    %1684 = vmatprep.subr.mxu0 %v97
    %1685 = vmatpush1.msra.mxu0 %v96
    %1686 = vmatprep.subr.mxu0 %v95
    %1687 = vmatpush1.msra.mxu0 %v94
    %1688 = vmatprep.subr.mxu0 %v93
    %1689 = vmatpush1.msra.mxu0 %v92
    %1690 = vmatprep.subr.mxu0 %v91
    %1691 = vmatpush1.msra.mxu0 %v90
    %1692 = vmatprep.subr.mxu0 %v89
    %1693 = vmatpush1.msra.mxu0 %v88
    %1694 = vmatprep.subr.mxu0 %v87
    %1695 = vmatpush1.msra.mxu0 %v86
    %1696 = vmatprep.subr.mxu0 %v85
    %1697 = vmatpush1.msra.mxu0 %v84
    %1698 = vmatprep.subr.mxu0 0.0
    %1699 = vmatpush2.msra.mxu0 0.0
    %1700 = vmatprep.subr.mxu0 0.0
    %1701 = vmatpush2.msra.mxu0 0.0
    %1702 = vmatprep.subr.mxu0 0.0
    %1703 = vmatpush2.msra.mxu0 0.0
    %1704 = vmatprep.subr.mxu0 0.0
    %1705 = vmatpush2.msra.mxu0 0.0
    %1706 = vmatprep.subr.mxu0 0.0
    %1707 = vmatpush2.msra.mxu0 0.0
    %1708 = vmatprep.subr.mxu0 0.0
    %1709 = vmatpush2.msra.mxu0 0.0
    %1710 = vmatprep.subr.mxu0 0.0
    %1711 = vmatpush2.msra.mxu0 0.0
    %1712 = vmatprep.subr.mxu0 0.0
    %1713 = vmatpush2.msra.mxu0 0.0
    %1714 = vmatprep.subr.mxu0 0.0
    %1715 = vmatpush2.msra.mxu0 0.0
    %1716 = vmatprep.subr.mxu0 0.0
    %1717 = vmatpush2.msra.mxu0 0.0
    %1718 = vmatprep.subr.mxu0 0.0
    %1719 = vmatpush2.msra.mxu0 0.0
    %1720 = vmatprep.subr.mxu0 0.0
    %1721 = vmatpush2.msra.mxu0 0.0
    %1722 = vmatprep.subr.mxu0 0.0
    %1723 = vmatpush2.msra.mxu0 0.0
    %1724 = vmatprep.subr.mxu0 0.0
    %1725 = vmatpush2.msra.mxu0 0.0
    %1726 = vmatprep.subr.mxu0 0.0
    %1727 = vmatpush2.msra.mxu0 0.0
    %1728 = vmatprep.subr.mxu0 0.0
    %1729 = vmatpush2.msra.mxu0 0.0
    %1730 = vmatprep.mubr.f32.mxu0 0.0
    %1731 = vmatmul.mubr.f32.gmra.mxu0 %v1664
    %v1732 = vpop.f32.mrf.mxu0
    %v1733 = vadd.f32 0.0, %v1732
    %v1734 = vpop.f32.mrf.mxu0
    %v1735 = vadd.f32 0.0, %v1734
    %1736 = vdwg.mxu0
    %v1737 = vld [vmem:[%s739] sm:$0x3]
    %v1738 = vadd.f32 %v1733, %v1737
    %v1739 = vld [vmem:[%s294 + $0x2] sm:$0x3]
    %v1740 = vadd.f32 %v1735, %v1739
    %v1741 = vxor.u32 %v1738, 2147483648
    %v1742 = vmul.f32 %v1741, 1.442695
    %v1743 = vpow.pop %v1742
    %v1744 = vadd.f32 %v1743, 1.0
    %v1745 = vrcp.pop %v1744
    %v1746 = vmul.f32 1.0, %v1745
    %v1747 = vtanh.pop %v1738
    %v1748 = vmul.f32 %v1746, %v1621
    %1750 = vrot.lane.b32.xlu0 %v1747, 64
    %v1751 = vpop.permute.xlu0 %1750
    %v1753 = vmul.f32 %v1746, %v1751
    %1755 = vrot.lane.b32.xlu0 %v1753, 32
    %v1756 = vpop.permute.xlu0 %1755
    %v1758 = vadd.f32 %v1748, %v1756
    %v1759 = vtanh.pop %v1758
    %1761 = vrot.lane.b32.xlu0 %v1759, 64
    %v1762 = vpop.permute.xlu0 %1761
    %v1764 = vmul.f32 %v1746, %v1762
    %v1765 = vxor.u32 %v1740, 2147483648
    %v1766 = vmul.f32 %v1765, 1.442695
    %v1767 = vpow.pop %v1766
    %v1768 = vadd.f32 %v1767, 1.0
    %v1769 = vrcp.pop %v1768
    %v1770 = vmul.f32 1.0, %v1769
    %v1771 = vtanh.pop %v1740
    %v1772 = vmul.f32 %v1770, %v1645
    %1774 = vrot.lane.b32.xlu0 %v1771, 64
    %v1775 = vpop.permute.xlu0 %1774
    %v1777 = vmul.f32 %v1770, %v1775
    %1779 = vrot.lane.b32.xlu0 %v1777, 32
    %v1780 = vpop.permute.xlu0 %1779
    %v1782 = vadd.f32 %v1772, %v1780
    %v1783 = vtanh.pop %v1782
    %1785 = vrot.lane.b32.xlu0 %v1783, 64
    %v1786 = vpop.permute.xlu0 %1785
    %v1788 = vmul.f32 %v1770, %v1786
    %1790 = vrot.lane.b32.xlu0 %v1764, 32
    %v1791 = vpop.permute.xlu0 %1790
    %1793 = vst.msk [vmem:[%s1108] sm:$0x3] %vm961, %v1791
    %1795 = vrot.lane.b32.xlu0 %v1788, 64
    %v1796 = vpop.permute.xlu0 %1795
    %1798 = vst.msk [vmem:[%s1102] sm:$0x3] %vm968, %v1796
    %v1799 = vsel %vm970, %v1791, %v1796
    %v1801 = vsel %vm830, %v1799, 0
    %1803 = vmatprep.subr.mxu0 0.0
    %1804 = vmatpush1.msra.mxu0 0.0
    %1805 = vmatprep.subr.mxu0 0.0
    %1806 = vmatpush1.msra.mxu0 0.0
    %1807 = vmatprep.subr.mxu0 0.0
    %1808 = vmatpush1.msra.mxu0 0.0
    %1809 = vmatprep.subr.mxu0 0.0
    %1810 = vmatpush1.msra.mxu0 0.0
    %1811 = vmatprep.subr.mxu0 0.0
    %1812 = vmatpush1.msra.mxu0 0.0
    %1813 = vmatprep.subr.mxu0 0.0
    %1814 = vmatpush1.msra.mxu0 0.0
    %1815 = vmatprep.subr.mxu0 0.0
    %1816 = vmatpush1.msra.mxu0 0.0
    %1817 = vmatprep.subr.mxu0 0.0
    %1818 = vmatpush1.msra.mxu0 0.0
    %1819 = vmatprep.subr.mxu0 %v99
    %1820 = vmatpush1.msra.mxu0 %v98
    %1821 = vmatprep.subr.mxu0 %v97
    %1822 = vmatpush1.msra.mxu0 %v96
    %1823 = vmatprep.subr.mxu0 %v95
    %1824 = vmatpush1.msra.mxu0 %v94
    %1825 = vmatprep.subr.mxu0 %v93
    %1826 = vmatpush1.msra.mxu0 %v92
    %1827 = vmatprep.subr.mxu0 %v91
    %1828 = vmatpush1.msra.mxu0 %v90
    %1829 = vmatprep.subr.mxu0 %v89
    %1830 = vmatpush1.msra.mxu0 %v88
    %1831 = vmatprep.subr.mxu0 %v87
    %1832 = vmatpush1.msra.mxu0 %v86
    %1833 = vmatprep.subr.mxu0 %v85
    %1834 = vmatpush1.msra.mxu0 %v84
    %1835 = vmatprep.subr.mxu0 0.0
    %1836 = vmatpush2.msra.mxu0 0.0
    %1837 = vmatprep.subr.mxu0 0.0
    %1838 = vmatpush2.msra.mxu0 0.0
    %1839 = vmatprep.subr.mxu0 0.0
    %1840 = vmatpush2.msra.mxu0 0.0
    %1841 = vmatprep.subr.mxu0 0.0
    %1842 = vmatpush2.msra.mxu0 0.0
    %1843 = vmatprep.subr.mxu0 0.0
    %1844 = vmatpush2.msra.mxu0 0.0
    %1845 = vmatprep.subr.mxu0 0.0
    %1846 = vmatpush2.msra.mxu0 0.0
    %1847 = vmatprep.subr.mxu0 0.0
    %1848 = vmatpush2.msra.mxu0 0.0
    %1849 = vmatprep.subr.mxu0 0.0
    %1850 = vmatpush2.msra.mxu0 0.0
    %1851 = vmatprep.subr.mxu0 0.0
    %1852 = vmatpush2.msra.mxu0 0.0
    %1853 = vmatprep.subr.mxu0 0.0
    %1854 = vmatpush2.msra.mxu0 0.0
    %1855 = vmatprep.subr.mxu0 0.0
    %1856 = vmatpush2.msra.mxu0 0.0
    %1857 = vmatprep.subr.mxu0 0.0
    %1858 = vmatpush2.msra.mxu0 0.0
    %1859 = vmatprep.subr.mxu0 0.0
    %1860 = vmatpush2.msra.mxu0 0.0
    %1861 = vmatprep.subr.mxu0 0.0
    %1862 = vmatpush2.msra.mxu0 0.0
    %1863 = vmatprep.subr.mxu0 0.0
    %1864 = vmatpush2.msra.mxu0 0.0
    %1865 = vmatprep.subr.mxu0 0.0
    %1866 = vmatpush2.msra.mxu0 0.0
    %1867 = vmatprep.mubr.f32.mxu0 0.0
    %1868 = vmatmul.mubr.f32.gmra.mxu0 %v1801
    %v1869 = vpop.f32.mrf.mxu0
    %v1870 = vadd.f32 0.0, %v1869
    %v1871 = vpop.f32.mrf.mxu0
    %v1872 = vadd.f32 0.0, %v1871
    %1873 = vdwg.mxu0
    %v1874 = vld [vmem:[%s828] sm:$0x3]
    %v1875 = vadd.f32 %v1870, %v1874
    %v1876 = vld [vmem:[#allocation3 + $0x2] sm:$0x3]
    %v1877 = vadd.f32 %v1872, %v1876
    %v1878 = vxor.u32 %v1875, 2147483648
    %v1879 = vmul.f32 %v1878, 1.442695
    %v1880 = vpow.pop %v1879
    %v1881 = vadd.f32 %v1880, 1.0
    %v1882 = vrcp.pop %v1881
    %v1883 = vmul.f32 1.0, %v1882
    %v1884 = vtanh.pop %v1875
    %v1885 = vmul.f32 %v1883, %v1758
    %1887 = vrot.lane.b32.xlu0 %v1884, 64
    %v1888 = vpop.permute.xlu0 %1887
    %v1890 = vmul.f32 %v1883, %v1888
    %1892 = vrot.lane.b32.xlu0 %v1890, 32
    %v1893 = vpop.permute.xlu0 %1892
    %v1895 = vadd.f32 %v1885, %v1893
    %v1896 = vtanh.pop %v1895
    %1898 = vrot.lane.b32.xlu0 %v1896, 64
    %v1899 = vpop.permute.xlu0 %1898
    %v1901 = vmul.f32 %v1883, %v1899
    %v1902 = vxor.u32 %v1877, 2147483648
    %v1903 = vmul.f32 %v1902, 1.442695
    %v1904 = vpow.pop %v1903
    %v1905 = vadd.f32 %v1904, 1.0
    %v1906 = vrcp.pop %v1905
    %v1907 = vmul.f32 1.0, %v1906
    %v1908 = vtanh.pop %v1877
    %v1909 = vmul.f32 %v1907, %v1782
    %1911 = vrot.lane.b32.xlu0 %v1908, 64
    %v1912 = vpop.permute.xlu0 %1911
    %v1914 = vmul.f32 %v1907, %v1912
    %1916 = vrot.lane.b32.xlu0 %v1914, 32
    %v1917 = vpop.permute.xlu0 %1916
    %v1919 = vadd.f32 %v1909, %v1917
    %v1920 = vtanh.pop %v1919
    %1922 = vrot.lane.b32.xlu0 %v1920, 64
    %v1923 = vpop.permute.xlu0 %1922
    %v1925 = vmul.f32 %v1907, %v1923
    %1927 = vrot.lane.b32.xlu0 %v1901, 32
    %v1928 = vpop.permute.xlu0 %1927
    %1930 = vst.msk [vmem:[%s967] sm:$0x3] %vm961, %v1928
    %1932 = vrot.lane.b32.xlu0 %v1925, 64
    %v1933 = vpop.permute.xlu0 %1932
    %1935 = vst.msk [vmem:[#allocation2] sm:$0x3] %vm968, %v1933
    %v1936 = vld [vmem:[#allocation8] sm:$0xff]
    %v1937 = vld [vmem:[#allocation8 + $0x8] sm:$0xff]
    %v1938 = vld [vmem:[#allocation8 + $0x10] sm:$0xff]
    %v1939 = vld [vmem:[#allocation8 + $0x18] sm:$0xff]
    %v1940 = vld [vmem:[#allocation8 + $0x20] sm:$0xff]
    %v1941 = vld [vmem:[#allocation8 + $0x28] sm:$0xff]
    %v1942 = vld [vmem:[#allocation8 + $0x30] sm:$0xff]
    %v1943 = vld [vmem:[#allocation8 + $0x38] sm:$0xff]
    %v1944 = vld [vmem:[#allocation8 + $0x40] sm:$0xff]
    %v1945 = vld [vmem:[#allocation8 + $0x48] sm:$0xff]
    %v1946 = vld [vmem:[#allocation8 + $0x50] sm:$0xff]
    %v1947 = vld [vmem:[#allocation8 + $0x58] sm:$0xff]
    %v1948 = vld [vmem:[#allocation8 + $0x60] sm:$0xff]
    %v1949 = vld [vmem:[#allocation8 + $0x68] sm:$0xff]
    %v1950 = vld [vmem:[#allocation8 + $0x70] sm:$0xff]
    %v1951 = vld [vmem:[#allocation8 + $0x78] sm:$0xff]
    %v1952 = vld [vmem:[#allocation10] sm:$0xff]
    %v1953 = vld [vmem:[#allocation10 + $0x8] sm:$0xff]
    %v1954 = vld [vmem:[#allocation10 + $0x10] sm:$0xff]
    %v1955 = vld [vmem:[#allocation10 + $0x18] sm:$0xff]
    %v1956 = vld [vmem:[#allocation10 + $0x20] sm:$0xff]
    %v1957 = vld [vmem:[#allocation10 + $0x28] sm:$0xff]
    %v1958 = vld [vmem:[#allocation10 + $0x30] sm:$0xff]
    %v1959 = vld [vmem:[#allocation10 + $0x38] sm:$0xff]
    %v1960 = vld [vmem:[#allocation10 + $0x40] sm:$0xff]
    %v1961 = vld [vmem:[#allocation10 + $0x48] sm:$0xff]
    %v1962 = vld [vmem:[#allocation10 + $0x50] sm:$0xff]
    %v1963 = vld [vmem:[#allocation10 + $0x58] sm:$0xff]
    %v1964 = vld [vmem:[#allocation10 + $0x60] sm:$0xff]
    %v1965 = vld [vmem:[#allocation10 + $0x68] sm:$0xff]
    %v1966 = vld [vmem:[#allocation10 + $0x70] sm:$0xff]
    %v1967 = vld [vmem:[#allocation10 + $0x78] sm:$0xff]
    %v1968 = vld [vmem:[%s6] sm:$0x3]
    %v1969 = vld [vmem:[#allocation2] sm:$0x3]
    %v1971 = vlaneseq
    %v1972 = vshrl.u32 %v1971, 7
    %v1973 = vsub.s32 0, %v1972
    %v1974 = vrot.slane %v1968, %v1973
    %v1975 = vlaneseq
    %v1976 = vshrl.u32 %v1975, 7
    %v1977 = vsub.s32 1, %v1976
    %v1978 = vrot.slane %v1968, %v1977
    %v1982 = vsel %vm830, %v1969, 0
    %1984 = vmatprep.subr.mxu0 0.0
    %1985 = vmatpush1.msra.mxu0 0.0
    %1986 = vmatprep.subr.mxu0 0.0
    %1987 = vmatpush1.msra.mxu0 0.0
    %1988 = vmatprep.subr.mxu0 0.0
    %1989 = vmatpush1.msra.mxu0 0.0
    %1990 = vmatprep.subr.mxu0 0.0
    %1991 = vmatpush1.msra.mxu0 0.0
    %1992 = vmatprep.subr.mxu0 0.0
    %1993 = vmatpush1.msra.mxu0 0.0
    %1994 = vmatprep.subr.mxu0 0.0
    %1995 = vmatpush1.msra.mxu0 0.0
    %1996 = vmatprep.subr.mxu0 0.0
    %1997 = vmatpush1.msra.mxu0 0.0
    %1998 = vmatprep.subr.mxu0 0.0
    %1999 = vmatpush1.msra.mxu0 0.0
    %2000 = vmatprep.subr.mxu0 %v1951
    %2001 = vmatpush1.msra.mxu0 %v1950
    %2002 = vmatprep.subr.mxu0 %v1949
    %2003 = vmatpush1.msra.mxu0 %v1948
    %2004 = vmatprep.subr.mxu0 %v1947
    %2005 = vmatpush1.msra.mxu0 %v1946
    %2006 = vmatprep.subr.mxu0 %v1945
    %2007 = vmatpush1.msra.mxu0 %v1944
    %2008 = vmatprep.subr.mxu0 %v1943
    %2009 = vmatpush1.msra.mxu0 %v1942
    %2010 = vmatprep.subr.mxu0 %v1941
    %2011 = vmatpush1.msra.mxu0 %v1940
    %2012 = vmatprep.subr.mxu0 %v1939
    %2013 = vmatpush1.msra.mxu0 %v1938
    %2014 = vmatprep.subr.mxu0 %v1937
    %2015 = vmatpush1.msra.mxu0 %v1936
    %2016 = vmatprep.subr.mxu0 0.0
    %2017 = vmatpush2.msra.mxu0 0.0
    %2018 = vmatprep.subr.mxu0 0.0
    %2019 = vmatpush2.msra.mxu0 0.0
    %2020 = vmatprep.subr.mxu0 0.0
    %2021 = vmatpush2.msra.mxu0 0.0
    %2022 = vmatprep.subr.mxu0 0.0
    %2023 = vmatpush2.msra.mxu0 0.0
    %2024 = vmatprep.subr.mxu0 0.0
    %2025 = vmatpush2.msra.mxu0 0.0
    %2026 = vmatprep.subr.mxu0 0.0
    %2027 = vmatpush2.msra.mxu0 0.0
    %2028 = vmatprep.subr.mxu0 0.0
    %2029 = vmatpush2.msra.mxu0 0.0
    %2030 = vmatprep.subr.mxu0 0.0
    %2031 = vmatpush2.msra.mxu0 0.0
    %2032 = vmatprep.subr.mxu0 0.0
    %2033 = vmatpush2.msra.mxu0 0.0
    %2034 = vmatprep.subr.mxu0 0.0
    %2035 = vmatpush2.msra.mxu0 0.0
    %2036 = vmatprep.subr.mxu0 0.0
    %2037 = vmatpush2.msra.mxu0 0.0
    %2038 = vmatprep.subr.mxu0 0.0
    %2039 = vmatpush2.msra.mxu0 0.0
    %2040 = vmatprep.subr.mxu0 0.0
    %2041 = vmatpush2.msra.mxu0 0.0
    %2042 = vmatprep.subr.mxu0 0.0
    %2043 = vmatpush2.msra.mxu0 0.0
    %2044 = vmatprep.subr.mxu0 0.0
    %2045 = vmatpush2.msra.mxu0 0.0
    %2046 = vmatprep.subr.mxu0 0.0
    %2047 = vmatpush2.msra.mxu0 0.0
    %2048 = vmatprep.mubr.f32.mxu0 0.0
    %2049 = vmatmul.mubr.f32.gmra.mxu0 %v1982
    %v2050 = vpop.f32.mrf.mxu0
    %v2051 = vadd.f32 %v1974, %v2050
    %v2052 = vpop.f32.mrf.mxu0
    %v2053 = vadd.f32 %v1978, %v2052
    %2054 = vdwg.mxu0
    %v2057 = vcombine.low %v2051, %v2053
    %v2059 = vunpack.c.l.s4 1983009808
    %v2060 = vunpack.c.0.s8 %v2059
    %v2061 = vlaneseq
    %v2062 = vshrl.u32 %v2061, 7
    %v2063 = vsub.s32 %v2060, %v2062
    %v2064 = vrot.slane %v2057, %v2063
    %2066 = vst [vmem:[#allocation3] sm:$0xf] %v2064
    %v2067 = vld [vmem:[%s1102] sm:$0x3]
    %v2069 = vsel %vm830, %v2067, 0
    %2071 = vmatprep.subr.mxu0 0.0
    %2072 = vmatpush1.msra.mxu0 0.0
    %2073 = vmatprep.subr.mxu0 0.0
    %2074 = vmatpush1.msra.mxu0 0.0
    %2075 = vmatprep.subr.mxu0 0.0
    %2076 = vmatpush1.msra.mxu0 0.0
    %2077 = vmatprep.subr.mxu0 0.0
    %2078 = vmatpush1.msra.mxu0 0.0
    %2079 = vmatprep.subr.mxu0 0.0
    %2080 = vmatpush1.msra.mxu0 0.0
    %2081 = vmatprep.subr.mxu0 0.0
    %2082 = vmatpush1.msra.mxu0 0.0
    %2083 = vmatprep.subr.mxu0 0.0
    %2084 = vmatpush1.msra.mxu0 0.0
    %2085 = vmatprep.subr.mxu0 0.0
    %2086 = vmatpush1.msra.mxu0 0.0
    %2087 = vmatprep.subr.mxu0 %v1951
    %2088 = vmatpush1.msra.mxu0 %v1950
    %2089 = vmatprep.subr.mxu0 %v1949
    %2090 = vmatpush1.msra.mxu0 %v1948
    %2091 = vmatprep.subr.mxu0 %v1947
    %2092 = vmatpush1.msra.mxu0 %v1946
    %2093 = vmatprep.subr.mxu0 %v1945
    %2094 = vmatpush1.msra.mxu0 %v1944
    %2095 = vmatprep.subr.mxu0 %v1943
    %2096 = vmatpush1.msra.mxu0 %v1942
    %2097 = vmatprep.subr.mxu0 %v1941
    %2098 = vmatpush1.msra.mxu0 %v1940
    %2099 = vmatprep.subr.mxu0 %v1939
    %2100 = vmatpush1.msra.mxu0 %v1938
    %2101 = vmatprep.subr.mxu0 %v1937
    %2102 = vmatpush1.msra.mxu0 %v1936
    %2103 = vmatprep.subr.mxu0 0.0
    %2104 = vmatpush2.msra.mxu0 0.0
    %2105 = vmatprep.subr.mxu0 0.0
    %2106 = vmatpush2.msra.mxu0 0.0
    %2107 = vmatprep.subr.mxu0 0.0
    %2108 = vmatpush2.msra.mxu0 0.0
    %2109 = vmatprep.subr.mxu0 0.0
    %2110 = vmatpush2.msra.mxu0 0.0
    %2111 = vmatprep.subr.mxu0 0.0
    %2112 = vmatpush2.msra.mxu0 0.0
    %2113 = vmatprep.subr.mxu0 0.0
    %2114 = vmatpush2.msra.mxu0 0.0
    %2115 = vmatprep.subr.mxu0 0.0
    %2116 = vmatpush2.msra.mxu0 0.0
    %2117 = vmatprep.subr.mxu0 0.0
    %2118 = vmatpush2.msra.mxu0 0.0
    %2119 = vmatprep.subr.mxu0 0.0
    %2120 = vmatpush2.msra.mxu0 0.0
    %2121 = vmatprep.subr.mxu0 0.0
    %2122 = vmatpush2.msra.mxu0 0.0
    %2123 = vmatprep.subr.mxu0 0.0
    %2124 = vmatpush2.msra.mxu0 0.0
    %2125 = vmatprep.subr.mxu0 0.0
    %2126 = vmatpush2.msra.mxu0 0.0
    %2127 = vmatprep.subr.mxu0 0.0
    %2128 = vmatpush2.msra.mxu0 0.0
    %2129 = vmatprep.subr.mxu0 0.0
    %2130 = vmatpush2.msra.mxu0 0.0
    %2131 = vmatprep.subr.mxu0 0.0
    %2132 = vmatpush2.msra.mxu0 0.0
    %2133 = vmatprep.subr.mxu0 0.0
    %2134 = vmatpush2.msra.mxu0 0.0
    %2135 = vmatprep.mubr.f32.mxu0 0.0
    %2136 = vmatmul.mubr.f32.gmra.mxu0 %v2069
    %v2137 = vpop.f32.mrf.mxu0
    %v2138 = vadd.f32 %v1974, %v2137
    %v2139 = vpop.f32.mrf.mxu0
    %v2140 = vadd.f32 %v1978, %v2139
    %2141 = vdwg.mxu0
    %v2144 = vcombine.low %v2138, %v2140
    %v2146 = vunpack.c.l.s4 1983009808
    %v2147 = vunpack.c.0.s8 %v2146
    %v2148 = vlaneseq
    %v2149 = vshrl.u32 %v2148, 7
    %v2150 = vsub.s32 %v2147, %v2149
    %v2151 = vrot.slane %v2144, %v2150
    %2153 = vst [vmem:[%s294] sm:$0xf] %v2151
    %v2154 = vld [vmem:[%s1241] sm:$0x3]
    %v2156 = vsel %vm830, %v2154, 0
    %2158 = vmatprep.subr.mxu0 0.0
    %2159 = vmatpush1.msra.mxu0 0.0
    %2160 = vmatprep.subr.mxu0 0.0
    %2161 = vmatpush1.msra.mxu0 0.0
    %2162 = vmatprep.subr.mxu0 0.0
    %2163 = vmatpush1.msra.mxu0 0.0
    %2164 = vmatprep.subr.mxu0 0.0
    %2165 = vmatpush1.msra.mxu0 0.0
    %2166 = vmatprep.subr.mxu0 0.0
    %2167 = vmatpush1.msra.mxu0 0.0
    %2168 = vmatprep.subr.mxu0 0.0
    %2169 = vmatpush1.msra.mxu0 0.0
    %2170 = vmatprep.subr.mxu0 0.0
    %2171 = vmatpush1.msra.mxu0 0.0
    %2172 = vmatprep.subr.mxu0 0.0
    %2173 = vmatpush1.msra.mxu0 0.0
    %2174 = vmatprep.subr.mxu0 %v1951
    %2175 = vmatpush1.msra.mxu0 %v1950
    %2176 = vmatprep.subr.mxu0 %v1949
    %2177 = vmatpush1.msra.mxu0 %v1948
    %2178 = vmatprep.subr.mxu0 %v1947
    %2179 = vmatpush1.msra.mxu0 %v1946
    %2180 = vmatprep.subr.mxu0 %v1945
    %2181 = vmatpush1.msra.mxu0 %v1944
    %2182 = vmatprep.subr.mxu0 %v1943
    %2183 = vmatpush1.msra.mxu0 %v1942
    %2184 = vmatprep.subr.mxu0 %v1941
    %2185 = vmatpush1.msra.mxu0 %v1940
    %2186 = vmatprep.subr.mxu0 %v1939
    %2187 = vmatpush1.msra.mxu0 %v1938
    %2188 = vmatprep.subr.mxu0 %v1937
    %2189 = vmatpush1.msra.mxu0 %v1936
    %2190 = vmatprep.subr.mxu0 0.0
    %2191 = vmatpush2.msra.mxu0 0.0
    %2192 = vmatprep.subr.mxu0 0.0
    %2193 = vmatpush2.msra.mxu0 0.0
    %2194 = vmatprep.subr.mxu0 0.0
    %2195 = vmatpush2.msra.mxu0 0.0
    %2196 = vmatprep.subr.mxu0 0.0
    %2197 = vmatpush2.msra.mxu0 0.0
    %2198 = vmatprep.subr.mxu0 0.0
    %2199 = vmatpush2.msra.mxu0 0.0
    %2200 = vmatprep.subr.mxu0 0.0
    %2201 = vmatpush2.msra.mxu0 0.0
    %2202 = vmatprep.subr.mxu0 0.0
    %2203 = vmatpush2.msra.mxu0 0.0
    %2204 = vmatprep.subr.mxu0 0.0
    %2205 = vmatpush2.msra.mxu0 0.0
    %2206 = vmatprep.subr.mxu0 0.0
    %2207 = vmatpush2.msra.mxu0 0.0
    %2208 = vmatprep.subr.mxu0 0.0
    %2209 = vmatpush2.msra.mxu0 0.0
    %2210 = vmatprep.subr.mxu0 0.0
    %2211 = vmatpush2.msra.mxu0 0.0
    %2212 = vmatprep.subr.mxu0 0.0
    %2213 = vmatpush2.msra.mxu0 0.0
    %2214 = vmatprep.subr.mxu0 0.0
    %2215 = vmatpush2.msra.mxu0 0.0
    %2216 = vmatprep.subr.mxu0 0.0
    %2217 = vmatpush2.msra.mxu0 0.0
    %2218 = vmatprep.subr.mxu0 0.0
    %2219 = vmatpush2.msra.mxu0 0.0
    %2220 = vmatprep.subr.mxu0 0.0
    %2221 = vmatpush2.msra.mxu0 0.0
    %2222 = vmatprep.mubr.f32.mxu0 0.0
    %2223 = vmatmul.mubr.f32.gmra.mxu0 %v2156
    %v2224 = vpop.f32.mrf.mxu0
    %v2225 = vadd.f32 %v1974, %v2224
    %v2226 = vpop.f32.mrf.mxu0
    %v2227 = vadd.f32 %v1978, %v2226
    %2228 = vdwg.mxu0
    %v2231 = vcombine.low %v2225, %v2227
    %v2233 = vunpack.c.l.s4 1983009808
    %v2234 = vunpack.c.0.s8 %v2233
    %v2235 = vlaneseq
    %v2236 = vshrl.u32 %v2235, 7
    %v2237 = vsub.s32 %v2234, %v2236
    %v2238 = vrot.slane %v2231, %v2237
    %2240 = vst [vmem:[%s383] sm:$0xf] %v2238
    %v2241 = vld [vmem:[%s1380] sm:$0x3]
    %v2243 = vsel %vm830, %v2241, 0
    %2245 = vmatprep.subr.mxu0 0.0
    %2246 = vmatpush1.msra.mxu0 0.0
    %2247 = vmatprep.subr.mxu0 0.0
    %2248 = vmatpush1.msra.mxu0 0.0
    %2249 = vmatprep.subr.mxu0 0.0
    %2250 = vmatpush1.msra.mxu0 0.0
    %2251 = vmatprep.subr.mxu0 0.0
    %2252 = vmatpush1.msra.mxu0 0.0
    %2253 = vmatprep.subr.mxu0 0.0
    %2254 = vmatpush1.msra.mxu0 0.0
    %2255 = vmatprep.subr.mxu0 0.0
    %2256 = vmatpush1.msra.mxu0 0.0
    %2257 = vmatprep.subr.mxu0 0.0
    %2258 = vmatpush1.msra.mxu0 0.0
    %2259 = vmatprep.subr.mxu0 0.0
    %2260 = vmatpush1.msra.mxu0 0.0
    %2261 = vmatprep.subr.mxu0 %v1951
    %2262 = vmatpush1.msra.mxu0 %v1950
    %2263 = vmatprep.subr.mxu0 %v1949
    %2264 = vmatpush1.msra.mxu0 %v1948
    %2265 = vmatprep.subr.mxu0 %v1947
    %2266 = vmatpush1.msra.mxu0 %v1946
    %2267 = vmatprep.subr.mxu0 %v1945
    %2268 = vmatpush1.msra.mxu0 %v1944
    %2269 = vmatprep.subr.mxu0 %v1943
    %2270 = vmatpush1.msra.mxu0 %v1942
    %2271 = vmatprep.subr.mxu0 %v1941
    %2272 = vmatpush1.msra.mxu0 %v1940
    %2273 = vmatprep.subr.mxu0 %v1939
    %2274 = vmatpush1.msra.mxu0 %v1938
    %2275 = vmatprep.subr.mxu0 %v1937
    %2276 = vmatpush1.msra.mxu0 %v1936
    %2277 = vmatprep.subr.mxu0 0.0
    %2278 = vmatpush2.msra.mxu0 0.0
    %2279 = vmatprep.subr.mxu0 0.0
    %2280 = vmatpush2.msra.mxu0 0.0
    %2281 = vmatprep.subr.mxu0 0.0
    %2282 = vmatpush2.msra.mxu0 0.0
    %2283 = vmatprep.subr.mxu0 0.0
    %2284 = vmatpush2.msra.mxu0 0.0
    %2285 = vmatprep.subr.mxu0 0.0
    %2286 = vmatpush2.msra.mxu0 0.0
    %2287 = vmatprep.subr.mxu0 0.0
    %2288 = vmatpush2.msra.mxu0 0.0
    %2289 = vmatprep.subr.mxu0 0.0
    %2290 = vmatpush2.msra.mxu0 0.0
    %2291 = vmatprep.subr.mxu0 0.0
    %2292 = vmatpush2.msra.mxu0 0.0
    %2293 = vmatprep.subr.mxu0 0.0
    %2294 = vmatpush2.msra.mxu0 0.0
    %2295 = vmatprep.subr.mxu0 0.0
    %2296 = vmatpush2.msra.mxu0 0.0
    %2297 = vmatprep.subr.mxu0 0.0
    %2298 = vmatpush2.msra.mxu0 0.0
    %2299 = vmatprep.subr.mxu0 0.0
    %2300 = vmatpush2.msra.mxu0 0.0
    %2301 = vmatprep.subr.mxu0 0.0
    %2302 = vmatpush2.msra.mxu0 0.0
    %2303 = vmatprep.subr.mxu0 0.0
    %2304 = vmatpush2.msra.mxu0 0.0
    %2305 = vmatprep.subr.mxu0 0.0
    %2306 = vmatpush2.msra.mxu0 0.0
    %2307 = vmatprep.subr.mxu0 0.0
    %2308 = vmatpush2.msra.mxu0 0.0
    %2309 = vmatprep.mubr.f32.mxu0 0.0
    %2310 = vmatmul.mubr.f32.gmra.mxu0 %v2243
    %v2311 = vpop.f32.mrf.mxu0
    %v2312 = vadd.f32 %v1974, %v2311
    %v2313 = vpop.f32.mrf.mxu0
    %v2314 = vadd.f32 %v1978, %v2313
    %2315 = vdwg.mxu0
    %v2318 = vcombine.low %v2312, %v2314
    %v2320 = vunpack.c.l.s4 1983009808
    %v2321 = vunpack.c.0.s8 %v2320
    %v2322 = vlaneseq
    %v2323 = vshrl.u32 %v2322, 7
    %v2324 = vsub.s32 %v2321, %v2323
    %v2325 = vrot.slane %v2318, %v2324
    %2327 = vst [vmem:[%s472] sm:$0xf] %v2325
    %v2328 = vld [vmem:[%s1386] sm:$0x3]
    %v2330 = vsel %vm830, %v2328, 0
    %2332 = vmatprep.subr.mxu0 0.0
    %2333 = vmatpush1.msra.mxu0 0.0
    %2334 = vmatprep.subr.mxu0 0.0
    %2335 = vmatpush1.msra.mxu0 0.0
    %2336 = vmatprep.subr.mxu0 0.0
    %2337 = vmatpush1.msra.mxu0 0.0
    %2338 = vmatprep.subr.mxu0 0.0
    %2339 = vmatpush1.msra.mxu0 0.0
    %2340 = vmatprep.subr.mxu0 0.0
    %2341 = vmatpush1.msra.mxu0 0.0
    %2342 = vmatprep.subr.mxu0 0.0
    %2343 = vmatpush1.msra.mxu0 0.0
    %2344 = vmatprep.subr.mxu0 0.0
    %2345 = vmatpush1.msra.mxu0 0.0
    %2346 = vmatprep.subr.mxu0 0.0
    %2347 = vmatpush1.msra.mxu0 0.0
    %2348 = vmatprep.subr.mxu0 %v1951
    %2349 = vmatpush1.msra.mxu0 %v1950
    %2350 = vmatprep.subr.mxu0 %v1949
    %2351 = vmatpush1.msra.mxu0 %v1948
    %2352 = vmatprep.subr.mxu0 %v1947
    %2353 = vmatpush1.msra.mxu0 %v1946
    %2354 = vmatprep.subr.mxu0 %v1945
    %2355 = vmatpush1.msra.mxu0 %v1944
    %2356 = vmatprep.subr.mxu0 %v1943
    %2357 = vmatpush1.msra.mxu0 %v1942
    %2358 = vmatprep.subr.mxu0 %v1941
    %2359 = vmatpush1.msra.mxu0 %v1940
    %2360 = vmatprep.subr.mxu0 %v1939
    %2361 = vmatpush1.msra.mxu0 %v1938
    %2362 = vmatprep.subr.mxu0 %v1937
    %2363 = vmatpush1.msra.mxu0 %v1936
    %2364 = vmatprep.subr.mxu0 0.0
    %2365 = vmatpush2.msra.mxu0 0.0
    %2366 = vmatprep.subr.mxu0 0.0
    %2367 = vmatpush2.msra.mxu0 0.0
    %2368 = vmatprep.subr.mxu0 0.0
    %2369 = vmatpush2.msra.mxu0 0.0
    %2370 = vmatprep.subr.mxu0 0.0
    %2371 = vmatpush2.msra.mxu0 0.0
    %2372 = vmatprep.subr.mxu0 0.0
    %2373 = vmatpush2.msra.mxu0 0.0
    %2374 = vmatprep.subr.mxu0 0.0
    %2375 = vmatpush2.msra.mxu0 0.0
    %2376 = vmatprep.subr.mxu0 0.0
    %2377 = vmatpush2.msra.mxu0 0.0
    %2378 = vmatprep.subr.mxu0 0.0
    %2379 = vmatpush2.msra.mxu0 0.0
    %2380 = vmatprep.subr.mxu0 0.0
    %2381 = vmatpush2.msra.mxu0 0.0
    %2382 = vmatprep.subr.mxu0 0.0
    %2383 = vmatpush2.msra.mxu0 0.0
    %2384 = vmatprep.subr.mxu0 0.0
    %2385 = vmatpush2.msra.mxu0 0.0
    %2386 = vmatprep.subr.mxu0 0.0
    %2387 = vmatpush2.msra.mxu0 0.0
    %2388 = vmatprep.subr.mxu0 0.0
    %2389 = vmatpush2.msra.mxu0 0.0
    %2390 = vmatprep.subr.mxu0 0.0
    %2391 = vmatpush2.msra.mxu0 0.0
    %2392 = vmatprep.subr.mxu0 0.0
    %2393 = vmatpush2.msra.mxu0 0.0
    %2394 = vmatprep.subr.mxu0 0.0
    %2395 = vmatpush2.msra.mxu0 0.0
    %2396 = vmatprep.mubr.f32.mxu0 0.0
    %2397 = vmatmul.mubr.f32.gmra.mxu0 %v2330
    %v2398 = vpop.f32.mrf.mxu0
    %v2399 = vadd.f32 %v1974, %v2398
    %v2400 = vpop.f32.mrf.mxu0
    %v2401 = vadd.f32 %v1978, %v2400
    %2402 = vdwg.mxu0
    %v2405 = vcombine.low %v2399, %v2401
    %v2407 = vunpack.c.l.s4 1983009808
    %v2408 = vunpack.c.0.s8 %v2407
    %v2409 = vlaneseq
    %v2410 = vshrl.u32 %v2409, 7
    %v2411 = vsub.s32 %v2408, %v2410
    %v2412 = vrot.slane %v2405, %v2411
    %2414 = vst [vmem:[%s561] sm:$0xf] %v2412
    %v2415 = vld [vmem:[%s1247] sm:$0x3]
    %v2417 = vsel %vm830, %v2415, 0
    %2419 = vmatprep.subr.mxu0 0.0
    %2420 = vmatpush1.msra.mxu0 0.0
    %2421 = vmatprep.subr.mxu0 0.0
    %2422 = vmatpush1.msra.mxu0 0.0
    %2423 = vmatprep.subr.mxu0 0.0
    %2424 = vmatpush1.msra.mxu0 0.0
    %2425 = vmatprep.subr.mxu0 0.0
    %2426 = vmatpush1.msra.mxu0 0.0
    %2427 = vmatprep.subr.mxu0 0.0
    %2428 = vmatpush1.msra.mxu0 0.0
    %2429 = vmatprep.subr.mxu0 0.0
    %2430 = vmatpush1.msra.mxu0 0.0
    %2431 = vmatprep.subr.mxu0 0.0
    %2432 = vmatpush1.msra.mxu0 0.0
    %2433 = vmatprep.subr.mxu0 0.0
    %2434 = vmatpush1.msra.mxu0 0.0
    %2435 = vmatprep.subr.mxu0 %v1951
    %2436 = vmatpush1.msra.mxu0 %v1950
    %2437 = vmatprep.subr.mxu0 %v1949
    %2438 = vmatpush1.msra.mxu0 %v1948
    %2439 = vmatprep.subr.mxu0 %v1947
    %2440 = vmatpush1.msra.mxu0 %v1946
    %2441 = vmatprep.subr.mxu0 %v1945
    %2442 = vmatpush1.msra.mxu0 %v1944
    %2443 = vmatprep.subr.mxu0 %v1943
    %2444 = vmatpush1.msra.mxu0 %v1942
    %2445 = vmatprep.subr.mxu0 %v1941
    %2446 = vmatpush1.msra.mxu0 %v1940
    %2447 = vmatprep.subr.mxu0 %v1939
    %2448 = vmatpush1.msra.mxu0 %v1938
    %2449 = vmatprep.subr.mxu0 %v1937
    %2450 = vmatpush1.msra.mxu0 %v1936
    %2451 = vmatprep.subr.mxu0 0.0
    %2452 = vmatpush2.msra.mxu0 0.0
    %2453 = vmatprep.subr.mxu0 0.0
    %2454 = vmatpush2.msra.mxu0 0.0
    %2455 = vmatprep.subr.mxu0 0.0
    %2456 = vmatpush2.msra.mxu0 0.0
    %2457 = vmatprep.subr.mxu0 0.0
    %2458 = vmatpush2.msra.mxu0 0.0
    %2459 = vmatprep.subr.mxu0 0.0
    %2460 = vmatpush2.msra.mxu0 0.0
    %2461 = vmatprep.subr.mxu0 0.0
    %2462 = vmatpush2.msra.mxu0 0.0
    %2463 = vmatprep.subr.mxu0 0.0
    %2464 = vmatpush2.msra.mxu0 0.0
    %2465 = vmatprep.subr.mxu0 0.0
    %2466 = vmatpush2.msra.mxu0 0.0
    %2467 = vmatprep.subr.mxu0 0.0
    %2468 = vmatpush2.msra.mxu0 0.0
    %2469 = vmatprep.subr.mxu0 0.0
    %2470 = vmatpush2.msra.mxu0 0.0
    %2471 = vmatprep.subr.mxu0 0.0
    %2472 = vmatpush2.msra.mxu0 0.0
    %2473 = vmatprep.subr.mxu0 0.0
    %2474 = vmatpush2.msra.mxu0 0.0
    %2475 = vmatprep.subr.mxu0 0.0
    %2476 = vmatpush2.msra.mxu0 0.0
    %2477 = vmatprep.subr.mxu0 0.0
    %2478 = vmatpush2.msra.mxu0 0.0
    %2479 = vmatprep.subr.mxu0 0.0
    %2480 = vmatpush2.msra.mxu0 0.0
    %2481 = vmatprep.subr.mxu0 0.0
    %2482 = vmatpush2.msra.mxu0 0.0
    %2483 = vmatprep.mubr.f32.mxu0 0.0
    %2484 = vmatmul.mubr.f32.gmra.mxu0 %v2417
    %v2485 = vpop.f32.mrf.mxu0
    %v2486 = vadd.f32 %v1974, %v2485
    %v2487 = vpop.f32.mrf.mxu0
    %v2488 = vadd.f32 %v1978, %v2487
    %2489 = vdwg.mxu0
    %v2492 = vcombine.low %v2486, %v2488
    %v2494 = vunpack.c.l.s4 1983009808
    %v2495 = vunpack.c.0.s8 %v2494
    %v2496 = vlaneseq
    %v2497 = vshrl.u32 %v2496, 7
    %v2498 = vsub.s32 %v2495, %v2497
    %v2499 = vrot.slane %v2492, %v2498
    %2501 = vst [vmem:[%s650] sm:$0xf] %v2499
    %v2502 = vld [vmem:[%s1108] sm:$0x3]
    %v2504 = vsel %vm830, %v2502, 0
    %2506 = vmatprep.subr.mxu0 0.0
    %2507 = vmatpush1.msra.mxu0 0.0
    %2508 = vmatprep.subr.mxu0 0.0
    %2509 = vmatpush1.msra.mxu0 0.0
    %2510 = vmatprep.subr.mxu0 0.0
    %2511 = vmatpush1.msra.mxu0 0.0
    %2512 = vmatprep.subr.mxu0 0.0
    %2513 = vmatpush1.msra.mxu0 0.0
    %2514 = vmatprep.subr.mxu0 0.0
    %2515 = vmatpush1.msra.mxu0 0.0
    %2516 = vmatprep.subr.mxu0 0.0
    %2517 = vmatpush1.msra.mxu0 0.0
    %2518 = vmatprep.subr.mxu0 0.0
    %2519 = vmatpush1.msra.mxu0 0.0
    %2520 = vmatprep.subr.mxu0 0.0
    %2521 = vmatpush1.msra.mxu0 0.0
    %2522 = vmatprep.subr.mxu0 %v1951
    %2523 = vmatpush1.msra.mxu0 %v1950
    %2524 = vmatprep.subr.mxu0 %v1949
    %2525 = vmatpush1.msra.mxu0 %v1948
    %2526 = vmatprep.subr.mxu0 %v1947
    %2527 = vmatpush1.msra.mxu0 %v1946
    %2528 = vmatprep.subr.mxu0 %v1945
    %2529 = vmatpush1.msra.mxu0 %v1944
    %2530 = vmatprep.subr.mxu0 %v1943
    %2531 = vmatpush1.msra.mxu0 %v1942
    %2532 = vmatprep.subr.mxu0 %v1941
    %2533 = vmatpush1.msra.mxu0 %v1940
    %2534 = vmatprep.subr.mxu0 %v1939
    %2535 = vmatpush1.msra.mxu0 %v1938
    %2536 = vmatprep.subr.mxu0 %v1937
    %2537 = vmatpush1.msra.mxu0 %v1936
    %2538 = vmatprep.subr.mxu0 0.0
    %2539 = vmatpush2.msra.mxu0 0.0
    %2540 = vmatprep.subr.mxu0 0.0
    %2541 = vmatpush2.msra.mxu0 0.0
    %2542 = vmatprep.subr.mxu0 0.0
    %2543 = vmatpush2.msra.mxu0 0.0
    %2544 = vmatprep.subr.mxu0 0.0
    %2545 = vmatpush2.msra.mxu0 0.0
    %2546 = vmatprep.subr.mxu0 0.0
    %2547 = vmatpush2.msra.mxu0 0.0
    %2548 = vmatprep.subr.mxu0 0.0
    %2549 = vmatpush2.msra.mxu0 0.0
    %2550 = vmatprep.subr.mxu0 0.0
    %2551 = vmatpush2.msra.mxu0 0.0
    %2552 = vmatprep.subr.mxu0 0.0
    %2553 = vmatpush2.msra.mxu0 0.0
    %2554 = vmatprep.subr.mxu0 0.0
    %2555 = vmatpush2.msra.mxu0 0.0
    %2556 = vmatprep.subr.mxu0 0.0
    %2557 = vmatpush2.msra.mxu0 0.0
    %2558 = vmatprep.subr.mxu0 0.0
    %2559 = vmatpush2.msra.mxu0 0.0
    %2560 = vmatprep.subr.mxu0 0.0
    %2561 = vmatpush2.msra.mxu0 0.0
    %2562 = vmatprep.subr.mxu0 0.0
    %2563 = vmatpush2.msra.mxu0 0.0
    %2564 = vmatprep.subr.mxu0 0.0
    %2565 = vmatpush2.msra.mxu0 0.0
    %2566 = vmatprep.subr.mxu0 0.0
    %2567 = vmatpush2.msra.mxu0 0.0
    %2568 = vmatprep.subr.mxu0 0.0
    %2569 = vmatpush2.msra.mxu0 0.0
    %2570 = vmatprep.mubr.f32.mxu0 0.0
    %2571 = vmatmul.mubr.f32.gmra.mxu0 %v2504
    %v2572 = vpop.f32.mrf.mxu0
    %v2573 = vadd.f32 %v1974, %v2572
    %v2574 = vpop.f32.mrf.mxu0
    %v2575 = vadd.f32 %v1978, %v2574
    %2576 = vdwg.mxu0
    %v2579 = vcombine.low %v2573, %v2575
    %v2581 = vunpack.c.l.s4 1983009808
    %v2582 = vunpack.c.0.s8 %v2581
    %v2583 = vlaneseq
    %v2584 = vshrl.u32 %v2583, 7
    %v2585 = vsub.s32 %v2582, %v2584
    %v2586 = vrot.slane %v2579, %v2585
    %2588 = vst [vmem:[%s739] sm:$0xf] %v2586
    %v2589 = vld [vmem:[%s967] sm:$0x3]
    %v2591 = vsel %vm830, %v2589, 0
    %2593 = vmatprep.subr.mxu0 0.0
    %2594 = vmatpush1.msra.mxu0 0.0
    %2595 = vmatprep.subr.mxu0 0.0
    %2596 = vmatpush1.msra.mxu0 0.0
    %2597 = vmatprep.subr.mxu0 0.0
    %2598 = vmatpush1.msra.mxu0 0.0
    %2599 = vmatprep.subr.mxu0 0.0
    %2600 = vmatpush1.msra.mxu0 0.0
    %2601 = vmatprep.subr.mxu0 0.0
    %2602 = vmatpush1.msra.mxu0 0.0
    %2603 = vmatprep.subr.mxu0 0.0
    %2604 = vmatpush1.msra.mxu0 0.0
    %2605 = vmatprep.subr.mxu0 0.0
    %2606 = vmatpush1.msra.mxu0 0.0
    %2607 = vmatprep.subr.mxu0 0.0
    %2608 = vmatpush1.msra.mxu0 0.0
    %2609 = vmatprep.subr.mxu0 %v1951
    %2610 = vmatpush1.msra.mxu0 %v1950
    %2611 = vmatprep.subr.mxu0 %v1949
    %2612 = vmatpush1.msra.mxu0 %v1948
    %2613 = vmatprep.subr.mxu0 %v1947
    %2614 = vmatpush1.msra.mxu0 %v1946
    %2615 = vmatprep.subr.mxu0 %v1945
    %2616 = vmatpush1.msra.mxu0 %v1944
    %2617 = vmatprep.subr.mxu0 %v1943
    %2618 = vmatpush1.msra.mxu0 %v1942
    %2619 = vmatprep.subr.mxu0 %v1941
    %2620 = vmatpush1.msra.mxu0 %v1940
    %2621 = vmatprep.subr.mxu0 %v1939
    %2622 = vmatpush1.msra.mxu0 %v1938
    %2623 = vmatprep.subr.mxu0 %v1937
    %2624 = vmatpush1.msra.mxu0 %v1936
    %2625 = vmatprep.subr.mxu0 0.0
    %2626 = vmatpush2.msra.mxu0 0.0
    %2627 = vmatprep.subr.mxu0 0.0
    %2628 = vmatpush2.msra.mxu0 0.0
    %2629 = vmatprep.subr.mxu0 0.0
    %2630 = vmatpush2.msra.mxu0 0.0
    %2631 = vmatprep.subr.mxu0 0.0
    %2632 = vmatpush2.msra.mxu0 0.0
    %2633 = vmatprep.subr.mxu0 0.0
    %2634 = vmatpush2.msra.mxu0 0.0
    %2635 = vmatprep.subr.mxu0 0.0
    %2636 = vmatpush2.msra.mxu0 0.0
    %2637 = vmatprep.subr.mxu0 0.0
    %2638 = vmatpush2.msra.mxu0 0.0
    %2639 = vmatprep.subr.mxu0 0.0
    %2640 = vmatpush2.msra.mxu0 0.0
    %2641 = vmatprep.subr.mxu0 0.0
    %2642 = vmatpush2.msra.mxu0 0.0
    %2643 = vmatprep.subr.mxu0 0.0
    %2644 = vmatpush2.msra.mxu0 0.0
    %2645 = vmatprep.subr.mxu0 0.0
    %2646 = vmatpush2.msra.mxu0 0.0
    %2647 = vmatprep.subr.mxu0 0.0
    %2648 = vmatpush2.msra.mxu0 0.0
    %2649 = vmatprep.subr.mxu0 0.0
    %2650 = vmatpush2.msra.mxu0 0.0
    %2651 = vmatprep.subr.mxu0 0.0
    %2652 = vmatpush2.msra.mxu0 0.0
    %2653 = vmatprep.subr.mxu0 0.0
    %2654 = vmatpush2.msra.mxu0 0.0
    %2655 = vmatprep.subr.mxu0 0.0
    %2656 = vmatpush2.msra.mxu0 0.0
    %2657 = vmatprep.mubr.f32.mxu0 0.0
    %2658 = vmatmul.mubr.f32.gmra.mxu0 %v2591
    %v2659 = vpop.f32.mrf.mxu0
    %v2660 = vadd.f32 %v1974, %v2659
    %v2661 = vpop.f32.mrf.mxu0
    %v2662 = vadd.f32 %v1978, %v2661
    %2663 = vdwg.mxu0
    %v2666 = vcombine.low %v2660, %v2662
    %v2668 = vunpack.c.l.s4 1983009808
    %v2669 = vunpack.c.0.s8 %v2668
    %v2670 = vlaneseq
    %v2671 = vshrl.u32 %v2670, 7
    %v2672 = vsub.s32 %v2669, %v2671
    %v2673 = vrot.slane %v2666, %v2672
    %2675 = vst [vmem:[%s828] sm:$0xf] %v2673
    %2676 = vmatprep.subr.mxu0 0.0
    %2677 = vmatpush1.msra.mxu0 0.0
    %2678 = vmatprep.subr.mxu0 0.0
    %2679 = vmatpush1.msra.mxu0 0.0
    %2680 = vmatprep.subr.mxu0 0.0
    %2681 = vmatpush1.msra.mxu0 0.0
    %2682 = vmatprep.subr.mxu0 0.0
    %2683 = vmatpush1.msra.mxu0 0.0
    %2684 = vmatprep.subr.mxu0 0.0
    %2685 = vmatpush1.msra.mxu0 0.0
    %2686 = vmatprep.subr.mxu0 0.0
    %2687 = vmatpush1.msra.mxu0 0.0
    %2688 = vmatprep.subr.mxu0 0.0
    %2689 = vmatpush1.msra.mxu0 0.0
    %2690 = vmatprep.subr.mxu0 0.0
    %2691 = vmatpush1.msra.mxu0 0.0
    %2692 = vmatprep.subr.mxu0 %v1967
    %2693 = vmatpush1.msra.mxu0 %v1966
    %2694 = vmatprep.subr.mxu0 %v1965
    %2695 = vmatpush1.msra.mxu0 %v1964
    %2696 = vmatprep.subr.mxu0 %v1963
    %2697 = vmatpush1.msra.mxu0 %v1962
    %2698 = vmatprep.subr.mxu0 %v1961
    %2699 = vmatpush1.msra.mxu0 %v1960
    %2700 = vmatprep.subr.mxu0 %v1959
    %2701 = vmatpush1.msra.mxu0 %v1958
    %2702 = vmatprep.subr.mxu0 %v1957
    %2703 = vmatpush1.msra.mxu0 %v1956
    %2704 = vmatprep.subr.mxu0 %v1955
    %2705 = vmatpush1.msra.mxu0 %v1954
    %2706 = vmatprep.subr.mxu0 %v1953
    %2707 = vmatpush1.msra.mxu0 %v1952
    %2708 = vmatprep.subr.mxu0 0.0
    %2709 = vmatpush2.msra.mxu0 0.0
    %2710 = vmatprep.subr.mxu0 0.0
    %2711 = vmatpush2.msra.mxu0 0.0
    %2712 = vmatprep.subr.mxu0 0.0
    %2713 = vmatpush2.msra.mxu0 0.0
    %2714 = vmatprep.subr.mxu0 0.0
    %2715 = vmatpush2.msra.mxu0 0.0
    %2716 = vmatprep.subr.mxu0 0.0
    %2717 = vmatpush2.msra.mxu0 0.0
    %2718 = vmatprep.subr.mxu0 0.0
    %2719 = vmatpush2.msra.mxu0 0.0
    %2720 = vmatprep.subr.mxu0 0.0
    %2721 = vmatpush2.msra.mxu0 0.0
    %2722 = vmatprep.subr.mxu0 0.0
    %2723 = vmatpush2.msra.mxu0 0.0
    %2724 = vmatprep.subr.mxu0 0.0
    %2725 = vmatpush2.msra.mxu0 0.0
    %2726 = vmatprep.subr.mxu0 0.0
    %2727 = vmatpush2.msra.mxu0 0.0
    %2728 = vmatprep.subr.mxu0 0.0
    %2729 = vmatpush2.msra.mxu0 0.0
    %2730 = vmatprep.subr.mxu0 0.0
    %2731 = vmatpush2.msra.mxu0 0.0
    %2732 = vmatprep.subr.mxu0 0.0
    %2733 = vmatpush2.msra.mxu0 0.0
    %2734 = vmatprep.subr.mxu0 0.0
    %2735 = vmatpush2.msra.mxu0 0.0
    %2736 = vmatprep.subr.mxu0 0.0
    %2737 = vmatpush2.msra.mxu0 0.0
    %2738 = vmatprep.subr.mxu0 0.0
    %2739 = vmatpush2.msra.mxu0 0.0
    %2740 = vmatprep.mubr.f32.mxu0 0.0
    %2741 = vmatmul.mubr.f32.gmra.mxu0 %v832
    %v2742 = vpop.f32.mrf.mxu0
    %v2743 = vadd.f32 0.0, %v2742
    %v2744 = vpop.f32.mrf.mxu0
    %v2745 = vadd.f32 0.0, %v2744
    %2746 = vdwg.mxu0
    %v2747 = vld [vmem:[#allocation3] sm:$0x3]
    %v2748 = vadd.f32 %v2743, %v2747
    %v2749 = vld [vmem:[%s828 + $0x2] sm:$0x3]
    %v2750 = vadd.f32 %v2745, %v2749
    %v2751 = vxor.u32 %v2748, 2147483648
    %v2752 = vmul.f32 %v2751, 1.442695
    %v2753 = vpow.pop %v2752
    %v2754 = vadd.f32 %v2753, 1.0
    %v2755 = vrcp.pop %v2754
    %v2756 = vmul.f32 1.0, %v2755
    %v2757 = vtanh.pop %v2748
    %v2758 = vmul.f32 %v2756, 0.0
    %2760 = vrot.lane.b32.xlu0 %v2757, 64
    %v2761 = vpop.permute.xlu0 %2760
    %v2763 = vmul.f32 %v2756, %v2761
    %2765 = vrot.lane.b32.xlu0 %v2763, 32
    %v2766 = vpop.permute.xlu0 %2765
    %v2768 = vadd.f32 %v2758, %v2766
    %v2769 = vtanh.pop %v2768
    %2771 = vrot.lane.b32.xlu0 %v2769, 64
    %v2772 = vpop.permute.xlu0 %2771
    %v2774 = vmul.f32 %v2756, %v2772
    %v2775 = vxor.u32 %v2750, 2147483648
    %v2776 = vmul.f32 %v2775, 1.442695
    %v2777 = vpow.pop %v2776
    %v2778 = vadd.f32 %v2777, 1.0
    %v2779 = vrcp.pop %v2778
    %v2780 = vmul.f32 1.0, %v2779
    %v2781 = vtanh.pop %v2750
    %v2782 = vmul.f32 %v2780, 0.0
    %2784 = vrot.lane.b32.xlu0 %v2781, 64
    %v2785 = vpop.permute.xlu0 %2784
    %v2787 = vmul.f32 %v2780, %v2785
    %2789 = vrot.lane.b32.xlu0 %v2787, 32
    %v2790 = vpop.permute.xlu0 %2789
    %v2792 = vadd.f32 %v2782, %v2790
    %v2793 = vtanh.pop %v2792
    %2795 = vrot.lane.b32.xlu0 %v2793, 64
    %v2796 = vpop.permute.xlu0 %2795
    %v2798 = vmul.f32 %v2780, %v2796
    %2800 = vrot.lane.b32.xlu0 %v2774, 32
    %v2801 = vpop.permute.xlu0 %2800
    %2803 = vst.msk [vmem:[#allocation2] sm:$0x3] %vm961, %v2801
    %2805 = vrot.lane.b32.xlu0 %v2798, 64
    %v2806 = vpop.permute.xlu0 %2805
    %2808 = vst.msk [vmem:[%s967] sm:$0x3] %vm968, %v2806
    %v2809 = vsel %vm970, %v2801, %v2806
    %v2811 = vsel %vm830, %v2809, 0
    %2813 = vmatprep.subr.mxu0 0.0
    %2814 = vmatpush1.msra.mxu0 0.0
    %2815 = vmatprep.subr.mxu0 0.0
    %2816 = vmatpush1.msra.mxu0 0.0
    %2817 = vmatprep.subr.mxu0 0.0
    %2818 = vmatpush1.msra.mxu0 0.0
    %2819 = vmatprep.subr.mxu0 0.0
    %2820 = vmatpush1.msra.mxu0 0.0
    %2821 = vmatprep.subr.mxu0 0.0
    %2822 = vmatpush1.msra.mxu0 0.0
    %2823 = vmatprep.subr.mxu0 0.0
    %2824 = vmatpush1.msra.mxu0 0.0
    %2825 = vmatprep.subr.mxu0 0.0
    %2826 = vmatpush1.msra.mxu0 0.0
    %2827 = vmatprep.subr.mxu0 0.0
    %2828 = vmatpush1.msra.mxu0 0.0
    %2829 = vmatprep.subr.mxu0 %v1967
    %2830 = vmatpush1.msra.mxu0 %v1966
    %2831 = vmatprep.subr.mxu0 %v1965
    %2832 = vmatpush1.msra.mxu0 %v1964
    %2833 = vmatprep.subr.mxu0 %v1963
    %2834 = vmatpush1.msra.mxu0 %v1962
    %2835 = vmatprep.subr.mxu0 %v1961
    %2836 = vmatpush1.msra.mxu0 %v1960
    %2837 = vmatprep.subr.mxu0 %v1959
    %2838 = vmatpush1.msra.mxu0 %v1958
    %2839 = vmatprep.subr.mxu0 %v1957
    %2840 = vmatpush1.msra.mxu0 %v1956
    %2841 = vmatprep.subr.mxu0 %v1955
    %2842 = vmatpush1.msra.mxu0 %v1954
    %2843 = vmatprep.subr.mxu0 %v1953
    %2844 = vmatpush1.msra.mxu0 %v1952
    %2845 = vmatprep.subr.mxu0 0.0
    %2846 = vmatpush2.msra.mxu0 0.0
    %2847 = vmatprep.subr.mxu0 0.0
    %2848 = vmatpush2.msra.mxu0 0.0
    %2849 = vmatprep.subr.mxu0 0.0
    %2850 = vmatpush2.msra.mxu0 0.0
    %2851 = vmatprep.subr.mxu0 0.0
    %2852 = vmatpush2.msra.mxu0 0.0
    %2853 = vmatprep.subr.mxu0 0.0
    %2854 = vmatpush2.msra.mxu0 0.0
    %2855 = vmatprep.subr.mxu0 0.0
    %2856 = vmatpush2.msra.mxu0 0.0
    %2857 = vmatprep.subr.mxu0 0.0
    %2858 = vmatpush2.msra.mxu0 0.0
    %2859 = vmatprep.subr.mxu0 0.0
    %2860 = vmatpush2.msra.mxu0 0.0
    %2861 = vmatprep.subr.mxu0 0.0
    %2862 = vmatpush2.msra.mxu0 0.0
    %2863 = vmatprep.subr.mxu0 0.0
    %2864 = vmatpush2.msra.mxu0 0.0
    %2865 = vmatprep.subr.mxu0 0.0
    %2866 = vmatpush2.msra.mxu0 0.0
    %2867 = vmatprep.subr.mxu0 0.0
    %2868 = vmatpush2.msra.mxu0 0.0
    %2869 = vmatprep.subr.mxu0 0.0
    %2870 = vmatpush2.msra.mxu0 0.0
    %2871 = vmatprep.subr.mxu0 0.0
    %2872 = vmatpush2.msra.mxu0 0.0
    %2873 = vmatprep.subr.mxu0 0.0
    %2874 = vmatpush2.msra.mxu0 0.0
    %2875 = vmatprep.subr.mxu0 0.0
    %2876 = vmatpush2.msra.mxu0 0.0
    %2877 = vmatprep.mubr.f32.mxu0 0.0
    %2878 = vmatmul.mubr.f32.gmra.mxu0 %v2811
    %v2879 = vpop.f32.mrf.mxu0
    %v2880 = vadd.f32 0.0, %v2879
    %v2881 = vpop.f32.mrf.mxu0
    %v2882 = vadd.f32 0.0, %v2881
    %2883 = vdwg.mxu0
    %v2884 = vld [vmem:[%s294] sm:$0x3]
    %v2885 = vadd.f32 %v2880, %v2884
    %v2886 = vld [vmem:[%s739 + $0x2] sm:$0x3]
    %v2887 = vadd.f32 %v2882, %v2886
    %v2888 = vxor.u32 %v2885, 2147483648
    %v2889 = vmul.f32 %v2888, 1.442695
    %v2890 = vpow.pop %v2889
    %v2891 = vadd.f32 %v2890, 1.0
    %v2892 = vrcp.pop %v2891
    %v2893 = vmul.f32 1.0, %v2892
    %v2894 = vtanh.pop %v2885
    %v2895 = vmul.f32 %v2893, %v2768
    %2897 = vrot.lane.b32.xlu0 %v2894, 64
    %v2898 = vpop.permute.xlu0 %2897
    %v2900 = vmul.f32 %v2893, %v2898
    %2902 = vrot.lane.b32.xlu0 %v2900, 32
    %v2903 = vpop.permute.xlu0 %2902
    %v2905 = vadd.f32 %v2895, %v2903
    %v2906 = vtanh.pop %v2905
    %2908 = vrot.lane.b32.xlu0 %v2906, 64
    %v2909 = vpop.permute.xlu0 %2908
    %v2911 = vmul.f32 %v2893, %v2909
    %v2912 = vxor.u32 %v2887, 2147483648
    %v2913 = vmul.f32 %v2912, 1.442695
    %v2914 = vpow.pop %v2913
    %v2915 = vadd.f32 %v2914, 1.0
    %v2916 = vrcp.pop %v2915
    %v2917 = vmul.f32 1.0, %v2916
    %v2918 = vtanh.pop %v2887
    %v2919 = vmul.f32 %v2917, %v2792
    %2921 = vrot.lane.b32.xlu0 %v2918, 64
    %v2922 = vpop.permute.xlu0 %2921
    %v2924 = vmul.f32 %v2917, %v2922
    %2926 = vrot.lane.b32.xlu0 %v2924, 32
    %v2927 = vpop.permute.xlu0 %2926
    %v2929 = vadd.f32 %v2919, %v2927
    %v2930 = vtanh.pop %v2929
    %2932 = vrot.lane.b32.xlu0 %v2930, 64
    %v2933 = vpop.permute.xlu0 %2932
    %v2935 = vmul.f32 %v2917, %v2933
    %2937 = vrot.lane.b32.xlu0 %v2911, 32
    %v2938 = vpop.permute.xlu0 %2937
    %2940 = vst.msk [vmem:[%s1102] sm:$0x3] %vm961, %v2938
    %2942 = vrot.lane.b32.xlu0 %v2935, 64
    %v2943 = vpop.permute.xlu0 %2942
    %2945 = vst.msk [vmem:[%s1108] sm:$0x3] %vm968, %v2943
    %v2946 = vsel %vm970, %v2938, %v2943
    %v2948 = vsel %vm830, %v2946, 0
    %2950 = vmatprep.subr.mxu0 0.0
    %2951 = vmatpush1.msra.mxu0 0.0
    %2952 = vmatprep.subr.mxu0 0.0
    %2953 = vmatpush1.msra.mxu0 0.0
    %2954 = vmatprep.subr.mxu0 0.0
    %2955 = vmatpush1.msra.mxu0 0.0
    %2956 = vmatprep.subr.mxu0 0.0
    %2957 = vmatpush1.msra.mxu0 0.0
    %2958 = vmatprep.subr.mxu0 0.0
    %2959 = vmatpush1.msra.mxu0 0.0
    %2960 = vmatprep.subr.mxu0 0.0
    %2961 = vmatpush1.msra.mxu0 0.0
    %2962 = vmatprep.subr.mxu0 0.0
    %2963 = vmatpush1.msra.mxu0 0.0
    %2964 = vmatprep.subr.mxu0 0.0
    %2965 = vmatpush1.msra.mxu0 0.0
    %2966 = vmatprep.subr.mxu0 %v1967
    %2967 = vmatpush1.msra.mxu0 %v1966
    %2968 = vmatprep.subr.mxu0 %v1965
    %2969 = vmatpush1.msra.mxu0 %v1964
    %2970 = vmatprep.subr.mxu0 %v1963
    %2971 = vmatpush1.msra.mxu0 %v1962
    %2972 = vmatprep.subr.mxu0 %v1961
    %2973 = vmatpush1.msra.mxu0 %v1960
    %2974 = vmatprep.subr.mxu0 %v1959
    %2975 = vmatpush1.msra.mxu0 %v1958
    %2976 = vmatprep.subr.mxu0 %v1957
    %2977 = vmatpush1.msra.mxu0 %v1956
    %2978 = vmatprep.subr.mxu0 %v1955
    %2979 = vmatpush1.msra.mxu0 %v1954
    %2980 = vmatprep.subr.mxu0 %v1953
    %2981 = vmatpush1.msra.mxu0 %v1952
    %2982 = vmatprep.subr.mxu0 0.0
    %2983 = vmatpush2.msra.mxu0 0.0
    %2984 = vmatprep.subr.mxu0 0.0
    %2985 = vmatpush2.msra.mxu0 0.0
    %2986 = vmatprep.subr.mxu0 0.0
    %2987 = vmatpush2.msra.mxu0 0.0
    %2988 = vmatprep.subr.mxu0 0.0
    %2989 = vmatpush2.msra.mxu0 0.0
    %2990 = vmatprep.subr.mxu0 0.0
    %2991 = vmatpush2.msra.mxu0 0.0
    %2992 = vmatprep.subr.mxu0 0.0
    %2993 = vmatpush2.msra.mxu0 0.0
    %2994 = vmatprep.subr.mxu0 0.0
    %2995 = vmatpush2.msra.mxu0 0.0
    %2996 = vmatprep.subr.mxu0 0.0
    %2997 = vmatpush2.msra.mxu0 0.0
    %2998 = vmatprep.subr.mxu0 0.0
    %2999 = vmatpush2.msra.mxu0 0.0
    %3000 = vmatprep.subr.mxu0 0.0
    %3001 = vmatpush2.msra.mxu0 0.0
    %3002 = vmatprep.subr.mxu0 0.0
    %3003 = vmatpush2.msra.mxu0 0.0
    %3004 = vmatprep.subr.mxu0 0.0
    %3005 = vmatpush2.msra.mxu0 0.0
    %3006 = vmatprep.subr.mxu0 0.0
    %3007 = vmatpush2.msra.mxu0 0.0
    %3008 = vmatprep.subr.mxu0 0.0
    %3009 = vmatpush2.msra.mxu0 0.0
    %3010 = vmatprep.subr.mxu0 0.0
    %3011 = vmatpush2.msra.mxu0 0.0
    %3012 = vmatprep.subr.mxu0 0.0
    %3013 = vmatpush2.msra.mxu0 0.0
    %3014 = vmatprep.mubr.f32.mxu0 0.0
    %3015 = vmatmul.mubr.f32.gmra.mxu0 %v2948
    %v3016 = vpop.f32.mrf.mxu0
    %v3017 = vadd.f32 0.0, %v3016
    %v3018 = vpop.f32.mrf.mxu0
    %v3019 = vadd.f32 0.0, %v3018
    %3020 = vdwg.mxu0
    %v3021 = vld [vmem:[%s383] sm:$0x3]
    %v3022 = vadd.f32 %v3017, %v3021
    %v3023 = vld [vmem:[%s650 + $0x2] sm:$0x3]
    %v3024 = vadd.f32 %v3019, %v3023
    %v3025 = vxor.u32 %v3022, 2147483648
    %v3026 = vmul.f32 %v3025, 1.442695
    %v3027 = vpow.pop %v3026
    %v3028 = vadd.f32 %v3027, 1.0
    %v3029 = vrcp.pop %v3028
    %v3030 = vmul.f32 1.0, %v3029
    %v3031 = vtanh.pop %v3022
    %v3032 = vmul.f32 %v3030, %v2905
    %3034 = vrot.lane.b32.xlu0 %v3031, 64
    %v3035 = vpop.permute.xlu0 %3034
    %v3037 = vmul.f32 %v3030, %v3035
    %3039 = vrot.lane.b32.xlu0 %v3037, 32
    %v3040 = vpop.permute.xlu0 %3039
    %v3042 = vadd.f32 %v3032, %v3040
    %v3043 = vtanh.pop %v3042
    %3045 = vrot.lane.b32.xlu0 %v3043, 64
    %v3046 = vpop.permute.xlu0 %3045
    %v3048 = vmul.f32 %v3030, %v3046
    %v3049 = vxor.u32 %v3024, 2147483648
    %v3050 = vmul.f32 %v3049, 1.442695
    %v3051 = vpow.pop %v3050
    %v3052 = vadd.f32 %v3051, 1.0
    %v3053 = vrcp.pop %v3052
    %v3054 = vmul.f32 1.0, %v3053
    %v3055 = vtanh.pop %v3024
    %v3056 = vmul.f32 %v3054, %v2929
    %3058 = vrot.lane.b32.xlu0 %v3055, 64
    %v3059 = vpop.permute.xlu0 %3058
    %v3061 = vmul.f32 %v3054, %v3059
    %3063 = vrot.lane.b32.xlu0 %v3061, 32
    %v3064 = vpop.permute.xlu0 %3063
    %v3066 = vadd.f32 %v3056, %v3064
    %v3067 = vtanh.pop %v3066
    %3069 = vrot.lane.b32.xlu0 %v3067, 64
    %v3070 = vpop.permute.xlu0 %3069
    %v3072 = vmul.f32 %v3054, %v3070
    %3074 = vrot.lane.b32.xlu0 %v3048, 32
    %v3075 = vpop.permute.xlu0 %3074
    %3077 = vst.msk [vmem:[%s1241] sm:$0x3] %vm961, %v3075
    %3079 = vrot.lane.b32.xlu0 %v3072, 64
    %v3080 = vpop.permute.xlu0 %3079
    %3082 = vst.msk [vmem:[%s1247] sm:$0x3] %vm968, %v3080
    %v3083 = vsel %vm970, %v3075, %v3080
    %v3085 = vsel %vm830, %v3083, 0
    %3087 = vmatprep.subr.mxu0 0.0
    %3088 = vmatpush1.msra.mxu0 0.0
    %3089 = vmatprep.subr.mxu0 0.0
    %3090 = vmatpush1.msra.mxu0 0.0
    %3091 = vmatprep.subr.mxu0 0.0
    %3092 = vmatpush1.msra.mxu0 0.0
    %3093 = vmatprep.subr.mxu0 0.0
    %3094 = vmatpush1.msra.mxu0 0.0
    %3095 = vmatprep.subr.mxu0 0.0
    %3096 = vmatpush1.msra.mxu0 0.0
    %3097 = vmatprep.subr.mxu0 0.0
    %3098 = vmatpush1.msra.mxu0 0.0
    %3099 = vmatprep.subr.mxu0 0.0
    %3100 = vmatpush1.msra.mxu0 0.0
    %3101 = vmatprep.subr.mxu0 0.0
    %3102 = vmatpush1.msra.mxu0 0.0
    %3103 = vmatprep.subr.mxu0 %v1967
    %3104 = vmatpush1.msra.mxu0 %v1966
    %3105 = vmatprep.subr.mxu0 %v1965
    %3106 = vmatpush1.msra.mxu0 %v1964
    %3107 = vmatprep.subr.mxu0 %v1963
    %3108 = vmatpush1.msra.mxu0 %v1962
    %3109 = vmatprep.subr.mxu0 %v1961
    %3110 = vmatpush1.msra.mxu0 %v1960
    %3111 = vmatprep.subr.mxu0 %v1959
    %3112 = vmatpush1.msra.mxu0 %v1958
    %3113 = vmatprep.subr.mxu0 %v1957
    %3114 = vmatpush1.msra.mxu0 %v1956
    %3115 = vmatprep.subr.mxu0 %v1955
    %3116 = vmatpush1.msra.mxu0 %v1954
    %3117 = vmatprep.subr.mxu0 %v1953
    %3118 = vmatpush1.msra.mxu0 %v1952
    %3119 = vmatprep.subr.mxu0 0.0
    %3120 = vmatpush2.msra.mxu0 0.0
    %3121 = vmatprep.subr.mxu0 0.0
    %3122 = vmatpush2.msra.mxu0 0.0
    %3123 = vmatprep.subr.mxu0 0.0
    %3124 = vmatpush2.msra.mxu0 0.0
    %3125 = vmatprep.subr.mxu0 0.0
    %3126 = vmatpush2.msra.mxu0 0.0
    %3127 = vmatprep.subr.mxu0 0.0
    %3128 = vmatpush2.msra.mxu0 0.0
    %3129 = vmatprep.subr.mxu0 0.0
    %3130 = vmatpush2.msra.mxu0 0.0
    %3131 = vmatprep.subr.mxu0 0.0
    %3132 = vmatpush2.msra.mxu0 0.0
    %3133 = vmatprep.subr.mxu0 0.0
    %3134 = vmatpush2.msra.mxu0 0.0
    %3135 = vmatprep.subr.mxu0 0.0
    %3136 = vmatpush2.msra.mxu0 0.0
    %3137 = vmatprep.subr.mxu0 0.0
    %3138 = vmatpush2.msra.mxu0 0.0
    %3139 = vmatprep.subr.mxu0 0.0
    %3140 = vmatpush2.msra.mxu0 0.0
    %3141 = vmatprep.subr.mxu0 0.0
    %3142 = vmatpush2.msra.mxu0 0.0
    %3143 = vmatprep.subr.mxu0 0.0
    %3144 = vmatpush2.msra.mxu0 0.0
    %3145 = vmatprep.subr.mxu0 0.0
    %3146 = vmatpush2.msra.mxu0 0.0
    %3147 = vmatprep.subr.mxu0 0.0
    %3148 = vmatpush2.msra.mxu0 0.0
    %3149 = vmatprep.subr.mxu0 0.0
    %3150 = vmatpush2.msra.mxu0 0.0
    %3151 = vmatprep.mubr.f32.mxu0 0.0
    %3152 = vmatmul.mubr.f32.gmra.mxu0 %v3085
    %v3153 = vpop.f32.mrf.mxu0
    %v3154 = vadd.f32 0.0, %v3153
    %v3155 = vpop.f32.mrf.mxu0
    %v3156 = vadd.f32 0.0, %v3155
    %3157 = vdwg.mxu0
    %v3158 = vld [vmem:[%s472] sm:$0x3]
    %v3159 = vadd.f32 %v3154, %v3158
    %v3160 = vld [vmem:[%s561 + $0x2] sm:$0x3]
    %v3161 = vadd.f32 %v3156, %v3160
    %v3162 = vxor.u32 %v3159, 2147483648
    %v3163 = vmul.f32 %v3162, 1.442695
    %v3164 = vpow.pop %v3163
    %v3165 = vadd.f32 %v3164, 1.0
    %v3166 = vrcp.pop %v3165
    %v3167 = vmul.f32 1.0, %v3166
    %v3168 = vtanh.pop %v3159
    %v3169 = vmul.f32 %v3167, %v3042
    %3171 = vrot.lane.b32.xlu0 %v3168, 64
    %v3172 = vpop.permute.xlu0 %3171
    %v3174 = vmul.f32 %v3167, %v3172
    %3176 = vrot.lane.b32.xlu0 %v3174, 32
    %v3177 = vpop.permute.xlu0 %3176
    %v3179 = vadd.f32 %v3169, %v3177
    %v3180 = vtanh.pop %v3179
    %3182 = vrot.lane.b32.xlu0 %v3180, 64
    %v3183 = vpop.permute.xlu0 %3182
    %v3185 = vmul.f32 %v3167, %v3183
    %v3186 = vxor.u32 %v3161, 2147483648
    %v3187 = vmul.f32 %v3186, 1.442695
    %v3188 = vpow.pop %v3187
    %v3189 = vadd.f32 %v3188, 1.0
    %v3190 = vrcp.pop %v3189
    %v3191 = vmul.f32 1.0, %v3190
    %v3192 = vtanh.pop %v3161
    %v3193 = vmul.f32 %v3191, %v3066
    %3195 = vrot.lane.b32.xlu0 %v3192, 64
    %v3196 = vpop.permute.xlu0 %3195
    %v3198 = vmul.f32 %v3191, %v3196
    %3200 = vrot.lane.b32.xlu0 %v3198, 32
    %v3201 = vpop.permute.xlu0 %3200
    %v3203 = vadd.f32 %v3193, %v3201
    %v3204 = vtanh.pop %v3203
    %3206 = vrot.lane.b32.xlu0 %v3204, 64
    %v3207 = vpop.permute.xlu0 %3206
    %v3209 = vmul.f32 %v3191, %v3207
    %3211 = vrot.lane.b32.xlu0 %v3185, 32
    %v3212 = vpop.permute.xlu0 %3211
    %3214 = vst.msk [vmem:[%s1380] sm:$0x3] %vm961, %v3212
    %3216 = vrot.lane.b32.xlu0 %v3209, 64
    %v3217 = vpop.permute.xlu0 %3216
    %3219 = vst.msk [vmem:[%s1386] sm:$0x3] %vm968, %v3217
    %v3220 = vsel %vm970, %v3212, %v3217
    %v3222 = vsel %vm830, %v3220, 0
    %3224 = vmatprep.subr.mxu0 0.0
    %3225 = vmatpush1.msra.mxu0 0.0
    %3226 = vmatprep.subr.mxu0 0.0
    %3227 = vmatpush1.msra.mxu0 0.0
    %3228 = vmatprep.subr.mxu0 0.0
    %3229 = vmatpush1.msra.mxu0 0.0
    %3230 = vmatprep.subr.mxu0 0.0
    %3231 = vmatpush1.msra.mxu0 0.0
    %3232 = vmatprep.subr.mxu0 0.0
    %3233 = vmatpush1.msra.mxu0 0.0
    %3234 = vmatprep.subr.mxu0 0.0
    %3235 = vmatpush1.msra.mxu0 0.0
    %3236 = vmatprep.subr.mxu0 0.0
    %3237 = vmatpush1.msra.mxu0 0.0
    %3238 = vmatprep.subr.mxu0 0.0
    %3239 = vmatpush1.msra.mxu0 0.0
    %3240 = vmatprep.subr.mxu0 %v1967
    %3241 = vmatpush1.msra.mxu0 %v1966
    %3242 = vmatprep.subr.mxu0 %v1965
    %3243 = vmatpush1.msra.mxu0 %v1964
    %3244 = vmatprep.subr.mxu0 %v1963
    %3245 = vmatpush1.msra.mxu0 %v1962
    %3246 = vmatprep.subr.mxu0 %v1961
    %3247 = vmatpush1.msra.mxu0 %v1960
    %3248 = vmatprep.subr.mxu0 %v1959
    %3249 = vmatpush1.msra.mxu0 %v1958
    %3250 = vmatprep.subr.mxu0 %v1957
    %3251 = vmatpush1.msra.mxu0 %v1956
    %3252 = vmatprep.subr.mxu0 %v1955
    %3253 = vmatpush1.msra.mxu0 %v1954
    %3254 = vmatprep.subr.mxu0 %v1953
    %3255 = vmatpush1.msra.mxu0 %v1952
    %3256 = vmatprep.subr.mxu0 0.0
    %3257 = vmatpush2.msra.mxu0 0.0
    %3258 = vmatprep.subr.mxu0 0.0
    %3259 = vmatpush2.msra.mxu0 0.0
    %3260 = vmatprep.subr.mxu0 0.0
    %3261 = vmatpush2.msra.mxu0 0.0
    %3262 = vmatprep.subr.mxu0 0.0
    %3263 = vmatpush2.msra.mxu0 0.0
    %3264 = vmatprep.subr.mxu0 0.0
    %3265 = vmatpush2.msra.mxu0 0.0
    %3266 = vmatprep.subr.mxu0 0.0
    %3267 = vmatpush2.msra.mxu0 0.0
    %3268 = vmatprep.subr.mxu0 0.0
    %3269 = vmatpush2.msra.mxu0 0.0
    %3270 = vmatprep.subr.mxu0 0.0
    %3271 = vmatpush2.msra.mxu0 0.0
    %3272 = vmatprep.subr.mxu0 0.0
    %3273 = vmatpush2.msra.mxu0 0.0
    %3274 = vmatprep.subr.mxu0 0.0
    %3275 = vmatpush2.msra.mxu0 0.0
    %3276 = vmatprep.subr.mxu0 0.0
    %3277 = vmatpush2.msra.mxu0 0.0
    %3278 = vmatprep.subr.mxu0 0.0
    %3279 = vmatpush2.msra.mxu0 0.0
    %3280 = vmatprep.subr.mxu0 0.0
    %3281 = vmatpush2.msra.mxu0 0.0
    %3282 = vmatprep.subr.mxu0 0.0
    %3283 = vmatpush2.msra.mxu0 0.0
    %3284 = vmatprep.subr.mxu0 0.0
    %3285 = vmatpush2.msra.mxu0 0.0
    %3286 = vmatprep.subr.mxu0 0.0
    %3287 = vmatpush2.msra.mxu0 0.0
    %3288 = vmatprep.mubr.f32.mxu0 0.0
    %3289 = vmatmul.mubr.f32.gmra.mxu0 %v3222
    %v3290 = vpop.f32.mrf.mxu0
    %v3291 = vadd.f32 0.0, %v3290
    %v3292 = vpop.f32.mrf.mxu0
    %v3293 = vadd.f32 0.0, %v3292
    %3294 = vdwg.mxu0
    %v3295 = vld [vmem:[%s561] sm:$0x3]
    %v3296 = vadd.f32 %v3291, %v3295
    %v3297 = vld [vmem:[%s472 + $0x2] sm:$0x3]
    %v3298 = vadd.f32 %v3293, %v3297
    %v3299 = vxor.u32 %v3296, 2147483648
    %v3300 = vmul.f32 %v3299, 1.442695
    %v3301 = vpow.pop %v3300
    %v3302 = vadd.f32 %v3301, 1.0
    %v3303 = vrcp.pop %v3302
    %v3304 = vmul.f32 1.0, %v3303
    %v3305 = vtanh.pop %v3296
    %v3306 = vmul.f32 %v3304, %v3179
    %3308 = vrot.lane.b32.xlu0 %v3305, 64
    %v3309 = vpop.permute.xlu0 %3308
    %v3311 = vmul.f32 %v3304, %v3309
    %3313 = vrot.lane.b32.xlu0 %v3311, 32
    %v3314 = vpop.permute.xlu0 %3313
    %v3316 = vadd.f32 %v3306, %v3314
    %v3317 = vtanh.pop %v3316
    %3319 = vrot.lane.b32.xlu0 %v3317, 64
    %v3320 = vpop.permute.xlu0 %3319
    %v3322 = vmul.f32 %v3304, %v3320
    %v3323 = vxor.u32 %v3298, 2147483648
    %v3324 = vmul.f32 %v3323, 1.442695
    %v3325 = vpow.pop %v3324
    %v3326 = vadd.f32 %v3325, 1.0
    %v3327 = vrcp.pop %v3326
    %v3328 = vmul.f32 1.0, %v3327
    %v3329 = vtanh.pop %v3298
    %v3330 = vmul.f32 %v3328, %v3203
    %3332 = vrot.lane.b32.xlu0 %v3329, 64
    %v3333 = vpop.permute.xlu0 %3332
    %v3335 = vmul.f32 %v3328, %v3333
    %3337 = vrot.lane.b32.xlu0 %v3335, 32
    %v3338 = vpop.permute.xlu0 %3337
    %v3340 = vadd.f32 %v3330, %v3338
    %v3341 = vtanh.pop %v3340
    %3343 = vrot.lane.b32.xlu0 %v3341, 64
    %v3344 = vpop.permute.xlu0 %3343
    %v3346 = vmul.f32 %v3328, %v3344
    %3348 = vrot.lane.b32.xlu0 %v3322, 32
    %v3349 = vpop.permute.xlu0 %3348
    %3351 = vst.msk [vmem:[%s1386] sm:$0x3] %vm961, %v3349
    %3353 = vrot.lane.b32.xlu0 %v3346, 64
    %v3354 = vpop.permute.xlu0 %3353
    %3356 = vst.msk [vmem:[%s1380] sm:$0x3] %vm968, %v3354
    %v3357 = vsel %vm970, %v3349, %v3354
    %v3359 = vsel %vm830, %v3357, 0
    %3361 = vmatprep.subr.mxu0 0.0
    %3362 = vmatpush1.msra.mxu0 0.0
    %3363 = vmatprep.subr.mxu0 0.0
    %3364 = vmatpush1.msra.mxu0 0.0
    %3365 = vmatprep.subr.mxu0 0.0
    %3366 = vmatpush1.msra.mxu0 0.0
    %3367 = vmatprep.subr.mxu0 0.0
    %3368 = vmatpush1.msra.mxu0 0.0
    %3369 = vmatprep.subr.mxu0 0.0
    %3370 = vmatpush1.msra.mxu0 0.0
    %3371 = vmatprep.subr.mxu0 0.0
    %3372 = vmatpush1.msra.mxu0 0.0
    %3373 = vmatprep.subr.mxu0 0.0
    %3374 = vmatpush1.msra.mxu0 0.0
    %3375 = vmatprep.subr.mxu0 0.0
    %3376 = vmatpush1.msra.mxu0 0.0
    %3377 = vmatprep.subr.mxu0 %v1967
    %3378 = vmatpush1.msra.mxu0 %v1966
    %3379 = vmatprep.subr.mxu0 %v1965
    %3380 = vmatpush1.msra.mxu0 %v1964
    %3381 = vmatprep.subr.mxu0 %v1963
    %3382 = vmatpush1.msra.mxu0 %v1962
    %3383 = vmatprep.subr.mxu0 %v1961
    %3384 = vmatpush1.msra.mxu0 %v1960
    %3385 = vmatprep.subr.mxu0 %v1959
    %3386 = vmatpush1.msra.mxu0 %v1958
    %3387 = vmatprep.subr.mxu0 %v1957
    %3388 = vmatpush1.msra.mxu0 %v1956
    %3389 = vmatprep.subr.mxu0 %v1955
    %3390 = vmatpush1.msra.mxu0 %v1954
    %3391 = vmatprep.subr.mxu0 %v1953
    %3392 = vmatpush1.msra.mxu0 %v1952
    %3393 = vmatprep.subr.mxu0 0.0
    %3394 = vmatpush2.msra.mxu0 0.0
    %3395 = vmatprep.subr.mxu0 0.0
    %3396 = vmatpush2.msra.mxu0 0.0
    %3397 = vmatprep.subr.mxu0 0.0
    %3398 = vmatpush2.msra.mxu0 0.0
    %3399 = vmatprep.subr.mxu0 0.0
    %3400 = vmatpush2.msra.mxu0 0.0
    %3401 = vmatprep.subr.mxu0 0.0
    %3402 = vmatpush2.msra.mxu0 0.0
    %3403 = vmatprep.subr.mxu0 0.0
    %3404 = vmatpush2.msra.mxu0 0.0
    %3405 = vmatprep.subr.mxu0 0.0
    %3406 = vmatpush2.msra.mxu0 0.0
    %3407 = vmatprep.subr.mxu0 0.0
    %3408 = vmatpush2.msra.mxu0 0.0
    %3409 = vmatprep.subr.mxu0 0.0
    %3410 = vmatpush2.msra.mxu0 0.0
    %3411 = vmatprep.subr.mxu0 0.0
    %3412 = vmatpush2.msra.mxu0 0.0
    %3413 = vmatprep.subr.mxu0 0.0
    %3414 = vmatpush2.msra.mxu0 0.0
    %3415 = vmatprep.subr.mxu0 0.0
    %3416 = vmatpush2.msra.mxu0 0.0
    %3417 = vmatprep.subr.mxu0 0.0
    %3418 = vmatpush2.msra.mxu0 0.0
    %3419 = vmatprep.subr.mxu0 0.0
    %3420 = vmatpush2.msra.mxu0 0.0
    %3421 = vmatprep.subr.mxu0 0.0
    %3422 = vmatpush2.msra.mxu0 0.0
    %3423 = vmatprep.subr.mxu0 0.0
    %3424 = vmatpush2.msra.mxu0 0.0
    %3425 = vmatprep.mubr.f32.mxu0 0.0
    %3426 = vmatmul.mubr.f32.gmra.mxu0 %v3359
    %v3427 = vpop.f32.mrf.mxu0
    %v3428 = vadd.f32 0.0, %v3427
    %v3429 = vpop.f32.mrf.mxu0
    %v3430 = vadd.f32 0.0, %v3429
    %3431 = vdwg.mxu0
    %v3432 = vld [vmem:[%s650] sm:$0x3]
    %v3433 = vadd.f32 %v3428, %v3432
    %v3434 = vld [vmem:[%s383 + $0x2] sm:$0x3]
    %v3435 = vadd.f32 %v3430, %v3434
    %v3436 = vxor.u32 %v3433, 2147483648
    %v3437 = vmul.f32 %v3436, 1.442695
    %v3438 = vpow.pop %v3437
    %v3439 = vadd.f32 %v3438, 1.0
    %v3440 = vrcp.pop %v3439
    %v3441 = vmul.f32 1.0, %v3440
    %v3442 = vtanh.pop %v3433
    %v3443 = vmul.f32 %v3441, %v3316
    %3445 = vrot.lane.b32.xlu0 %v3442, 64
    %v3446 = vpop.permute.xlu0 %3445
    %v3448 = vmul.f32 %v3441, %v3446
    %3450 = vrot.lane.b32.xlu0 %v3448, 32
    %v3451 = vpop.permute.xlu0 %3450
    %v3453 = vadd.f32 %v3443, %v3451
    %v3454 = vtanh.pop %v3453
    %3456 = vrot.lane.b32.xlu0 %v3454, 64
    %v3457 = vpop.permute.xlu0 %3456
    %v3459 = vmul.f32 %v3441, %v3457
    %v3460 = vxor.u32 %v3435, 2147483648
    %v3461 = vmul.f32 %v3460, 1.442695
    %v3462 = vpow.pop %v3461
    %v3463 = vadd.f32 %v3462, 1.0
    %v3464 = vrcp.pop %v3463
    %v3465 = vmul.f32 1.0, %v3464
    %v3466 = vtanh.pop %v3435
    %v3467 = vmul.f32 %v3465, %v3340
    %3469 = vrot.lane.b32.xlu0 %v3466, 64
    %v3470 = vpop.permute.xlu0 %3469
    %v3472 = vmul.f32 %v3465, %v3470
    %3474 = vrot.lane.b32.xlu0 %v3472, 32
    %v3475 = vpop.permute.xlu0 %3474
    %v3477 = vadd.f32 %v3467, %v3475
    %v3478 = vtanh.pop %v3477
    %3480 = vrot.lane.b32.xlu0 %v3478, 64
    %v3481 = vpop.permute.xlu0 %3480
    %v3483 = vmul.f32 %v3465, %v3481
    %3485 = vrot.lane.b32.xlu0 %v3459, 32
    %v3486 = vpop.permute.xlu0 %3485
    %3488 = vst.msk [vmem:[%s1247] sm:$0x3] %vm961, %v3486
    %3490 = vrot.lane.b32.xlu0 %v3483, 64
    %v3491 = vpop.permute.xlu0 %3490
    %3493 = vst.msk [vmem:[%s1241] sm:$0x3] %vm968, %v3491
    %v3494 = vsel %vm970, %v3486, %v3491
    %v3496 = vsel %vm830, %v3494, 0
    %3498 = vmatprep.subr.mxu0 0.0
    %3499 = vmatpush1.msra.mxu0 0.0
    %3500 = vmatprep.subr.mxu0 0.0
    %3501 = vmatpush1.msra.mxu0 0.0
    %3502 = vmatprep.subr.mxu0 0.0
    %3503 = vmatpush1.msra.mxu0 0.0
    %3504 = vmatprep.subr.mxu0 0.0
    %3505 = vmatpush1.msra.mxu0 0.0
    %3506 = vmatprep.subr.mxu0 0.0
    %3507 = vmatpush1.msra.mxu0 0.0
    %3508 = vmatprep.subr.mxu0 0.0
    %3509 = vmatpush1.msra.mxu0 0.0
    %3510 = vmatprep.subr.mxu0 0.0
    %3511 = vmatpush1.msra.mxu0 0.0
    %3512 = vmatprep.subr.mxu0 0.0
    %3513 = vmatpush1.msra.mxu0 0.0
    %3514 = vmatprep.subr.mxu0 %v1967
    %3515 = vmatpush1.msra.mxu0 %v1966
    %3516 = vmatprep.subr.mxu0 %v1965
    %3517 = vmatpush1.msra.mxu0 %v1964
    %3518 = vmatprep.subr.mxu0 %v1963
    %3519 = vmatpush1.msra.mxu0 %v1962
    %3520 = vmatprep.subr.mxu0 %v1961
    %3521 = vmatpush1.msra.mxu0 %v1960
    %3522 = vmatprep.subr.mxu0 %v1959
    %3523 = vmatpush1.msra.mxu0 %v1958
    %3524 = vmatprep.subr.mxu0 %v1957
    %3525 = vmatpush1.msra.mxu0 %v1956
    %3526 = vmatprep.subr.mxu0 %v1955
    %3527 = vmatpush1.msra.mxu0 %v1954
    %3528 = vmatprep.subr.mxu0 %v1953
    %3529 = vmatpush1.msra.mxu0 %v1952
    %3530 = vmatprep.subr.mxu0 0.0
    %3531 = vmatpush2.msra.mxu0 0.0
    %3532 = vmatprep.subr.mxu0 0.0
    %3533 = vmatpush2.msra.mxu0 0.0
    %3534 = vmatprep.subr.mxu0 0.0
    %3535 = vmatpush2.msra.mxu0 0.0
    %3536 = vmatprep.subr.mxu0 0.0
    %3537 = vmatpush2.msra.mxu0 0.0
    %3538 = vmatprep.subr.mxu0 0.0
    %3539 = vmatpush2.msra.mxu0 0.0
    %3540 = vmatprep.subr.mxu0 0.0
    %3541 = vmatpush2.msra.mxu0 0.0
    %3542 = vmatprep.subr.mxu0 0.0
    %3543 = vmatpush2.msra.mxu0 0.0
    %3544 = vmatprep.subr.mxu0 0.0
    %3545 = vmatpush2.msra.mxu0 0.0
    %3546 = vmatprep.subr.mxu0 0.0
    %3547 = vmatpush2.msra.mxu0 0.0
    %3548 = vmatprep.subr.mxu0 0.0
    %3549 = vmatpush2.msra.mxu0 0.0
    %3550 = vmatprep.subr.mxu0 0.0
    %3551 = vmatpush2.msra.mxu0 0.0
    %3552 = vmatprep.subr.mxu0 0.0
    %3553 = vmatpush2.msra.mxu0 0.0
    %3554 = vmatprep.subr.mxu0 0.0
    %3555 = vmatpush2.msra.mxu0 0.0
    %3556 = vmatprep.subr.mxu0 0.0
    %3557 = vmatpush2.msra.mxu0 0.0
    %3558 = vmatprep.subr.mxu0 0.0
    %3559 = vmatpush2.msra.mxu0 0.0
    %3560 = vmatprep.subr.mxu0 0.0
    %3561 = vmatpush2.msra.mxu0 0.0
    %3562 = vmatprep.mubr.f32.mxu0 0.0
    %3563 = vmatmul.mubr.f32.gmra.mxu0 %v3496
    %v3564 = vpop.f32.mrf.mxu0
    %v3565 = vadd.f32 0.0, %v3564
    %v3566 = vpop.f32.mrf.mxu0
    %v3567 = vadd.f32 0.0, %v3566
    %3568 = vdwg.mxu0
    %v3569 = vld [vmem:[%s739] sm:$0x3]
    %v3570 = vadd.f32 %v3565, %v3569
    %v3571 = vld [vmem:[%s294 + $0x2] sm:$0x3]
    %v3572 = vadd.f32 %v3567, %v3571
    %v3573 = vxor.u32 %v3570, 2147483648
    %v3574 = vmul.f32 %v3573, 1.442695
    %v3575 = vpow.pop %v3574
    %v3576 = vadd.f32 %v3575, 1.0
    %v3577 = vrcp.pop %v3576
    %v3578 = vmul.f32 1.0, %v3577
    %v3579 = vtanh.pop %v3570
    %v3580 = vmul.f32 %v3578, %v3453
    %3582 = vrot.lane.b32.xlu0 %v3579, 64
    %v3583 = vpop.permute.xlu0 %3582
    %v3585 = vmul.f32 %v3578, %v3583
    %3587 = vrot.lane.b32.xlu0 %v3585, 32
    %v3588 = vpop.permute.xlu0 %3587
    %v3590 = vadd.f32 %v3580, %v3588
    %v3591 = vtanh.pop %v3590
    %3593 = vrot.lane.b32.xlu0 %v3591, 64
    %v3594 = vpop.permute.xlu0 %3593
    %v3596 = vmul.f32 %v3578, %v3594
    %v3597 = vxor.u32 %v3572, 2147483648
    %v3598 = vmul.f32 %v3597, 1.442695
    %v3599 = vpow.pop %v3598
    %v3600 = vadd.f32 %v3599, 1.0
    %v3601 = vrcp.pop %v3600
    %v3602 = vmul.f32 1.0, %v3601
    %v3603 = vtanh.pop %v3572
    %v3604 = vmul.f32 %v3602, %v3477
    %3606 = vrot.lane.b32.xlu0 %v3603, 64
    %v3607 = vpop.permute.xlu0 %3606
    %v3609 = vmul.f32 %v3602, %v3607
    %3611 = vrot.lane.b32.xlu0 %v3609, 32
    %v3612 = vpop.permute.xlu0 %3611
    %v3614 = vadd.f32 %v3604, %v3612
    %v3615 = vtanh.pop %v3614
    %3617 = vrot.lane.b32.xlu0 %v3615, 64
    %v3618 = vpop.permute.xlu0 %3617
    %v3620 = vmul.f32 %v3602, %v3618
    %3622 = vrot.lane.b32.xlu0 %v3596, 32
    %v3623 = vpop.permute.xlu0 %3622
    %3625 = vst.msk [vmem:[%s1108] sm:$0x3] %vm961, %v3623
    %3627 = vrot.lane.b32.xlu0 %v3620, 64
    %v3628 = vpop.permute.xlu0 %3627
    %3630 = vst.msk [vmem:[%s1102] sm:$0x3] %vm968, %v3628
    %v3631 = vsel %vm970, %v3623, %v3628
    %v3633 = vsel %vm830, %v3631, 0
    %3635 = vmatprep.subr.mxu0 0.0
    %3636 = vmatpush1.msra.mxu0 0.0
    %3637 = vmatprep.subr.mxu0 0.0
    %3638 = vmatpush1.msra.mxu0 0.0
    %3639 = vmatprep.subr.mxu0 0.0
    %3640 = vmatpush1.msra.mxu0 0.0
    %3641 = vmatprep.subr.mxu0 0.0
    %3642 = vmatpush1.msra.mxu0 0.0
    %3643 = vmatprep.subr.mxu0 0.0
    %3644 = vmatpush1.msra.mxu0 0.0
    %3645 = vmatprep.subr.mxu0 0.0
    %3646 = vmatpush1.msra.mxu0 0.0
    %3647 = vmatprep.subr.mxu0 0.0
    %3648 = vmatpush1.msra.mxu0 0.0
    %3649 = vmatprep.subr.mxu0 0.0
    %3650 = vmatpush1.msra.mxu0 0.0
    %3651 = vmatprep.subr.mxu0 %v1967
    %3652 = vmatpush1.msra.mxu0 %v1966
    %3653 = vmatprep.subr.mxu0 %v1965
    %3654 = vmatpush1.msra.mxu0 %v1964
    %3655 = vmatprep.subr.mxu0 %v1963
    %3656 = vmatpush1.msra.mxu0 %v1962
    %3657 = vmatprep.subr.mxu0 %v1961
    %3658 = vmatpush1.msra.mxu0 %v1960
    %3659 = vmatprep.subr.mxu0 %v1959
    %3660 = vmatpush1.msra.mxu0 %v1958
    %3661 = vmatprep.subr.mxu0 %v1957
    %3662 = vmatpush1.msra.mxu0 %v1956
    %3663 = vmatprep.subr.mxu0 %v1955
    %3664 = vmatpush1.msra.mxu0 %v1954
    %3665 = vmatprep.subr.mxu0 %v1953
    %3666 = vmatpush1.msra.mxu0 %v1952
    %3667 = vmatprep.subr.mxu0 0.0
    %3668 = vmatpush2.msra.mxu0 0.0
    %3669 = vmatprep.subr.mxu0 0.0
    %3670 = vmatpush2.msra.mxu0 0.0
    %3671 = vmatprep.subr.mxu0 0.0
    %3672 = vmatpush2.msra.mxu0 0.0
    %3673 = vmatprep.subr.mxu0 0.0
    %3674 = vmatpush2.msra.mxu0 0.0
    %3675 = vmatprep.subr.mxu0 0.0
    %3676 = vmatpush2.msra.mxu0 0.0
    %3677 = vmatprep.subr.mxu0 0.0
    %3678 = vmatpush2.msra.mxu0 0.0
    %3679 = vmatprep.subr.mxu0 0.0
    %3680 = vmatpush2.msra.mxu0 0.0
    %3681 = vmatprep.subr.mxu0 0.0
    %3682 = vmatpush2.msra.mxu0 0.0
    %3683 = vmatprep.subr.mxu0 0.0
    %3684 = vmatpush2.msra.mxu0 0.0
    %3685 = vmatprep.subr.mxu0 0.0
    %3686 = vmatpush2.msra.mxu0 0.0
    %3687 = vmatprep.subr.mxu0 0.0
    %3688 = vmatpush2.msra.mxu0 0.0
    %3689 = vmatprep.subr.mxu0 0.0
    %3690 = vmatpush2.msra.mxu0 0.0
    %3691 = vmatprep.subr.mxu0 0.0
    %3692 = vmatpush2.msra.mxu0 0.0
    %3693 = vmatprep.subr.mxu0 0.0
    %3694 = vmatpush2.msra.mxu0 0.0
    %3695 = vmatprep.subr.mxu0 0.0
    %3696 = vmatpush2.msra.mxu0 0.0
    %3697 = vmatprep.subr.mxu0 0.0
    %3698 = vmatpush2.msra.mxu0 0.0
    %3699 = vmatprep.mubr.f32.mxu0 0.0
    %3700 = vmatmul.mubr.f32.gmra.mxu0 %v3633
    %v3701 = vpop.f32.mrf.mxu0
    %v3702 = vadd.f32 0.0, %v3701
    %v3703 = vpop.f32.mrf.mxu0
    %v3704 = vadd.f32 0.0, %v3703
    %3705 = vdwg.mxu0
    %v3706 = vld [vmem:[%s828] sm:$0x3]
    %v3707 = vadd.f32 %v3702, %v3706
    %v3708 = vld [vmem:[#allocation3 + $0x2] sm:$0x3]
    %v3709 = vadd.f32 %v3704, %v3708
    %v3710 = vxor.u32 %v3707, 2147483648
    %v3711 = vmul.f32 %v3710, 1.442695
    %v3712 = vpow.pop %v3711
    %v3713 = vadd.f32 %v3712, 1.0
    %v3714 = vrcp.pop %v3713
    %v3715 = vmul.f32 1.0, %v3714
    %v3716 = vtanh.pop %v3707
    %v3717 = vmul.f32 %v3715, %v3590
    %3719 = vrot.lane.b32.xlu0 %v3716, 64
    %v3720 = vpop.permute.xlu0 %3719
    %v3722 = vmul.f32 %v3715, %v3720
    %3724 = vrot.lane.b32.xlu0 %v3722, 32
    %v3725 = vpop.permute.xlu0 %3724
    %v3727 = vadd.f32 %v3717, %v3725
    %v3728 = vtanh.pop %v3727
    %3730 = vrot.lane.b32.xlu0 %v3728, 64
    %v3731 = vpop.permute.xlu0 %3730
    %v3733 = vmul.f32 %v3715, %v3731
    %v3734 = vxor.u32 %v3709, 2147483648
    %v3735 = vmul.f32 %v3734, 1.442695
    %v3736 = vpow.pop %v3735
    %v3737 = vadd.f32 %v3736, 1.0
    %v3738 = vrcp.pop %v3737
    %v3739 = vmul.f32 1.0, %v3738
    %v3740 = vtanh.pop %v3709
    %v3741 = vmul.f32 %v3739, %v3614
    %3743 = vrot.lane.b32.xlu0 %v3740, 64
    %v3744 = vpop.permute.xlu0 %3743
    %v3746 = vmul.f32 %v3739, %v3744
    %3748 = vrot.lane.b32.xlu0 %v3746, 32
    %v3749 = vpop.permute.xlu0 %3748
    %v3751 = vadd.f32 %v3741, %v3749
    %v3752 = vtanh.pop %v3751
    %3754 = vrot.lane.b32.xlu0 %v3752, 64
    %v3755 = vpop.permute.xlu0 %3754
    %v3757 = vmul.f32 %v3739, %v3755
    %3759 = vrot.lane.b32.xlu0 %v3733, 32
    %v3760 = vpop.permute.xlu0 %3759
    %3762 = vst.msk [vmem:[%s967] sm:$0x3] %vm961, %v3760
    %3764 = vrot.lane.b32.xlu0 %v3757, 64
    %v3765 = vpop.permute.xlu0 %3764
    %3767 = vst.msk [vmem:[#allocation2] sm:$0x3] %vm968, %v3765
    %v3768 = vld [vmem:[#allocation2] sm:$0x3]
    %v3769 = vld [vmem:[#allocation2 + $0x2] sm:$0x3]
    %v3770 = vld [vmem:[#allocation2 + $0x4] sm:$0x3]
    %v3771 = vld [vmem:[#allocation2 + $0x6] sm:$0x3]
    %v3772 = vld [vmem:[#allocation2 + $0x8] sm:$0x3]
    %v3773 = vld [vmem:[#allocation2 + $0xa] sm:$0x3]
    %v3774 = vld [vmem:[#allocation2 + $0xc] sm:$0x3]
    %v3775 = vld [vmem:[#allocation2 + $0xe] sm:$0x3]
    %v3776 = vld [vmem:[%s7] sm:$0x1]
    %v3778 = vlaneseq
    %v3779 = vshrl.u32 %v3778, 7
    %v3780 = vsub.s32 0, %v3779
    %v3781 = vrot.slane %v3776, %v3780
    %v3783 = vmul.f32 %v3768, %v3781
    %v3784 = vmul.f32 %v3769, %v3781
    %v3785 = vmul.f32 %v3770, %v3781
    %v3786 = vmul.f32 %v3771, %v3781
    %v3787 = vmul.f32 %v3772, %v3781
    %v3788 = vmul.f32 %v3773, %v3781
    %v3789 = vmul.f32 %v3774, %v3781
    %v3790 = vmul.f32 %v3775, %v3781
    %vm3791 = vcmask 517120
    %v3792 = vsel %vm3791, %v3783, 0.0
    %3793 = vadd.xlane.f32.xlu0 %v3792
    %v3794 = vpop.xlane.xlu0 %3793
    %v3795 = vsel %vm3791, %v3784, 0.0
    %3796 = vadd.xlane.f32.xlu0 %v3795
    %v3797 = vpop.xlane.xlu0 %3796
    %v3798 = vsel %vm3791, %v3785, 0.0
    %3799 = vadd.xlane.f32.xlu0 %v3798
    %v3800 = vpop.xlane.xlu0 %3799
    %v3801 = vsel %vm3791, %v3786, 0.0
    %3802 = vadd.xlane.f32.xlu0 %v3801
    %v3803 = vpop.xlane.xlu0 %3802
    %v3804 = vsel %vm3791, %v3787, 0.0
    %3805 = vadd.xlane.f32.xlu0 %v3804
    %v3806 = vpop.xlane.xlu0 %3805
    %v3807 = vsel %vm3791, %v3788, 0.0
    %3808 = vadd.xlane.f32.xlu0 %v3807
    %v3809 = vpop.xlane.xlu0 %3808
    %v3810 = vsel %vm3791, %v3789, 0.0
    %3811 = vadd.xlane.f32.xlu0 %v3810
    %v3812 = vpop.xlane.xlu0 %3811
    %v3813 = vsel %vm3791, %v3790, 0.0
    %3814 = vadd.xlane.f32.xlu0 %v3813
    %v3815 = vpop.xlane.xlu0 %3814
    %v3816 = vld [vmem:[#allocation4] sm:$0x1]
    %v3818 = vlaneseq
    %v3819 = vshrl.u32 %v3818, 7
    %v3820 = vsub.s32 0, %v3819
    %v3821 = vrot.slane %v3816, %v3820
    %v3823 = vadd.f32 %v3794, %v3821
    %v3824 = vadd.f32 %v3797, %v3821
    %v3825 = vadd.f32 %v3800, %v3821
    %v3826 = vadd.f32 %v3803, %v3821
    %v3827 = vadd.f32 %v3806, %v3821
    %v3828 = vadd.f32 %v3809, %v3821
    %v3829 = vadd.f32 %v3812, %v3821
    %v3830 = vadd.f32 %v3815, %v3821
    %vm3831 = vcmask 1024
    %v3832 = vsel %vm3831, %v3823, -inf
    %v3833 = vsel %vm3831, %v3824, -inf
    %v3834 = vsel %vm3831, %v3825, -inf
    %v3835 = vsel %vm3831, %v3826, -inf
    %v3836 = vsel %vm3831, %v3827, -inf
    %v3837 = vmax.f32 %v3832, %v3836
    %v3838 = vsel %vm3831, %v3828, -inf
    %v3839 = vmax.f32 %v3833, %v3838
    %v3840 = vsel %vm3831, %v3829, -inf
    %v3841 = vmax.f32 %v3834, %v3840
    %v3842 = vsel %vm3831, %v3830, -inf
    %v3843 = vmax.f32 %v3835, %v3842
    %v3844 = vmax.f32 %v3837, %v3839
    %v3845 = vmax.f32 %v3841, %v3843
    %v3846 = vmax.f32 %v3844, %v3845
    %v3847 = vsub.f32 %v3823, %v3846
    %v3848 = vsub.f32 %v3824, %v3846
    %v3849 = vsub.f32 %v3825, %v3846
    %v3850 = vsub.f32 %v3826, %v3846
    %v3851 = vsub.f32 %v3827, %v3846
    %v3852 = vsub.f32 %v3828, %v3846
    %v3853 = vsub.f32 %v3829, %v3846
    %v3854 = vsub.f32 %v3830, %v3846
    %v3855 = vmul.f32 %v3847, 1.442695
    %v3856 = vpow.pop %v3855
    %v3857 = vmul.f32 %v3848, 1.442695
    %v3858 = vpow.pop %v3857
    %v3859 = vmul.f32 %v3849, 1.442695
    %v3860 = vpow.pop %v3859
    %v3861 = vmul.f32 %v3850, 1.442695
    %v3862 = vpow.pop %v3861
    %v3863 = vmul.f32 %v3851, 1.442695
    %v3864 = vpow.pop %v3863
    %v3865 = vmul.f32 %v3852, 1.442695
    %v3866 = vpow.pop %v3865
    %v3867 = vmul.f32 %v3853, 1.442695
    %v3868 = vpow.pop %v3867
    %v3869 = vmul.f32 %v3854, 1.442695
    %v3870 = vpow.pop %v3869
    %v3871 = vsel %vm3831, %v3856, 0.0
    %v3872 = vsel %vm3831, %v3858, 0.0
    %v3873 = vadd.f32 %v3871, %v3872
    %v3874 = vsel %vm3831, %v3860, 0.0
    %v3875 = vadd.f32 %v3873, %v3874
    %v3876 = vsel %vm3831, %v3862, 0.0
    %v3877 = vadd.f32 %v3875, %v3876
    %v3878 = vsel %vm3831, %v3864, 0.0
    %v3879 = vadd.f32 %v3877, %v3878
    %v3880 = vsel %vm3831, %v3866, 0.0
    %v3881 = vadd.f32 %v3879, %v3880
    %v3882 = vsel %vm3831, %v3868, 0.0
    %v3883 = vadd.f32 %v3881, %v3882
    %v3884 = vsel %vm3831, %v3870, 0.0
    %v3885 = vadd.f32 %v3883, %v3884
    %v3886 = vrcp.pop %v3885
    %v3887 = vmul.f32 %v3856, %v3886
    %v3888 = vmul.f32 %v3858, %v3886
    %v3889 = vmul.f32 %v3860, %v3886
    %v3890 = vmul.f32 %v3862, %v3886
    %v3891 = vmul.f32 %v3864, %v3886
    %v3892 = vmul.f32 %v3866, %v3886
    %v3893 = vmul.f32 %v3868, %v3886
    %v3894 = vmul.f32 %v3870, %v3886
    %3896 = vset.pattern.permute.xlu0 0
    %3897 = vperm.xlu0 %3896, %v3887
    %v3898 = vpop.permute.xlu0 %3897
    %3901 = vset.pattern.permute.xlu0 0
    %3902 = vperm.xlu0 %3901, %v3888
    %v3903 = vpop.permute.xlu0 %3902
    %3906 = vset.pattern.permute.xlu0 0
    %3907 = vperm.xlu0 %3906, %v3889
    %v3908 = vpop.permute.xlu0 %3907
    %3911 = vset.pattern.permute.xlu0 0
    %3912 = vperm.xlu0 %3911, %v3890
    %v3913 = vpop.permute.xlu0 %3912
    %3916 = vset.pattern.permute.xlu0 0
    %3917 = vperm.xlu0 %3916, %v3891
    %v3918 = vpop.permute.xlu0 %3917
    %3921 = vset.pattern.permute.xlu0 0
    %3922 = vperm.xlu0 %3921, %v3892
    %v3923 = vpop.permute.xlu0 %3922
    %3926 = vset.pattern.permute.xlu0 0
    %3927 = vperm.xlu0 %3926, %v3893
    %v3928 = vpop.permute.xlu0 %3927
    %3931 = vset.pattern.permute.xlu0 0
    %3932 = vperm.xlu0 %3931, %v3894
    %v3933 = vpop.permute.xlu0 %3932
    %v3935 = vmul.f32 %v3768, %v3898
    %v3936 = vmul.f32 %v3769, %v3903
    %v3937 = vmul.f32 %v3770, %v3908
    %v3938 = vmul.f32 %v3771, %v3913
    %v3939 = vmul.f32 %v3772, %v3918
    %v3940 = vmul.f32 %v3773, %v3923
    %v3941 = vmul.f32 %v3774, %v3928
    %v3942 = vmul.f32 %v3775, %v3933
    %v3943 = vsel %vm3791, %v3935, 0.0
    %v3944 = vsel %vm3791, %v3936, 0.0
    %v3945 = vadd.f32 %v3943, %v3944
    %v3946 = vsel %vm3791, %v3937, 0.0
    %v3947 = vadd.f32 %v3945, %v3946
    %v3948 = vsel %vm3791, %v3938, 0.0
    %v3949 = vadd.f32 %v3947, %v3948
    %v3950 = vsel %vm3791, %v3939, 0.0
    %v3951 = vadd.f32 %v3949, %v3950
    %v3952 = vsel %vm3791, %v3940, 0.0
    %v3953 = vadd.f32 %v3951, %v3952
    %v3954 = vsel %vm3791, %v3941, 0.0
    %v3955 = vadd.f32 %v3953, %v3954
    %v3956 = vsel %vm3791, %v3942, 0.0
    %v3957 = vadd.f32 %v3955, %v3956
    %v3958 = vld [vmem:[%s9] sm:$0xff]
    %v3959 = vld [vmem:[%s9 + $0x8] sm:$0xff]
    %v3960 = vld [vmem:[%s9 + $0x10] sm:$0xff]
    %v3961 = vld [vmem:[%s9 + $0x18] sm:$0xff]
    %v3962 = vld [vmem:[%s9 + $0x20] sm:$0xff]
    %v3963 = vld [vmem:[%s9 + $0x28] sm:$0xff]
    %v3964 = vld [vmem:[%s9 + $0x30] sm:$0xff]
    %v3965 = vld [vmem:[%s9 + $0x38] sm:$0xff]
    %v3966 = vld [vmem:[#allocation5] sm:$0x1]
    %v3968 = vlaneseq
    %v3969 = vshrl.u32 %v3968, 7
    %v3970 = vsub.s32 0, %v3969
    %v3971 = vrot.slane %v3966, %v3970
    %v3974 = vsel %vm830, %v3957, 0
    %3976 = vmatprep.subr.mxu0 0.0
    %3977 = vmatpush1.msra.mxu0 0.0
    %3978 = vmatprep.subr.mxu0 0.0
    %3979 = vmatpush1.msra.mxu0 0.0
    %3980 = vmatprep.subr.mxu0 0.0
    %3981 = vmatpush1.msra.mxu0 0.0
    %3982 = vmatprep.subr.mxu0 0.0
    %3983 = vmatpush1.msra.mxu0 0.0
    %3984 = vmatprep.subr.mxu0 0.0
    %3985 = vmatpush1.msra.mxu0 0.0
    %3986 = vmatprep.subr.mxu0 0.0
    %3987 = vmatpush1.msra.mxu0 0.0
    %3988 = vmatprep.subr.mxu0 0.0
    %3989 = vmatpush1.msra.mxu0 0.0
    %3990 = vmatprep.subr.mxu0 0.0
    %3991 = vmatpush1.msra.mxu0 0.0
    %3992 = vmatprep.subr.mxu0 0.0
    %3993 = vmatpush1.msra.mxu0 %v3965
    %3994 = vmatprep.subr.mxu0 0.0
    %3995 = vmatpush1.msra.mxu0 %v3964
    %3996 = vmatprep.subr.mxu0 0.0
    %3997 = vmatpush1.msra.mxu0 %v3963
    %3998 = vmatprep.subr.mxu0 0.0
    %3999 = vmatpush1.msra.mxu0 %v3962
    %4000 = vmatprep.subr.mxu0 0.0
    %4001 = vmatpush1.msra.mxu0 %v3961
    %4002 = vmatprep.subr.mxu0 0.0
    %4003 = vmatpush1.msra.mxu0 %v3960
    %4004 = vmatprep.subr.mxu0 0.0
    %4005 = vmatpush1.msra.mxu0 %v3959
    %4006 = vmatprep.subr.mxu0 0.0
    %4007 = vmatpush1.msra.mxu0 %v3958
    %4008 = vmatprep.subr.mxu0 0.0
    %4009 = vmatpush2.msra.mxu0 0.0
    %4010 = vmatprep.subr.mxu0 0.0
    %4011 = vmatpush2.msra.mxu0 0.0
    %4012 = vmatprep.subr.mxu0 0.0
    %4013 = vmatpush2.msra.mxu0 0.0
    %4014 = vmatprep.subr.mxu0 0.0
    %4015 = vmatpush2.msra.mxu0 0.0
    %4016 = vmatprep.subr.mxu0 0.0
    %4017 = vmatpush2.msra.mxu0 0.0
    %4018 = vmatprep.subr.mxu0 0.0
    %4019 = vmatpush2.msra.mxu0 0.0
    %4020 = vmatprep.subr.mxu0 0.0
    %4021 = vmatpush2.msra.mxu0 0.0
    %4022 = vmatprep.subr.mxu0 0.0
    %4023 = vmatpush2.msra.mxu0 0.0
    %4024 = vmatprep.subr.mxu0 0.0
    %4025 = vmatpush2.msra.mxu0 0.0
    %4026 = vmatprep.subr.mxu0 0.0
    %4027 = vmatpush2.msra.mxu0 0.0
    %4028 = vmatprep.subr.mxu0 0.0
    %4029 = vmatpush2.msra.mxu0 0.0
    %4030 = vmatprep.subr.mxu0 0.0
    %4031 = vmatpush2.msra.mxu0 0.0
    %4032 = vmatprep.subr.mxu0 0.0
    %4033 = vmatpush2.msra.mxu0 0.0
    %4034 = vmatprep.subr.mxu0 0.0
    %4035 = vmatpush2.msra.mxu0 0.0
    %4036 = vmatprep.subr.mxu0 0.0
    %4037 = vmatpush2.msra.mxu0 0.0
    %4038 = vmatprep.subr.mxu0 0.0
    %4039 = vmatpush2.msra.mxu0 0.0
    %4040 = vmatprep.mubr.f32.mxu0 0.0
    %4041 = vmatmul.mubr.f32.gmra.mxu0 %v3974
    %v4042 = vpop.f32.mrf.mxu0
    %v4043 = vadd.f32 %v3971, %v4042
    %v4044 = vpop.f32.mrf.mxu0
    %4045 = vdwg.mxu0
    %v4046 = vxor.u32 %v4043, 2147483648
    %v4047 = vmul.f32 %v4046, 1.442695
    %v4048 = vpow.pop %v4047
    %v4049 = vadd.f32 %v4048, 1.0
    %v4050 = vrcp.pop %v4049
    %v4051 = vmul.f32 1.0, %v4050
    %4052 = vst.msk [vmem:[%s11] sm:$0x3] %vm3831, %v4051
    // Predicated region
    $region58: #{advanced_lstm_forward.1} parent=1 // pred_check
      _
    $region59: #{advanced_lstm_forward.1} parent=1 // pred_check_branch
      %4054 = sbr.rel (0) target = $region61
    $region60: #{advanced_lstm_forward.1} parent=1 // pred_region
      _
    $region61: #{advanced_lstm_forward.1} parent=1 // pred_fallthru
      _
    // Predicated region
    $region62: #{advanced_lstm_forward.1} parent=1 // pred_check
      _
    $region63: #{advanced_lstm_forward.1} parent=1 // pred_check_branch
      %4056 = sbr.rel (0) target = $region65
    $region64: #{advanced_lstm_forward.1} parent=1 // pred_region
      _
    $region65: #{advanced_lstm_forward.1} parent=1 // pred_fallthru
      _
    %4057 = vsyncpa [#allocation7], 1
    %4058 = vsyncpa [#allocation9], 1

</llo_original>
